<compile_context>
chip_gen: v7x
topology: tpu7x:2x2x1
jax: 0.10.0
libtpu: 0.0.40
codegen_flags: <defaults>
</compile_context>

<pallas_src>
import math
import functools

import jax
import jax.numpy as jnp
from jax.experimental import pallas as pl
from jax.experimental.pallas import tpu as pltpu


def _layer_norm(x, gamma, beta, eps=1e-5):
    mu = jnp.mean(x, axis=-1, keepdims=True)
    var = jnp.mean(jnp.square(x - mu), axis=-1, keepdims=True)
    return (x - mu) * jax.lax.rsqrt(var + eps) * gamma + beta


def _encoder_stack_kernel(x_ref,
                          wqkv_ref, bqkv_ref, wo_ref, bo_ref,
                          w1_ref, b1_ref, w2_ref, b2_ref,
                          g1_ref, bt1_ref, g2_ref, bt2_ref,
                          out_ref,
                          act_ref, x1_ref, ffn_ref,
                          *, num_heads):
    layer = pl.program_id(1)
    fchunk = pl.program_id(2)
    last_l = pl.num_programs(1) - 1
    last_f = pl.num_programs(2) - 1

    Bt, S, E = x_ref.shape
    H = num_heads
    Dh = E // H
    T = Bt * S
    cdt = jnp.bfloat16                      # MXU input dtype (accumulation stays f32)

    # Load the source activation once, at the first layer of each batch tile.
    @pl.when((layer == 0) & (fchunk == 0))
    def _():
        act_ref[...] = x_ref[...].astype(jnp.float32).reshape(T, E)

    # ---- multi-head self-attention + residual + LN1: once per layer (first FFN chunk) ----
    @pl.when(fchunk == 0)
    def _():
        xt = act_ref[...]                                                # (T, E) f32
        qkv = jnp.dot(xt.astype(cdt), wqkv_ref[0],
                      preferred_element_type=jnp.float32) + bqkv_ref[0]  # (T, 3E) f32
        scale = 1.0 / math.sqrt(Dh)

        def split_heads(a_bf16):
            # (T, E) -> (Bt, S, H, Dh) -> (Bt, H, S, Dh) -> (Bt*H, S, Dh); single relayout
            return jnp.transpose(a_bf16.reshape(Bt, S, H, Dh),
                                 (0, 2, 1, 3)).reshape(Bt * H, S, Dh)

        # scale folded into q once (f32), then everything relayouts/matmuls in bf16
        q = split_heads((qkv[:, :E] * scale).astype(cdt))
        k = split_heads(qkv[:, E:2 * E].astype(cdt))
        v = split_heads(qkv[:, 2 * E:].astype(cdt))

        s = jnp.einsum('bqd,bkd->bqk', q, k,
                       preferred_element_type=jnp.float32)               # (Bt*H, S, S) f32
        m = jnp.max(s, axis=-1, keepdims=True)
        e = jnp.exp(s - m)
        p = (e * pl.reciprocal(jnp.sum(e, axis=-1, keepdims=True),
                               approx=True)).astype(cdt)
        c = jnp.einsum('bqk,bkd->bqd', p, v,
                       preferred_element_type=jnp.float32)               # (Bt*H, S, Dh) f32

        # concat heads back to (T, E) with one relayout, then a single full-K out-projection
        c_cat = jnp.transpose(c.astype(cdt).reshape(Bt, H, S, Dh),
                              (0, 2, 1, 3)).reshape(T, E)
        attn = jnp.dot(c_cat, wo_ref[0],
                       preferred_element_type=jnp.float32) + bo_ref[0]

        # TODO(synk): dropout is train-mode stochastic in PyTorch; implemented as eval-mode identity.
        x1_ref[...] = _layer_norm(xt + attn, g1_ref[0], bt1_ref[0])
        ffn_ref[...] = jnp.zeros_like(ffn_ref)

    # ---- FFN: one streamed (E,Ft)/(Ft,E) weight chunk per grid step ----
    x1 = x1_ref[...]
    hid = jnp.maximum(
        jnp.dot(x1.astype(cdt), w1_ref[0], preferred_element_type=jnp.float32)
        + b1_ref[0], 0.0).astype(cdt)                                    # (T, Ft) bf16
    ffn_ref[...] += jnp.dot(hid, w2_ref[0], preferred_element_type=jnp.float32)

    # ---- residual + LN2, carry / final store: last FFN chunk ----
    @pl.when(fchunk == last_f)
    def _():
        x2 = _layer_norm(x1_ref[...] + ffn_ref[...] + b2_ref[0],
                         g2_ref[0], bt2_ref[0])
        act_ref[...] = x2                                  # carry to next layer

    @pl.when((fchunk == last_f) & (layer == last_l))
    def _():
        out_ref[...] = act_ref[...].reshape(Bt, S, E).astype(out_ref.dtype)


def _vmem_capacity_bytes():
    try:
        return int(pltpu.get_tpu_info().vmem_capacity_bytes)
    except Exception:
        return 64 << 20        # conservative default (v7x per-TensorCore)


def transformer_encoder_diff_init(src, params, num_heads, final_norm=None,
                                  batch_block=None, ffn_block=None):
    """src: (S, B, E) like PyTorch; mask / src_key_padding_mask assumed None."""
    S, B, E = src.shape
    L = params['wqkv'].shape[0]
    F = params['w1'].shape[-1]
    H = num_heads
    assert E % H == 0

    # Batch tiling: default bt=B (nb=1) -> each layer's weights are DMA'd exactly once
    # (right choice on single-TC v5e/v6e).  On v7x pass batch_block=B//2 so the leading
    # "parallel" axis has extent 2 and both TensorCores get work.
    bt = B if batch_block is None else batch_block
    assert B % bt == 0
    nb = B // bt

    # FFN streaming: w1/w2 fetched in (E, Ft)/(Ft, E) chunks over the third grid axis.
    if ffn_block is None or ffn_block >= F:
        Ft = F
    else:
        Ft = ffn_block
        assert F % Ft == 0 and Ft % 128 == 0, \
            "ffn_block must divide dim_ff and be a multiple of 128"
    nf = F // Ft

    x = jnp.transpose(src, (1, 0, 2)).astype(jnp.float32)                # (B, S, E)

    def per_layer(shape):
        return pl.BlockSpec((1,) + shape, lambda b, l, f: (l,) + (0,) * len(shape))

    act_spec = pl.BlockSpec((bt, S, E), lambda b, l, f: (b, 0, 0))
    w1_spec = pl.BlockSpec((1, E, Ft), lambda b, l, f: (l, 0, f))
    b1_spec = pl.BlockSpec((1, 1, Ft), lambda b, l, f: (l, 0, f))
    w2_spec = pl.BlockSpec((1, Ft, E), lambda b, l, f: (l, f, 0))

    in_specs = [act_spec,
                per_layer((E, 3 * E)), per_layer((1, 3 * E)),
                per_layer((E, E)),     per_layer((1, E)),
                w1_spec,               b1_spec,
                w2_spec,               per_layer((1, E)),
                per_layer((1, E)),     per_layer((1, E)),
                per_layer((1, E)),     per_layer((1, E))]

    # --- VMEM budget: weights + params + carries + IO + the big temporaries ---
    T = bt * S
    BH = bt * H
    w_bytes = 2 * 2 * (E * 3 * E + E * E + E * Ft + Ft * E)     # dbl-buffered bf16 weights
    p_bytes = 2 * 4 * (3 * E + E + Ft + E + 4 * E)              # dbl-buffered f32 biases/LN
    carry_bytes = 3 * 4 * T * E                                 # act / x1 / ffn f32 scratch
    io_bytes = 2 * 2 * 4 * T * E                                # dbl-buffered f32 in & out tiles
    attn_tmp = (4 * T * 3 * E            # qkv f32
                + 2 * 3 * T * E          # q/k/v bf16
                + 2 * 4 * BH * S * S     # scores + exp f32
                + 2 * BH * S * S         # probs bf16
                + 2 * 4 * T * E)         # context + attn f32
    ffn_tmp = (4 + 2) * T * Ft           # hidden f32 + bf16
    budget = w_bytes + p_bytes + carry_bytes + io_bytes + attn_tmp + ffn_tmp + (4 << 20)

    hard_cap = int(_vmem_capacity_bytes() * 0.85)               # never exceed physical VMEM
    vmem_limit = int(max(min(budget, hard_cap), min(32 << 20, hard_cap)))

    out = pl.pallas_call(
        functools.partial(_encoder_stack_kernel, num_heads=num_heads),
        out_shape=jax.ShapeDtypeStruct((B, S, E), jnp.float32),
        grid_spec=pltpu.PrefetchScalarGridSpec(
            num_scalar_prefetch=0,
            grid=(nb, L, nf),                       # (batch tiles, layers, ffn chunks)
            in_specs=in_specs,
            out_specs=act_spec,
            scratch_shapes=[pltpu.VMEM((T, E), jnp.float32),    # layer activation carry
                            pltpu.VMEM((T, E), jnp.float32),    # post-LN1 activation
                            pltpu.VMEM((T, E), jnp.float32)],   # FFN accumulator
        ),
        compiler_params=pltpu.CompilerParams(
            dimension_semantics=("parallel", "arbitrary", "arbitrary"),
            vmem_limit_bytes=vmem_limit),
    )(x,
      params['wqkv'], params['bqkv'], params['wo'], params['bo'],
      params['w1'], params['b1'], params['w2'], params['b2'],
      params['g1'], params['bt1'], params['g2'], params['bt2'])

    out = jnp.transpose(out, (1, 0, 2))                                   # (S, B, E)
    if final_norm is not None:                                            # optional `norm`
        gamma, beta = final_norm
        out = _layer_norm(out, gamma, beta)
    return out


def init_params(key, num_layers, d_model, nhead, dim_ff):
    """Deterministic per-layer init (each layer gets a different key => 'DiffInit')."""
    E, F = d_model, dim_ff

    def xavier(k, fan_out, fan_in):
        bound = math.sqrt(6.0 / (fan_in + fan_out))
        return jax.random.uniform(k, (fan_out, fan_in), jnp.float32, -bound, bound)

    def one_layer(k):
        ks = jax.random.split(k, 6)
        wqkv = xavier(ks[0], 3 * E, E)       # self_attn.in_proj_weight  (3E, E)
        bqkv = jnp.zeros((3 * E,), jnp.float32)
        wo = xavier(ks[1], E, E)             # self_attn.out_proj.weight (E, E)
        bo = jnp.zeros((E,), jnp.float32)
        w1 = xavier(ks[2], F, E)             # linear1.weight            (F, E)
        b1 = jax.random.uniform(ks[3], (F,), jnp.float32,
                                -1.0 / math.sqrt(E), 1.0 / math.sqrt(E))
        w2 = xavier(ks[4], E, F)             # linear2.weight            (E, F)
        b2 = jax.random.uniform(ks[5], (E,), jnp.float32,
                                -1.0 / math.sqrt(F), 1.0 / math.sqrt(F))
        g1 = jnp.ones((E,), jnp.float32); bt1 = jnp.zeros((E,), jnp.float32)
        g2 = jnp.ones((E,), jnp.float32); bt2 = jnp.zeros((E,), jnp.float32)
        # Weights pre-transposed to (in, out) so the kernel computes x @ W; matmul weights
        # stored bf16 (halves weight DMA, doubles MXU rate), accumulation stays f32.
        return dict(wqkv=wqkv.T.astype(jnp.bfloat16), bqkv=bqkv[None, :],
                    wo=wo.T.astype(jnp.bfloat16), bo=bo[None, :],
                    w1=w1.T.astype(jnp.bfloat16), b1=b1[None, :],
                    w2=w2.T.astype(jnp.bfloat16), b2=b2[None, :],
                    g1=g1[None, :], bt1=bt1[None, :],
                    g2=g2[None, :], bt2=bt2[None, :])

    keys = jax.random.split(key, num_layers)
    layers = [one_layer(k) for k in keys]
    return {name: jnp.stack([lyr[name] for lyr in layers], axis=0)
            for name in layers[0]}


def reference_forward(src, params, num_heads, mxu_dtype=jnp.float32):
    """Pure-JAX reference of the same stack (for validation).

    mxu_dtype=bfloat16 mimics the kernel's MXU input precision (f32 accumulation).
    """
    S, B, E = src.shape
    L = params['wqkv'].shape[0]
    Dh = E // num_heads

    def mm(a, b):
        return jnp.dot(a.astype(mxu_dtype), b.astype(mxu_dtype),
                       preferred_element_type=jnp.float32)

    x = src.astype(jnp.float32)
    for l in range(L):
        xt = x.reshape(S * B, E)
        qkv = mm(xt, params['wqkv'][l]) + params['bqkv'][l]
        q, k, v = jnp.split(qkv, 3, axis=-1)

        def split_heads(a):
            return jnp.transpose(a.reshape(S, B, num_heads, Dh), (1, 2, 0, 3))

        qh = split_heads(q) / math.sqrt(Dh)
        kh, vh = split_heads(k), split_heads(v)
        s = jnp.einsum('bhqd,bhkd->bhqk', qh.astype(mxu_dtype), kh.astype(mxu_dtype),
                       preferred_element_type=jnp.float32)
        p = jax.nn.softmax(s, axis=-1)
        c = jnp.einsum('bhqk,bhkd->bhqd', p.astype(mxu_dtype), vh.astype(mxu_dtype),
                       preferred_element_type=jnp.float32)
        c = jnp.transpose(c, (2, 0, 1, 3)).reshape(S * B, E)
        attn = mm(c, params['wo'][l]) + params['bo'][l]
        x1 = _layer_norm(xt + attn, params['g1'][l], params['bt1'][l])
        h = jax.nn.relu(mm(x1, params['w1'][l]) + params['b1'][l])
        f = mm(h, params['w2'][l]) + params['b2'][l]
        x2 = _layer_norm(x1 + f, params['g2'][l], params['bt2'][l])
        x = x2.reshape(S, B, E)
    return x


if __name__ == "__main__":
    # seq, batch, d_model, nhead, dim_ff, num_layers
    S, B, E, H, F, L = 8, 2, 32, 4, 256, 3
    key = jax.random.PRNGKey(0)
    k_src, k_par = jax.random.split(key)
    src = jax.random.normal(k_src, (S, B, E), jnp.float32)
    params = init_params(k_par, L, E, H, F)

    # References: bf16-MXU-input (matches kernel numerics) and f32 (true module semantics).
    ref_bf16 = reference_forward(src, params, H, mxu_dtype=jnp.bfloat16)
    ref_f32 = reference_forward(src, params, H, mxu_dtype=jnp.float32)

    configs = [
        dict(batch_block=None, ffn_block=None),   # v5e/v6e-style: nb=1, whole-F per layer
        dict(batch_block=1, ffn_block=128),       # v7x-style: 2 batch tiles, FFN streamed in 2 chunks
    ]
    for cfg in configs:
        out = transformer_encoder_diff_init(src, params, num_heads=H, **cfg)
        out = jax.block_until_ready(out)
        assert out.shape == (S, B, E)

        # Tight check vs the reference that mimics the kernel's bf16 MXU-input numerics.
        err = float(jnp.max(jnp.abs(out - ref_bf16)))
        if not jnp.allclose(out, ref_bf16, atol=2e-2, rtol=2e-2):
            raise AssertionError(f"{cfg}: mismatch vs bf16-matmul reference, max abs err {err}")

        # Looser sanity check vs the f32-activation reference (true module semantics).
        err32 = float(jnp.max(jnp.abs(out - ref_f32)))
        if not jnp.allclose(out, ref_f32, atol=1.5e-1, rtol=1.5e-1):
            raise AssertionError(f"{cfg}: mismatch vs f32 reference, max abs err {err32}")

    print("KERNEL_OK")
</pallas_src>

<mosaic_0001>
module attributes {stable_mosaic.version = 11 : i64} {
  func.func @_encoder_stack_kernel(%arg0: i32, %arg1: i32, %arg2: i32, %arg3: memref<2x8x32xf32, #tpu.memory_space<vmem>>, %arg4: memref<1x32x96xbf16, #tpu.memory_space<vmem>>, %arg5: memref<1x1x96xf32, #tpu.memory_space<vmem>>, %arg6: memref<1x32x32xbf16, #tpu.memory_space<vmem>>, %arg7: memref<1x1x32xf32, #tpu.memory_space<vmem>>, %arg8: memref<1x32x256xbf16, #tpu.memory_space<vmem>>, %arg9: memref<1x1x256xf32, #tpu.memory_space<vmem>>, %arg10: memref<1x256x32xbf16, #tpu.memory_space<vmem>>, %arg11: memref<1x1x32xf32, #tpu.memory_space<vmem>>, %arg12: memref<1x1x32xf32, #tpu.memory_space<vmem>>, %arg13: memref<1x1x32xf32, #tpu.memory_space<vmem>>, %arg14: memref<1x1x32xf32, #tpu.memory_space<vmem>>, %arg15: memref<1x1x32xf32, #tpu.memory_space<vmem>>, %arg16: memref<2x8x32xf32, #tpu.memory_space<vmem>>, %arg17: memref<16x32xf32, #tpu.memory_space<vmem>>, %arg18: memref<16x32xf32, #tpu.memory_space<vmem>>, %arg19: memref<16x32xf32, #tpu.memory_space<vmem>>) attributes {dimension_semantics = [#tpu.dimension_semantics<parallel>, #tpu.dimension_semantics<arbitrary>, #tpu.dimension_semantics<arbitrary>], iteration_bounds = array<i64: 1, 3, 1>, scalar_prefetch = 0 : i64, scratch_operands = 3 : i64, tpu.core_type = #tpu.core_type<tc>, window_params = [{transform_indices = @transform_0, window_bounds = array<i64: 2, 8, 32>}, {transform_indices = @transform_1, window_bounds = array<i64: 1, 32, 96>}, {transform_indices = @transform_2, window_bounds = array<i64: 1, 1, 96>}, {transform_indices = @transform_3, window_bounds = array<i64: 1, 32, 32>}, {transform_indices = @transform_4, window_bounds = array<i64: 1, 1, 32>}, {transform_indices = @transform_5, window_bounds = array<i64: 1, 32, 256>}, {transform_indices = @transform_6, window_bounds = array<i64: 1, 1, 256>}, {transform_indices = @transform_7, window_bounds = array<i64: 1, 256, 32>}, {transform_indices = @transform_8, window_bounds = array<i64: 1, 1, 32>}, {transform_indices = @transform_9, window_bounds = array<i64: 1, 1, 32>}, {transform_indices = @transform_10, window_bounds = array<i64: 1, 1, 32>}, {transform_indices = @transform_11, window_bounds = array<i64: 1, 1, 32>}, {transform_indices = @transform_12, window_bounds = array<i64: 1, 1, 32>}, {transform_indices = @transform_13, window_bounds = array<i64: 2, 8, 32>}]} {
    %c0_i32 = arith.constant 0 : i32
    %0 = arith.cmpi eq, %arg1, %c0_i32 : i32
    %c0_i32_0 = arith.constant 0 : i32
    %1 = arith.cmpi eq, %arg2, %c0_i32_0 : i32
    %2 = arith.andi %0, %1 : i1
    %3 = arith.extui %2 : i1 to i32
    %c0_i32_1 = arith.constant 0 : i32
    %4 = arith.cmpi ne, %3, %c0_i32_1 : i32
    scf.if %4 {
      %c0_24 = arith.constant 0 : index
      %c0_25 = arith.constant 0 : index
      %c0_26 = arith.constant 0 : index
      %34 = vector.load %arg3[%c0_24, %c0_25, %c0_26] : memref<2x8x32xf32, #tpu.memory_space<vmem>>, vector<2x8x32xf32>
      %35 = vector.shape_cast %34 : vector<2x8x32xf32> to vector<16x32xf32>
      %c0_27 = arith.constant 0 : index
      %c0_28 = arith.constant 0 : index
      %36 = vector.load %arg17[%c0_27, %c0_28] : memref<16x32xf32, #tpu.memory_space<vmem>>, vector<16x32xf32>
      tpu.vector_store %arg17[%c0_27, %c0_28], %35 {strides = array<i32>} : memref<16x32xf32, #tpu.memory_space<vmem>>, vector<16x32xf32>,
    } else {
    }
    %c0_i32_2 = arith.constant 0 : i32
    %5 = arith.cmpi eq, %arg2, %c0_i32_2 : i32
    %6 = arith.extui %5 : i1 to i32
    %c0_i32_3 = arith.constant 0 : i32
    %7 = arith.cmpi ne, %6, %c0_i32_3 : i32
    scf.if %7 {
      %c0_24 = arith.constant 0 : index
      %c0_25 = arith.constant 0 : index
      %34 = vector.load %arg17[%c0_24, %c0_25] : memref<16x32xf32, #tpu.memory_space<vmem>>, vector<16x32xf32>
      %35 = arith.truncf %34 : vector<16x32xf32> to vector<16x32xbf16>
      %c0_26 = arith.constant 0 : index
      %c0_27 = arith.constant 0 : index
      %c0_28 = arith.constant 0 : index
      %36 = vector.load %arg4[%c0_26, %c0_27, %c0_28] : memref<1x32x96xbf16, #tpu.memory_space<vmem>>, vector<1x32x96xbf16>
      %37 = vector.shape_cast %36 : vector<1x32x96xbf16> to vector<32x96xbf16>
      %cst_29 = arith.constant dense<0.000000e+00> : vector<16x96xf32>
      %38 = tpu.matmul %35, %37, %cst_29 {dimension_numbers = #tpu.dot_dimension_numbers<[1], [0], [0], [1], [0, 0, 1, 1], [], []>} : vector<16x32xbf16>, vector<32x96xbf16>, vector<16x96xf32> -> vector<16x96xf32>
      %c0_30 = arith.constant 0 : index
      %c0_31 = arith.constant 0 : index
      %c0_32 = arith.constant 0 : index
      %39 = vector.load %arg5[%c0_30, %c0_31, %c0_32] : memref<1x1x96xf32, #tpu.memory_space<vmem>>, vector<1x1x96xf32>
      %40 = vector.shape_cast %39 : vector<1x1x96xf32> to vector<1x96xf32>
      %41 = vector.broadcast %40 : vector<1x96xf32> to vector<16x96xf32>
      %42 = arith.addf %38, %41 : vector<16x96xf32>
      %43 = vector.extract_strided_slice %42 {offsets = [0, 0], sizes = [16, 32], strides = [1, 1]} : vector<16x96xf32> to vector<16x32xf32>
      %cst_33 = arith.constant 0.353553385 : f32
      %44 = vector.broadcast %cst_33 : f32 to vector<16x32xf32>
      %45 = arith.mulf %43, %44 : vector<16x32xf32>
      %46 = arith.truncf %45 : vector<16x32xf32> to vector<16x32xbf16>
      %47 = vector.shape_cast %46 : vector<16x32xbf16> to vector<2x8x4x8xbf16>
      %48 = tpu.transpose %47, [0, 2, 1, 3] : vector<2x8x4x8xbf16> -> vector<2x4x8x8xbf16>
      %49 = vector.shape_cast %48 : vector<2x4x8x8xbf16> to vector<8x8x8xbf16>
      %50 = vector.extract_strided_slice %42 {offsets = [0, 32], sizes = [16, 32], strides = [1, 1]} : vector<16x96xf32> to vector<16x32xf32>
      %51 = arith.truncf %50 : vector<16x32xf32> to vector<16x32xbf16>
      %52 = vector.shape_cast %51 : vector<16x32xbf16> to vector<2x8x4x8xbf16>
      %53 = tpu.transpose %52, [0, 2, 1, 3] : vector<2x8x4x8xbf16> -> vector<2x4x8x8xbf16>
      %54 = vector.shape_cast %53 : vector<2x4x8x8xbf16> to vector<8x8x8xbf16>
      %55 = vector.extract_strided_slice %42 {offsets = [0, 64], sizes = [16, 32], strides = [1, 1]} : vector<16x96xf32> to vector<16x32xf32>
      %56 = arith.truncf %55 : vector<16x32xf32> to vector<16x32xbf16>
      %57 = vector.shape_cast %56 : vector<16x32xbf16> to vector<2x8x4x8xbf16>
      %58 = tpu.transpose %57, [0, 2, 1, 3] : vector<2x8x4x8xbf16> -> vector<2x4x8x8xbf16>
      %59 = vector.shape_cast %58 : vector<2x4x8x8xbf16> to vector<8x8x8xbf16>
      "tpu.trace_start"() <{level = 10 : i32, message = "bqd,bkd->bqk"}> : () -> ()
      %cst_34 = arith.constant dense<0.000000e+00> : vector<8x8x8xf32>
      %60 = tpu.matmul %49, %54, %cst_34 {dimension_numbers = #tpu.dot_dimension_numbers<[2], [2], [1], [1], [0, 0, 0, 1, 1, 1], [0], [0]>} : vector<8x8x8xbf16>, vector<8x8x8xbf16>, vector<8x8x8xf32> -> vector<8x8x8xf32>
      "tpu.trace_stop"() : () -> ()
      %cst_35 = arith.constant dense<0xFF800000> : vector<8x8xf32>
      %61 = vector.multi_reduction <maximumf>, %60, %cst_35 [2] : vector<8x8x8xf32> to vector<8x8xf32>
      %62 = vector.shape_cast %61 : vector<8x8xf32> to vector<8x8x1xf32>
      %63 = vector.broadcast %62 : vector<8x8x1xf32> to vector<8x8x8xf32>
      %64 = arith.subf %60, %63 : vector<8x8x8xf32>
      %65 = math.exp %64 : vector<8x8x8xf32>
      %cst_36 = arith.constant dense<0.000000e+00> : vector<8x8xf32>
      %66 = vector.multi_reduction <add>, %65, %cst_36 [2] : vector<8x8x8xf32> to vector<8x8xf32>
      %67 = vector.shape_cast %66 : vector<8x8xf32> to vector<8x8x1xf32>
      %68 = tpu.reciprocal %67 {approx = true} : vector<8x8x1xf32> -> vector<8x8x1xf32>
      %69 = vector.broadcast %68 : vector<8x8x1xf32> to vector<8x8x8xf32>
      %70 = arith.mulf %65, %69 : vector<8x8x8xf32>
      %71 = arith.truncf %70 : vector<8x8x8xf32> to vector<8x8x8xbf16>
      "tpu.trace_start"() <{level = 10 : i32, message = "bqk,bkd->bqd"}> : () -> ()
      %cst_37 = arith.constant dense<0.000000e+00> : vector<8x8x8xf32>
      %72 = tpu.matmul %71, %59, %cst_37 {dimension_numbers = #tpu.dot_dimension_numbers<[2], [1], [1], [2], [0, 0, 0, 1, 1, 2], [0], [0]>} : vector<8x8x8xbf16>, vector<8x8x8xbf16>, vector<8x8x8xf32> -> vector<8x8x8xf32>
      "tpu.trace_stop"() : () -> ()
      %73 = arith.truncf %72 : vector<8x8x8xf32> to vector<8x8x8xbf16>
      %74 = vector.shape_cast %73 : vector<8x8x8xbf16> to vector<2x4x8x8xbf16>
      %75 = tpu.transpose %74, [0, 2, 1, 3] : vector<2x4x8x8xbf16> -> vector<2x8x4x8xbf16>
      %76 = vector.shape_cast %75 : vector<2x8x4x8xbf16> to vector<16x32xbf16>
      %c0_38 = arith.constant 0 : index
      %c0_39 = arith.constant 0 : index
      %c0_40 = arith.constant 0 : index
      %77 = vector.load %arg6[%c0_38, %c0_39, %c0_40] : memref<1x32x32xbf16, #tpu.memory_space<vmem>>, vector<1x32x32xbf16>
      %78 = vector.shape_cast %77 : vector<1x32x32xbf16> to vector<32x32xbf16>
      %cst_41 = arith.constant dense<0.000000e+00> : vector<16x32xf32>
      %79 = tpu.matmul %76, %78, %cst_41 {dimension_numbers = #tpu.dot_dimension_numbers<[1], [0], [0], [1], [0, 0, 1, 1], [], []>} : vector<16x32xbf16>, vector<32x32xbf16>, vector<16x32xf32> -> vector<16x32xf32>
      %c0_42 = arith.constant 0 : index
      %c0_43 = arith.constant 0 : index
      %c0_44 = arith.constant 0 : index
      %80 = vector.load %arg7[%c0_42, %c0_43, %c0_44] : memref<1x1x32xf32, #tpu.memory_space<vmem>>, vector<1x1x32xf32>
      %81 = vector.shape_cast %80 : vector<1x1x32xf32> to vector<1x32xf32>
      %82 = vector.broadcast %81 : vector<1x32xf32> to vector<16x32xf32>
      %83 = arith.addf %79, %82 : vector<16x32xf32>
      %84 = arith.addf %34, %83 : vector<16x32xf32>
      %c0_45 = arith.constant 0 : index
      %c0_46 = arith.constant 0 : index
      %c0_47 = arith.constant 0 : index
      %85 = vector.load %arg12[%c0_45, %c0_46, %c0_47] : memref<1x1x32xf32, #tpu.memory_space<vmem>>, vector<1x1x32xf32>
      %86 = vector.shape_cast %85 : vector<1x1x32xf32> to vector<1x32xf32>
      %c0_48 = arith.constant 0 : index
      %c0_49 = arith.constant 0 : index
      %c0_50 = arith.constant 0 : index
      %87 = vector.load %arg13[%c0_48, %c0_49, %c0_50] : memref<1x1x32xf32, #tpu.memory_space<vmem>>, vector<1x1x32xf32>
      %88 = vector.shape_cast %87 : vector<1x1x32xf32> to vector<1x32xf32>
      %cst_51 = arith.constant dense<0.000000e+00> : vector<16xf32>
      %89 = vector.multi_reduction <add>, %84, %cst_51 [1] : vector<16x32xf32> to vector<16xf32>
      %90 = vector.shape_cast %89 : vector<16xf32> to vector<16x1xf32>
      %cst_52 = arith.constant 3.200000e+01 : f32
      %91 = vector.broadcast %cst_52 : f32 to vector<16x1xf32>
      %92 = arith.divf %90, %91 : vector<16x1xf32>
      %93 = vector.broadcast %92 : vector<16x1xf32> to vector<16x32xf32>
      %94 = arith.subf %84, %93 : vector<16x32xf32>
      %95 = arith.mulf %94, %94 : vector<16x32xf32>
      %cst_53 = arith.constant dense<0.000000e+00> : vector<16xf32>
      %96 = vector.multi_reduction <add>, %95, %cst_53 [1] : vector<16x32xf32> to vector<16xf32>
      %97 = vector.shape_cast %96 : vector<16xf32> to vector<16x1xf32>
      %cst_54 = arith.constant 3.200000e+01 : f32
      %98 = vector.broadcast %cst_54 : f32 to vector<16x1xf32>
      %99 = arith.divf %97, %98 : vector<16x1xf32>
      %100 = vector.broadcast %92 : vector<16x1xf32> to vector<16x32xf32>
      %101 = arith.subf %84, %100 : vector<16x32xf32>
      %cst_55 = arith.constant 9.99999974E-6 : f32
      %102 = vector.broadcast %cst_55 : f32 to vector<16x1xf32>
      %103 = arith.addf %99, %102 : vector<16x1xf32>
      %104 = math.rsqrt %103 : vector<16x1xf32>
      %105 = vector.broadcast %104 : vector<16x1xf32> to vector<16x32xf32>
      %106 = arith.mulf %101, %105 : vector<16x32xf32>
      %107 = vector.broadcast %86 : vector<1x32xf32> to vector<16x32xf32>
      %108 = arith.mulf %106, %107 : vector<16x32xf32>
      %109 = vector.broadcast %88 : vector<1x32xf32> to vector<16x32xf32>
      %110 = arith.addf %108, %109 : vector<16x32xf32>
      %c0_56 = arith.constant 0 : index
      %c0_57 = arith.constant 0 : index
      %111 = vector.load %arg18[%c0_56, %c0_57] : memref<16x32xf32, #tpu.memory_space<vmem>>, vector<16x32xf32>
      tpu.vector_store %arg18[%c0_56, %c0_57], %110 {strides = array<i32>} : memref<16x32xf32, #tpu.memory_space<vmem>>, vector<16x32xf32>,
      %cst_58 = arith.constant 0.000000e+00 : f32
      %112 = vector.broadcast %cst_58 : f32 to vector<16x32xf32>
      %c0_59 = arith.constant 0 : index
      %c0_60 = arith.constant 0 : index
      %113 = vector.load %arg19[%c0_59, %c0_60] : memref<16x32xf32, #tpu.memory_space<vmem>>, vector<16x32xf32>
      tpu.vector_store %arg19[%c0_59, %c0_60], %112 {strides = array<i32>} : memref<16x32xf32, #tpu.memory_space<vmem>>, vector<16x32xf32>,
    } else {
    }
    %c0 = arith.constant 0 : index
    %c0_4 = arith.constant 0 : index
    %8 = vector.load %arg18[%c0, %c0_4] : memref<16x32xf32, #tpu.memory_space<vmem>>, vector<16x32xf32>
    %9 = arith.truncf %8 : vector<16x32xf32> to vector<16x32xbf16>
    %c0_5 = arith.constant 0 : index
    %c0_6 = arith.constant 0 : index
    %c0_7 = arith.constant 0 : index
    %10 = vector.load %arg8[%c0_5, %c0_6, %c0_7] : memref<1x32x256xbf16, #tpu.memory_space<vmem>>, vector<1x32x256xbf16>
    %11 = vector.shape_cast %10 : vector<1x32x256xbf16> to vector<32x256xbf16>
    %cst = arith.constant dense<0.000000e+00> : vector<16x256xf32>
    %12 = tpu.matmul %9, %11, %cst {dimension_numbers = #tpu.dot_dimension_numbers<[1], [0], [0], [1], [0, 0, 1, 1], [], []>} : vector<16x32xbf16>, vector<32x256xbf16>, vector<16x256xf32> -> vector<16x256xf32>
    %c0_8 = arith.constant 0 : index
    %c0_9 = arith.constant 0 : index
    %c0_10 = arith.constant 0 : index
    %13 = vector.load %arg9[%c0_8, %c0_9, %c0_10] : memref<1x1x256xf32, #tpu.memory_space<vmem>>, vector<1x1x256xf32>
    %14 = vector.shape_cast %13 : vector<1x1x256xf32> to vector<1x256xf32>
    %15 = vector.broadcast %14 : vector<1x256xf32> to vector<16x256xf32>
    %16 = arith.addf %12, %15 : vector<16x256xf32>
    %cst_11 = arith.constant 0.000000e+00 : f32
    %17 = vector.broadcast %cst_11 : f32 to vector<16x256xf32>
    %18 = arith.maximumf %16, %17 : vector<16x256xf32>
    %19 = arith.truncf %18 : vector<16x256xf32> to vector<16x256xbf16>
    %c0_12 = arith.constant 0 : index
    %c0_13 = arith.constant 0 : index
    %20 = vector.load %arg19[%c0_12, %c0_13] : memref<16x32xf32, #tpu.memory_space<vmem>>, vector<16x32xf32>
    %c0_14 = arith.constant 0 : index
    %c0_15 = arith.constant 0 : index
    %c0_16 = arith.constant 0 : index
    %21 = vector.load %arg10[%c0_14, %c0_15, %c0_16] : memref<1x256x32xbf16, #tpu.memory_space<vmem>>, vector<1x256x32xbf16>
    %22 = vector.shape_cast %21 : vector<1x256x32xbf16> to vector<256x32xbf16>
    %cst_17 = arith.constant dense<0.000000e+00> : vector<16x32xf32>
    %23 = tpu.matmul %19, %22, %cst_17 {dimension_numbers = #tpu.dot_dimension_numbers<[1], [0], [0], [1], [0, 0, 1, 1], [], []>} : vector<16x256xbf16>, vector<256x32xbf16>, vector<16x32xf32> -> vector<16x32xf32>
    %24 = arith.addf %20, %23 : vector<16x32xf32>
    %c0_18 = arith.constant 0 : index
    %c0_19 = arith.constant 0 : index
    %25 = vector.load %arg19[%c0_18, %c0_19] : memref<16x32xf32, #tpu.memory_space<vmem>>, vector<16x32xf32>
    tpu.vector_store %arg19[%c0_18, %c0_19], %24 {strides = array<i32>} : memref<16x32xf32, #tpu.memory_space<vmem>>, vector<16x32xf32>,
    %c0_i32_20 = arith.constant 0 : i32
    %26 = arith.cmpi eq, %arg2, %c0_i32_20 : i32
    %27 = arith.extui %26 : i1 to i32
    %c0_i32_21 = arith.constant 0 : i32
    %28 = arith.cmpi ne, %27, %c0_i32_21 : i32
    scf.if %28 {
      %c0_24 = arith.constant 0 : index
      %c0_25 = arith.constant 0 : index
      %34 = vector.load %arg18[%c0_24, %c0_25] : memref<16x32xf32, #tpu.memory_space<vmem>>, vector<16x32xf32>
      %c0_26 = arith.constant 0 : index
      %c0_27 = arith.constant 0 : index
      %35 = vector.load %arg19[%c0_26, %c0_27] : memref<16x32xf32, #tpu.memory_space<vmem>>, vector<16x32xf32>
      %36 = arith.addf %34, %35 : vector<16x32xf32>
      %c0_28 = arith.constant 0 : index
      %c0_29 = arith.constant 0 : index
      %c0_30 = arith.constant 0 : index
      %37 = vector.load %arg11[%c0_28, %c0_29, %c0_30] : memref<1x1x32xf32, #tpu.memory_space<vmem>>, vector<1x1x32xf32>
      %38 = vector.shape_cast %37 : vector<1x1x32xf32> to vector<1x32xf32>
      %39 = vector.broadcast %38 : vector<1x32xf32> to vector<16x32xf32>
      %40 = arith.addf %36, %39 : vector<16x32xf32>
      %c0_31 = arith.constant 0 : index
      %c0_32 = arith.constant 0 : index
      %c0_33 = arith.constant 0 : index
      %41 = vector.load %arg14[%c0_31, %c0_32, %c0_33] : memref<1x1x32xf32, #tpu.memory_space<vmem>>, vector<1x1x32xf32>
      %42 = vector.shape_cast %41 : vector<1x1x32xf32> to vector<1x32xf32>
      %c0_34 = arith.constant 0 : index
      %c0_35 = arith.constant 0 : index
      %c0_36 = arith.constant 0 : index
      %43 = vector.load %arg15[%c0_34, %c0_35, %c0_36] : memref<1x1x32xf32, #tpu.memory_space<vmem>>, vector<1x1x32xf32>
      %44 = vector.shape_cast %43 : vector<1x1x32xf32> to vector<1x32xf32>
      %cst_37 = arith.constant dense<0.000000e+00> : vector<16xf32>
      %45 = vector.multi_reduction <add>, %40, %cst_37 [1] : vector<16x32xf32> to vector<16xf32>
      %46 = vector.shape_cast %45 : vector<16xf32> to vector<16x1xf32>
      %cst_38 = arith.constant 3.200000e+01 : f32
      %47 = vector.broadcast %cst_38 : f32 to vector<16x1xf32>
      %48 = arith.divf %46, %47 : vector<16x1xf32>
      %49 = vector.broadcast %48 : vector<16x1xf32> to vector<16x32xf32>
      %50 = arith.subf %40, %49 : vector<16x32xf32>
      %51 = arith.mulf %50, %50 : vector<16x32xf32>
      %cst_39 = arith.constant dense<0.000000e+00> : vector<16xf32>
      %52 = vector.multi_reduction <add>, %51, %cst_39 [1] : vector<16x32xf32> to vector<16xf32>
      %53 = vector.shape_cast %52 : vector<16xf32> to vector<16x1xf32>
      %cst_40 = arith.constant 3.200000e+01 : f32
      %54 = vector.broadcast %cst_40 : f32 to vector<16x1xf32>
      %55 = arith.divf %53, %54 : vector<16x1xf32>
      %56 = vector.broadcast %48 : vector<16x1xf32> to vector<16x32xf32>
      %57 = arith.subf %40, %56 : vector<16x32xf32>
      %cst_41 = arith.constant 9.99999974E-6 : f32
      %58 = vector.broadcast %cst_41 : f32 to vector<16x1xf32>
      %59 = arith.addf %55, %58 : vector<16x1xf32>
      %60 = math.rsqrt %59 : vector<16x1xf32>
      %61 = vector.broadcast %60 : vector<16x1xf32> to vector<16x32xf32>
      %62 = arith.mulf %57, %61 : vector<16x32xf32>
      %63 = vector.broadcast %42 : vector<1x32xf32> to vector<16x32xf32>
      %64 = arith.mulf %62, %63 : vector<16x32xf32>
      %65 = vector.broadcast %44 : vector<1x32xf32> to vector<16x32xf32>
      %66 = arith.addf %64, %65 : vector<16x32xf32>
      %c0_42 = arith.constant 0 : index
      %c0_43 = arith.constant 0 : index
      %67 = vector.load %arg17[%c0_42, %c0_43] : memref<16x32xf32, #tpu.memory_space<vmem>>, vector<16x32xf32>
      tpu.vector_store %arg17[%c0_42, %c0_43], %66 {strides = array<i32>} : memref<16x32xf32, #tpu.memory_space<vmem>>, vector<16x32xf32>,
    } else {
    }
    %c0_i32_22 = arith.constant 0 : i32
    %29 = arith.cmpi eq, %arg2, %c0_i32_22 : i32
    %c2_i32 = arith.constant 2 : i32
    %30 = arith.cmpi eq, %arg1, %c2_i32 : i32
    %31 = arith.andi %29, %30 : i1
    %32 = arith.extui %31 : i1 to i32
    %c0_i32_23 = arith.constant 0 : i32
    %33 = arith.cmpi ne, %32, %c0_i32_23 : i32
    scf.if %33 {
      %c0_24 = arith.constant 0 : index
      %c0_25 = arith.constant 0 : index
      %34 = vector.load %arg17[%c0_24, %c0_25] : memref<16x32xf32, #tpu.memory_space<vmem>>, vector<16x32xf32>
      %35 = vector.shape_cast %34 : vector<16x32xf32> to vector<2x8x32xf32>
      %c0_26 = arith.constant 0 : index
      %c0_27 = arith.constant 0 : index
      %c0_28 = arith.constant 0 : index
      %36 = vector.load %arg16[%c0_26, %c0_27, %c0_28] : memref<2x8x32xf32, #tpu.memory_space<vmem>>, vector<2x8x32xf32>
      tpu.vector_store %arg16[%c0_26, %c0_27, %c0_28], %35 {strides = array<i32>} : memref<2x8x32xf32, #tpu.memory_space<vmem>>, vector<2x8x32xf32>,
    } else {
    }
    return
  }
  func.func @transform_0(%arg0: i32, %arg1: i32, %arg2: i32) -> (i32, i32, i32) {
    %c0_i32 = arith.constant 0 : i32
    %c0_i32_0 = arith.constant 0 : i32
    %c0_i32_1 = arith.constant 0 : i32
    return %arg0, %c0_i32, %c0_i32_0 : i32, i32, i32
  }
  func.func @transform_1(%arg0: i32, %arg1: i32, %arg2: i32) -> (i32, i32, i32) {
    %c0_i32 = arith.constant 0 : i32
    %c0_i32_0 = arith.constant 0 : i32
    %c0_i32_1 = arith.constant 0 : i32
    return %arg1, %c0_i32, %c0_i32_0 : i32, i32, i32
  }
  func.func @transform_2(%arg0: i32, %arg1: i32, %arg2: i32) -> (i32, i32, i32) {
    %c0_i32 = arith.constant 0 : i32
    %c0_i32_0 = arith.constant 0 : i32
    %c0_i32_1 = arith.constant 0 : i32
    return %arg1, %c0_i32, %c0_i32_0 : i32, i32, i32
  }
  func.func @transform_3(%arg0: i32, %arg1: i32, %arg2: i32) -> (i32, i32, i32) {
    %c0_i32 = arith.constant 0 : i32
    %c0_i32_0 = arith.constant 0 : i32
    %c0_i32_1 = arith.constant 0 : i32
    return %arg1, %c0_i32, %c0_i32_0 : i32, i32, i32
  }
  func.func @transform_4(%arg0: i32, %arg1: i32, %arg2: i32) -> (i32, i32, i32) {
    %c0_i32 = arith.constant 0 : i32
    %c0_i32_0 = arith.constant 0 : i32
    %c0_i32_1 = arith.constant 0 : i32
    return %arg1, %c0_i32, %c0_i32_0 : i32, i32, i32
  }
  func.func @transform_5(%arg0: i32, %arg1: i32, %arg2: i32) -> (i32, i32, i32) {
    %c0_i32 = arith.constant 0 : i32
    %c0_i32_0 = arith.constant 0 : i32
    return %arg1, %c0_i32, %arg2 : i32, i32, i32
  }
  func.func @transform_6(%arg0: i32, %arg1: i32, %arg2: i32) -> (i32, i32, i32) {
    %c0_i32 = arith.constant 0 : i32
    %c0_i32_0 = arith.constant 0 : i32
    return %arg1, %c0_i32, %arg2 : i32, i32, i32
  }
  func.func @transform_7(%arg0: i32, %arg1: i32, %arg2: i32) -> (i32, i32, i32) {
    %c0_i32 = arith.constant 0 : i32
    %c0_i32_0 = arith.constant 0 : i32
    return %arg1, %arg2, %c0_i32 : i32, i32, i32
  }
  func.func @transform_8(%arg0: i32, %arg1: i32, %arg2: i32) -> (i32, i32, i32) {
    %c0_i32 = arith.constant 0 : i32
    %c0_i32_0 = arith.constant 0 : i32
    %c0_i32_1 = arith.constant 0 : i32
    return %arg1, %c0_i32, %c0_i32_0 : i32, i32, i32
  }
  func.func @transform_9(%arg0: i32, %arg1: i32, %arg2: i32) -> (i32, i32, i32) {
    %c0_i32 = arith.constant 0 : i32
    %c0_i32_0 = arith.constant 0 : i32
    %c0_i32_1 = arith.constant 0 : i32
    return %arg1, %c0_i32, %c0_i32_0 : i32, i32, i32
  }
  func.func @transform_10(%arg0: i32, %arg1: i32, %arg2: i32) -> (i32, i32, i32) {
    %c0_i32 = arith.constant 0 : i32
    %c0_i32_0 = arith.constant 0 : i32
    %c0_i32_1 = arith.constant 0 : i32
    return %arg1, %c0_i32, %c0_i32_0 : i32, i32, i32
  }
  func.func @transform_11(%arg0: i32, %arg1: i32, %arg2: i32) -> (i32, i32, i32) {
    %c0_i32 = arith.constant 0 : i32
    %c0_i32_0 = arith.constant 0 : i32
    %c0_i32_1 = arith.constant 0 : i32
    return %arg1, %c0_i32, %c0_i32_0 : i32, i32, i32
  }
  func.func @transform_12(%arg0: i32, %arg1: i32, %arg2: i32) -> (i32, i32, i32) {
    %c0_i32 = arith.constant 0 : i32
    %c0_i32_0 = arith.constant 0 : i32
    %c0_i32_1 = arith.constant 0 : i32
    return %arg1, %c0_i32, %c0_i32_0 : i32, i32, i32
  }
  func.func @transform_13(%arg0: i32, %arg1: i32, %arg2: i32) -> (i32, i32, i32) {
    %c0_i32 = arith.constant 0 : i32
    %c0_i32_0 = arith.constant 0 : i32
    %c0_i32_1 = arith.constant 0 : i32
    return %arg0, %c0_i32, %c0_i32_0 : i32, i32, i32
  }
}

</mosaic_0001>

<llo_original>
// kernel: tpu_custom_call.1
$region0: #{tpu_custom_call.1}
  #allocation0 [shape = 'u32[]', space=smem, size = 0x4, offset = 0x4, fixed_abs, tag = 'smem constant byte address 0x4 - core index']
  #allocation1 [shape = 'u32[144,128]{1,0:T(1,128)}', space=vmem, size = 0x12000, scoped, tag = 'internal scratch']
  #allocation2 [shape = 'f32[16,32]{1,0:T(8,128)}', space=vmem, size = 0x2000, scoped, tag = 'scratch operand']
  #allocation3 [shape = 'f32[16,32]{1,0:T(8,128)}', space=vmem, size = 0x2000, scoped, tag = 'scratch operand']
  #allocation4 [shape = 'f32[16,32]{1,0:T(8,128)}', space=vmem, size = 0x2000, scoped, tag = 'scratch operand']
  %s0 = inlined_call_operand.vmem [shape: f32[2,8,32], index: 0, kind: input, shape index: {}]
  %s1 = inlined_call_operand.vmem [shape: bf16[3,32,96], index: 1, kind: input, shape index: {}]
  %s2 = inlined_call_operand.vmem [shape: f32[3,1,96], index: 2, kind: input, shape index: {}]
  %s3 = inlined_call_operand.vmem [shape: bf16[3,32,32], index: 3, kind: input, shape index: {}]
  %s4 = inlined_call_operand.vmem [shape: f32[3,1,32], index: 4, kind: input, shape index: {}]
  %s5 = inlined_call_operand.vmem [shape: bf16[3,32,256], index: 5, kind: input, shape index: {}]
  %s6 = inlined_call_operand.vmem [shape: f32[3,1,256], index: 6, kind: input, shape index: {}]
  %s7 = inlined_call_operand.vmem [shape: bf16[3,256,32], index: 7, kind: input, shape index: {}]
  %s8 = inlined_call_operand.vmem [shape: f32[3,1,32], index: 8, kind: input, shape index: {}]
  %s9 = inlined_call_operand.vmem [shape: f32[3,1,32], index: 9, kind: input, shape index: {}]
  %s10 = inlined_call_operand.vmem [shape: f32[3,1,32], index: 10, kind: input, shape index: {}]
  %s11 = inlined_call_operand.vmem [shape: f32[3,1,32], index: 11, kind: input, shape index: {}]
  %s12 = inlined_call_operand.vmem [shape: f32[3,1,32], index: 12, kind: input, shape index: {}]
  %s13 = inlined_call_operand.hbm [shape: f32[2,8,32], index: 13, kind: output, shape index: {}]
  %s14 = sld [smem:[#allocation0]]
  $region101: #{tpu_custom_call.1} parent=0
    _
  %s16 = ssub.s32 1, %s14
  %s17 = scalar_select 0, %s16, %s14
  $region1: #{tpu_custom_call.1} parent=0
    #allocation5 [shape = 'u8[8192]{0}', space=vmem, size = 0x2000, scoped, tag = 'output window, operand 0, single buffered']
    #allocation6 [shape = 's32[2]{0}', space=sflag, size = 0x8, scoped, tag = 'scoped memory for tpu_custom_call.1']
    %18 = vsyncpa [#allocation6], 0
    loop: start=0, step=1, limit=5
    $region2: #{tpu_custom_call.1} parent=1 // loop_pre_header
      _
    $region3: #{tpu_custom_call.1} parent=1 // loop_header
      %s20 = sphi 0, %s24
      %p21 = scmp.ge.s32.totalorder %s20, 5
      %s27 = sphi 0, %s46
      %s28 = sphi 0, %s42
      %s29 = sphi 0, %s38
      %s30 = sphi 0, %s27
      %s31 = sphi 0, %s28
      %s32 = sphi 0, %s29
      %s33 = sphi 0, %s30
      %s34 = sphi 0, %s31
      %s35 = sphi 0, %s32
      %s49 = sphi 0, %s51
      %s52 = sphi 0, %s49
      %s53 = sphi 0, %s52
      %s69 = sphi 0, %s53
      %s75 = sphi 0, %s77
      %s78 = sphi 0, %s75
      %s79 = sphi 0, %s78
      %s95 = sphi 0, %s79
      %s101 = sphi 0, %s103
      %s104 = sphi 0, %s101
      %s105 = sphi 0, %s104
      %s121 = sphi 0, %s105
      %s127 = sphi 0, %s129
      %s130 = sphi 0, %s127
      %s131 = sphi 0, %s130
      %s147 = sphi 0, %s131
      %s153 = sphi 0, %s155
      %s156 = sphi 0, %s153
      %s157 = sphi 0, %s156
      %s173 = sphi 0, %s157
      %s181 = sphi 0, %s183
      %s184 = sphi 0, %s181
      %s185 = sphi 0, %s184
      %s201 = sphi 0, %s185
      %s209 = sphi 0, %s211
      %s212 = sphi 0, %s209
      %s213 = sphi 0, %s212
      %s229 = sphi 0, %s213
      %s237 = sphi 0, %s239
      %s240 = sphi 0, %s237
      %s241 = sphi 0, %s240
      %s257 = sphi 0, %s241
      %s263 = sphi 0, %s265
      %s266 = sphi 0, %s263
      %s267 = sphi 0, %s266
      %s283 = sphi 0, %s267
      %s289 = sphi 0, %s291
      %s292 = sphi 0, %s289
      %s293 = sphi 0, %s292
      %s309 = sphi 0, %s293
      %s315 = sphi 0, %s317
      %s318 = sphi 0, %s315
      %s319 = sphi 0, %s318
      %s335 = sphi 0, %s319
      %s341 = sphi 0, %s343
      %s344 = sphi 0, %s341
      %s345 = sphi 0, %s344
      %s361 = sphi 0, %s345
      %s367 = sphi 0, %s369
      %s370 = sphi 0, %s367
      %s371 = sphi 0, %s370
      %s387 = sphi 0, %s371
      %s393 = sphi 0, %s395
      %s396 = sphi 0, %s393
      %s397 = sphi 0, %s396
      %s413 = sphi 0, %s397
    $region4: #{tpu_custom_call.1} parent=1 // loop_header_branch
      %23 = sbr.rel (%p21) target = $region8
    $region5: #{tpu_custom_call.1} parent=1 // loop_body
      %s25 = ssub.s32 %s20, 1
      %s26 = ssub.s32 %s20, 2
      %s36 = sadd.s32 1, %s29
      %p37 = scmp.ge.s32.totalorder %s36, 1
      %s38 = scalar_select %p37, 0, %s36
      %s39 = sadd.s32 1, %s28
      %s40 = scalar_select %p37, %s39, %s28
      %p41 = scmp.ge.s32.totalorder %s40, 3
      %s42 = scalar_select %p41, 0, %s40
      %s43 = sadd.s32 1, %s27
      %s44 = scalar_select %p41, %s43, %s27
      %p45 = scmp.ge.s32.totalorder %s44, 1
      %s46 = scalar_select %p45, 0, %s44
      %s47 = ssub.s32 %s27, %s46
      %p48 = scmp.eq.s32.totalorder %s47, 0
      %s50 = sadd.s32 %s49, 1
      %s51 = scalar_select %p48, %s49, %s50
      %p54 = pneg %p48
      %p55 = scmp.eq.s32.totalorder %s20, 2
      %p56 = por %p54, %p55
      %p57 = scmp.ne.s32.totalorder %s49, %s52
      %p58 = scmp.eq.s32.totalorder %s20, 0
      %p59 = por %p57, %p58
      %p60 = scmp.ne.s32.totalorder %s49, %s52
      %p61 = scmp.eq.s32.totalorder %s25, 2
      %p62 = por %p60, %p61
      %p63 = scmp.ne.s32.totalorder %s52, %s53
      %p64 = scmp.eq.s32.totalorder %s25, 0
      %p65 = por %p63, %p64
      %p66 = scmp.ne.s32.totalorder %s52, %s53
      %p67 = scmp.eq.s32.totalorder %s26, 2
      %p68 = por %p66, %p67
      %p70 = scmp.ne.s32.totalorder %s53, %s69
      %p71 = scmp.eq.s32.totalorder %s26, 0
      %p72 = por %p70, %p71
      %s73 = ssub.s32 %s28, %s42
      %p74 = scmp.eq.s32.totalorder %s73, 0
      %s76 = sadd.s32 %s75, 1
      %s77 = scalar_select %p74, %s75, %s76
      %p80 = pneg %p74
      %p81 = scmp.eq.s32.totalorder %s20, 2
      %p82 = por %p80, %p81
      %p83 = scmp.ne.s32.totalorder %s75, %s78
      %p84 = scmp.eq.s32.totalorder %s20, 0
      %p85 = por %p83, %p84
      %p86 = scmp.ne.s32.totalorder %s75, %s78
      %p87 = scmp.eq.s32.totalorder %s25, 2
      %p88 = por %p86, %p87
      %p89 = scmp.ne.s32.totalorder %s78, %s79
      %p90 = scmp.eq.s32.totalorder %s25, 0
      %p91 = por %p89, %p90
      %p92 = scmp.ne.s32.totalorder %s78, %s79
      %p93 = scmp.eq.s32.totalorder %s26, 2
      %p94 = por %p92, %p93
      %p96 = scmp.ne.s32.totalorder %s79, %s95
      %p97 = scmp.eq.s32.totalorder %s26, 0
      %p98 = por %p96, %p97
      %s99 = ssub.s32 %s28, %s42
      %p100 = scmp.eq.s32.totalorder %s99, 0
      %s102 = sadd.s32 %s101, 1
      %s103 = scalar_select %p100, %s101, %s102
      %p106 = pneg %p100
      %p107 = scmp.eq.s32.totalorder %s20, 2
      %p108 = por %p106, %p107
      %p109 = scmp.ne.s32.totalorder %s101, %s104
      %p110 = scmp.eq.s32.totalorder %s20, 0
      %p111 = por %p109, %p110
      %p112 = scmp.ne.s32.totalorder %s101, %s104
      %p113 = scmp.eq.s32.totalorder %s25, 2
      %p114 = por %p112, %p113
      %p115 = scmp.ne.s32.totalorder %s104, %s105
      %p116 = scmp.eq.s32.totalorder %s25, 0
      %p117 = por %p115, %p116
      %p118 = scmp.ne.s32.totalorder %s104, %s105
      %p119 = scmp.eq.s32.totalorder %s26, 2
      %p120 = por %p118, %p119
      %p122 = scmp.ne.s32.totalorder %s105, %s121
      %p123 = scmp.eq.s32.totalorder %s26, 0
      %p124 = por %p122, %p123
      %s125 = ssub.s32 %s28, %s42
      %p126 = scmp.eq.s32.totalorder %s125, 0
      %s128 = sadd.s32 %s127, 1
      %s129 = scalar_select %p126, %s127, %s128
      %p132 = pneg %p126
      %p133 = scmp.eq.s32.totalorder %s20, 2
      %p134 = por %p132, %p133
      %p135 = scmp.ne.s32.totalorder %s127, %s130
      %p136 = scmp.eq.s32.totalorder %s20, 0
      %p137 = por %p135, %p136
      %p138 = scmp.ne.s32.totalorder %s127, %s130
      %p139 = scmp.eq.s32.totalorder %s25, 2
      %p140 = por %p138, %p139
      %p141 = scmp.ne.s32.totalorder %s130, %s131
      %p142 = scmp.eq.s32.totalorder %s25, 0
      %p143 = por %p141, %p142
      %p144 = scmp.ne.s32.totalorder %s130, %s131
      %p145 = scmp.eq.s32.totalorder %s26, 2
      %p146 = por %p144, %p145
      %p148 = scmp.ne.s32.totalorder %s131, %s147
      %p149 = scmp.eq.s32.totalorder %s26, 0
      %p150 = por %p148, %p149
      %s151 = ssub.s32 %s28, %s42
      %p152 = scmp.eq.s32.totalorder %s151, 0
      %s154 = sadd.s32 %s153, 1
      %s155 = scalar_select %p152, %s153, %s154
      %p158 = pneg %p152
      %p159 = scmp.eq.s32.totalorder %s20, 2
      %p160 = por %p158, %p159
      %p161 = scmp.ne.s32.totalorder %s153, %s156
      %p162 = scmp.eq.s32.totalorder %s20, 0
      %p163 = por %p161, %p162
      %p164 = scmp.ne.s32.totalorder %s153, %s156
      %p165 = scmp.eq.s32.totalorder %s25, 2
      %p166 = por %p164, %p165
      %p167 = scmp.ne.s32.totalorder %s156, %s157
      %p168 = scmp.eq.s32.totalorder %s25, 0
      %p169 = por %p167, %p168
      %p170 = scmp.ne.s32.totalorder %s156, %s157
      %p171 = scmp.eq.s32.totalorder %s26, 2
      %p172 = por %p170, %p171
      %p174 = scmp.ne.s32.totalorder %s157, %s173
      %p175 = scmp.eq.s32.totalorder %s26, 0
      %p176 = por %p174, %p175
      %s177 = ssub.s32 %s28, %s42
      %s178 = ssub.s32 %s29, %s38
      %s179 = sor.u32 %s177, %s178
      %p180 = scmp.eq.s32.totalorder %s179, 0
      %s182 = sadd.s32 %s181, 1
      %s183 = scalar_select %p180, %s181, %s182
      %p186 = pneg %p180
      %p187 = scmp.eq.s32.totalorder %s20, 2
      %p188 = por %p186, %p187
      %p189 = scmp.ne.s32.totalorder %s181, %s184
      %p190 = scmp.eq.s32.totalorder %s20, 0
      %p191 = por %p189, %p190
      %p192 = scmp.ne.s32.totalorder %s181, %s184
      %p193 = scmp.eq.s32.totalorder %s25, 2
      %p194 = por %p192, %p193
      %p195 = scmp.ne.s32.totalorder %s184, %s185
      %p196 = scmp.eq.s32.totalorder %s25, 0
      %p197 = por %p195, %p196
      %p198 = scmp.ne.s32.totalorder %s184, %s185
      %p199 = scmp.eq.s32.totalorder %s26, 2
      %p200 = por %p198, %p199
      %p202 = scmp.ne.s32.totalorder %s185, %s201
      %p203 = scmp.eq.s32.totalorder %s26, 0
      %p204 = por %p202, %p203
      %s205 = ssub.s32 %s28, %s42
      %s206 = ssub.s32 %s29, %s38
      %s207 = sor.u32 %s205, %s206
      %p208 = scmp.eq.s32.totalorder %s207, 0
      %s210 = sadd.s32 %s209, 1
      %s211 = scalar_select %p208, %s209, %s210
      %p214 = pneg %p208
      %p215 = scmp.eq.s32.totalorder %s20, 2
      %p216 = por %p214, %p215
      %p217 = scmp.ne.s32.totalorder %s209, %s212
      %p218 = scmp.eq.s32.totalorder %s20, 0
      %p219 = por %p217, %p218
      %p220 = scmp.ne.s32.totalorder %s209, %s212
      %p221 = scmp.eq.s32.totalorder %s25, 2
      %p222 = por %p220, %p221
      %p223 = scmp.ne.s32.totalorder %s212, %s213
      %p224 = scmp.eq.s32.totalorder %s25, 0
      %p225 = por %p223, %p224
      %p226 = scmp.ne.s32.totalorder %s212, %s213
      %p227 = scmp.eq.s32.totalorder %s26, 2
      %p228 = por %p226, %p227
      %p230 = scmp.ne.s32.totalorder %s213, %s229
      %p231 = scmp.eq.s32.totalorder %s26, 0
      %p232 = por %p230, %p231
      %s233 = ssub.s32 %s28, %s42
      %s234 = ssub.s32 %s29, %s38
      %s235 = sor.u32 %s233, %s234
      %p236 = scmp.eq.s32.totalorder %s235, 0
      %s238 = sadd.s32 %s237, 1
      %s239 = scalar_select %p236, %s237, %s238
      %p242 = pneg %p236
      %p243 = scmp.eq.s32.totalorder %s20, 2
      %p244 = por %p242, %p243
      %p245 = scmp.ne.s32.totalorder %s237, %s240
      %p246 = scmp.eq.s32.totalorder %s20, 0
      %p247 = por %p245, %p246
      %p248 = scmp.ne.s32.totalorder %s237, %s240
      %p249 = scmp.eq.s32.totalorder %s25, 2
      %p250 = por %p248, %p249
      %p251 = scmp.ne.s32.totalorder %s240, %s241
      %p252 = scmp.eq.s32.totalorder %s25, 0
      %p253 = por %p251, %p252
      %p254 = scmp.ne.s32.totalorder %s240, %s241
      %p255 = scmp.eq.s32.totalorder %s26, 2
      %p256 = por %p254, %p255
      %p258 = scmp.ne.s32.totalorder %s241, %s257
      %p259 = scmp.eq.s32.totalorder %s26, 0
      %p260 = por %p258, %p259
      %s261 = ssub.s32 %s28, %s42
      %p262 = scmp.eq.s32.totalorder %s261, 0
      %s264 = sadd.s32 %s263, 1
      %s265 = scalar_select %p262, %s263, %s264
      %p268 = pneg %p262
      %p269 = scmp.eq.s32.totalorder %s20, 2
      %p270 = por %p268, %p269
      %p271 = scmp.ne.s32.totalorder %s263, %s266
      %p272 = scmp.eq.s32.totalorder %s20, 0
      %p273 = por %p271, %p272
      %p274 = scmp.ne.s32.totalorder %s263, %s266
      %p275 = scmp.eq.s32.totalorder %s25, 2
      %p276 = por %p274, %p275
      %p277 = scmp.ne.s32.totalorder %s266, %s267
      %p278 = scmp.eq.s32.totalorder %s25, 0
      %p279 = por %p277, %p278
      %p280 = scmp.ne.s32.totalorder %s266, %s267
      %p281 = scmp.eq.s32.totalorder %s26, 2
      %p282 = por %p280, %p281
      %p284 = scmp.ne.s32.totalorder %s267, %s283
      %p285 = scmp.eq.s32.totalorder %s26, 0
      %p286 = por %p284, %p285
      %s287 = ssub.s32 %s28, %s42
      %p288 = scmp.eq.s32.totalorder %s287, 0
      %s290 = sadd.s32 %s289, 1
      %s291 = scalar_select %p288, %s289, %s290
      %p294 = pneg %p288
      %p295 = scmp.eq.s32.totalorder %s20, 2
      %p296 = por %p294, %p295
      %p297 = scmp.ne.s32.totalorder %s289, %s292
      %p298 = scmp.eq.s32.totalorder %s20, 0
      %p299 = por %p297, %p298
      %p300 = scmp.ne.s32.totalorder %s289, %s292
      %p301 = scmp.eq.s32.totalorder %s25, 2
      %p302 = por %p300, %p301
      %p303 = scmp.ne.s32.totalorder %s292, %s293
      %p304 = scmp.eq.s32.totalorder %s25, 0
      %p305 = por %p303, %p304
      %p306 = scmp.ne.s32.totalorder %s292, %s293
      %p307 = scmp.eq.s32.totalorder %s26, 2
      %p308 = por %p306, %p307
      %p310 = scmp.ne.s32.totalorder %s293, %s309
      %p311 = scmp.eq.s32.totalorder %s26, 0
      %p312 = por %p310, %p311
      %s313 = ssub.s32 %s28, %s42
      %p314 = scmp.eq.s32.totalorder %s313, 0
      %s316 = sadd.s32 %s315, 1
      %s317 = scalar_select %p314, %s315, %s316
      %p320 = pneg %p314
      %p321 = scmp.eq.s32.totalorder %s20, 2
      %p322 = por %p320, %p321
      %p323 = scmp.ne.s32.totalorder %s315, %s318
      %p324 = scmp.eq.s32.totalorder %s20, 0
      %p325 = por %p323, %p324
      %p326 = scmp.ne.s32.totalorder %s315, %s318
      %p327 = scmp.eq.s32.totalorder %s25, 2
      %p328 = por %p326, %p327
      %p329 = scmp.ne.s32.totalorder %s318, %s319
      %p330 = scmp.eq.s32.totalorder %s25, 0
      %p331 = por %p329, %p330
      %p332 = scmp.ne.s32.totalorder %s318, %s319
      %p333 = scmp.eq.s32.totalorder %s26, 2
      %p334 = por %p332, %p333
      %p336 = scmp.ne.s32.totalorder %s319, %s335
      %p337 = scmp.eq.s32.totalorder %s26, 0
      %p338 = por %p336, %p337
      %s339 = ssub.s32 %s28, %s42
      %p340 = scmp.eq.s32.totalorder %s339, 0
      %s342 = sadd.s32 %s341, 1
      %s343 = scalar_select %p340, %s341, %s342
      %p346 = pneg %p340
      %p347 = scmp.eq.s32.totalorder %s20, 2
      %p348 = por %p346, %p347
      %p349 = scmp.ne.s32.totalorder %s341, %s344
      %p350 = scmp.eq.s32.totalorder %s20, 0
      %p351 = por %p349, %p350
      %p352 = scmp.ne.s32.totalorder %s341, %s344
      %p353 = scmp.eq.s32.totalorder %s25, 2
      %p354 = por %p352, %p353
      %p355 = scmp.ne.s32.totalorder %s344, %s345
      %p356 = scmp.eq.s32.totalorder %s25, 0
      %p357 = por %p355, %p356
      %p358 = scmp.ne.s32.totalorder %s344, %s345
      %p359 = scmp.eq.s32.totalorder %s26, 2
      %p360 = por %p358, %p359
      %p362 = scmp.ne.s32.totalorder %s345, %s361
      %p363 = scmp.eq.s32.totalorder %s26, 0
      %p364 = por %p362, %p363
      %s365 = ssub.s32 %s28, %s42
      %p366 = scmp.eq.s32.totalorder %s365, 0
      %s368 = sadd.s32 %s367, 1
      %s369 = scalar_select %p366, %s367, %s368
      %p372 = pneg %p366
      %p373 = scmp.eq.s32.totalorder %s20, 2
      %p374 = por %p372, %p373
      %p375 = scmp.ne.s32.totalorder %s367, %s370
      %p376 = scmp.eq.s32.totalorder %s20, 0
      %p377 = por %p375, %p376
      %p378 = scmp.ne.s32.totalorder %s367, %s370
      %p379 = scmp.eq.s32.totalorder %s25, 2
      %p380 = por %p378, %p379
      %p381 = scmp.ne.s32.totalorder %s370, %s371
      %p382 = scmp.eq.s32.totalorder %s25, 0
      %p383 = por %p381, %p382
      %p384 = scmp.ne.s32.totalorder %s370, %s371
      %p385 = scmp.eq.s32.totalorder %s26, 2
      %p386 = por %p384, %p385
      %p388 = scmp.ne.s32.totalorder %s371, %s387
      %p389 = scmp.eq.s32.totalorder %s26, 0
      %p390 = por %p388, %p389
      %s391 = ssub.s32 %s27, %s46
      %p392 = scmp.eq.s32.totalorder %s391, 0
      %s394 = sadd.s32 %s393, 1
      %s395 = scalar_select %p392, %s393, %s394
      %p398 = pneg %p392
      %p399 = scmp.eq.s32.totalorder %s20, 2
      %p400 = por %p398, %p399
      %p401 = scmp.ne.s32.totalorder %s393, %s396
      %p402 = scmp.eq.s32.totalorder %s20, 0
      %p403 = por %p401, %p402
      %p404 = scmp.ne.s32.totalorder %s393, %s396
      %p405 = scmp.eq.s32.totalorder %s25, 2
      %p406 = por %p404, %p405
      %p407 = scmp.ne.s32.totalorder %s396, %s397
      %p408 = scmp.eq.s32.totalorder %s25, 0
      %p409 = por %p407, %p408
      %p410 = scmp.ne.s32.totalorder %s396, %s397
      %p411 = scmp.eq.s32.totalorder %s26, 2
      %p412 = por %p410, %p411
      %p414 = scmp.ne.s32.totalorder %s397, %s413
      %p415 = scmp.eq.s32.totalorder %s26, 0
      %p416 = por %p414, %p415
      %p417 = scmp.le.s32.totalorder 1, %s20
      %p418 = scmp.lt.s32.totalorder %s20, 4
      %p419 = pnand %p417, %p418
      %p420 = pneg %p419
      // Predicated region
      $region9: #{tpu_custom_call.1} parent=5 // pred_check
        _
      $region10: #{tpu_custom_call.1} parent=5 // pred_check_branch
        %422 = sbr.rel (%p419) target = $region12
      $region11: #{tpu_custom_call.1} parent=5 // pred_region
        %s423 = ssub.s32 %s20, 1
        // Predicated region
        $region13: #{tpu_custom_call.1} parent=11 // pred_check
          %p424 = pneg %p65
        $region14: #{tpu_custom_call.1} parent=11 // pred_check_branch
          %426 = sbr.rel (%p424) target = $region16
        $region15: #{tpu_custom_call.1} parent=11 // pred_region
          %s427 = smul.u32 2, %s30
          %p428 = scmp.lt.s32.totalorder %s427, 1
          %s429 = scalar_select %p428, %s427, 1
          %s430 = smul.addr %s429, 8
          %s431 = scalar_lea.vmem %s0, %s430
          %s432 = smul.u32 2, %s30
        $region16: #{tpu_custom_call.1} parent=11 // pred_fallthru
          _
      $region12: #{tpu_custom_call.1} parent=5 // pred_fallthru
        _
      %p433 = scmp.lt.s32.totalorder %s20, 3
      // Predicated region
      $region17: #{tpu_custom_call.1} parent=5 // pred_check
        %p434 = pneg %p433
      $region18: #{tpu_custom_call.1} parent=5 // pred_check_branch
        %436 = sbr.rel (%p434) target = $region20
      $region19: #{tpu_custom_call.1} parent=5 // pred_region
        // Predicated region
        $region21: #{tpu_custom_call.1} parent=19 // pred_check
          %p437 = pneg %p85
        $region22: #{tpu_custom_call.1} parent=19 // pred_check_branch
          %439 = sbr.rel (%p437) target = $region24
        $region23: #{tpu_custom_call.1} parent=19 // pred_region
          %p440 = scmp.lt.s32.totalorder %s28, 2
          %s441 = scalar_select %p440, %s28, 2
          %s442 = smul.addr %s441, 4
          %s443 = smul.addr %s442, 4
          %s444 = scalar_lea.vmem %s1, %s443
        $region24: #{tpu_custom_call.1} parent=19 // pred_fallthru
          _
        // Predicated region
        $region25: #{tpu_custom_call.1} parent=19 // pred_check
          %p445 = pneg %p111
        $region26: #{tpu_custom_call.1} parent=19 // pred_check_branch
          %447 = sbr.rel (%p445) target = $region28
        $region27: #{tpu_custom_call.1} parent=19 // pred_region
          %p448 = scmp.lt.s32.totalorder %s28, 2
          %s449 = scalar_select %p448, %s28, 2
          %s450 = scalar_lea.vmem %s2, %s449
        $region28: #{tpu_custom_call.1} parent=19 // pred_fallthru
          _
        // Predicated region
        $region29: #{tpu_custom_call.1} parent=19 // pred_check
          %p451 = pneg %p137
        $region30: #{tpu_custom_call.1} parent=19 // pred_check_branch
          %453 = sbr.rel (%p451) target = $region32
        $region31: #{tpu_custom_call.1} parent=19 // pred_region
          %p454 = scmp.lt.s32.totalorder %s28, 2
          %s455 = scalar_select %p454, %s28, 2
          %s456 = smul.addr %s455, 4
          %s457 = smul.addr %s456, 4
          %s458 = scalar_lea.vmem %s3, %s457
        $region32: #{tpu_custom_call.1} parent=19 // pred_fallthru
          _
        // Predicated region
        $region33: #{tpu_custom_call.1} parent=19 // pred_check
          %p459 = pneg %p163
        $region34: #{tpu_custom_call.1} parent=19 // pred_check_branch
          %461 = sbr.rel (%p459) target = $region36
        $region35: #{tpu_custom_call.1} parent=19 // pred_region
          %p462 = scmp.lt.s32.totalorder %s28, 2
          %s463 = scalar_select %p462, %s28, 2
          %s464 = scalar_lea.vmem %s4, %s463
        $region36: #{tpu_custom_call.1} parent=19 // pred_fallthru
          _
        // Predicated region
        $region37: #{tpu_custom_call.1} parent=19 // pred_check
          %p465 = pneg %p191
        $region38: #{tpu_custom_call.1} parent=19 // pred_check_branch
          %467 = sbr.rel (%p465) target = $region40
        $region39: #{tpu_custom_call.1} parent=19 // pred_region
          %s468 = smul.u32 2, %s29
          %p469 = scmp.lt.s32.totalorder %s28, 2
          %s470 = scalar_select %p469, %s28, 2
          %p471 = scmp.lt.s32.totalorder %s468, 1
          %s472 = scalar_select %p471, %s468, 1
          %s473 = smul.addr %s470, 8
          %s474 = sadd.s32 %s472, %s473
          %s475 = smul.addr %s474, 4
          %s476 = scalar_lea.vmem %s5, %s475
          %s477 = smul.u32 2, %s29
        $region40: #{tpu_custom_call.1} parent=19 // pred_fallthru
          _
        // Predicated region
        $region41: #{tpu_custom_call.1} parent=19 // pred_check
          %p478 = pneg %p219
        $region42: #{tpu_custom_call.1} parent=19 // pred_check_branch
          %480 = sbr.rel (%p478) target = $region44
        $region43: #{tpu_custom_call.1} parent=19 // pred_region
          %s481 = smul.u32 2, %s29
          %p482 = scmp.lt.s32.totalorder %s28, 2
          %s483 = scalar_select %p482, %s28, 2
          %p484 = scmp.lt.s32.totalorder %s481, 1
          %s485 = scalar_select %p484, %s481, 1
          %s486 = smul.addr %s483, 2
          %s487 = sadd.s32 %s485, %s486
          %s488 = scalar_lea.vmem %s6, %s487
          %s489 = smul.u32 2, %s29
        $region44: #{tpu_custom_call.1} parent=19 // pred_fallthru
          _
        // Predicated region
        $region45: #{tpu_custom_call.1} parent=19 // pred_check
          %p490 = pneg %p247
        $region46: #{tpu_custom_call.1} parent=19 // pred_check_branch
          %492 = sbr.rel (%p490) target = $region48
        $region47: #{tpu_custom_call.1} parent=19 // pred_region
          %s493 = smul.u32 32, %s29
          %p494 = scmp.lt.s32.totalorder %s28, 2
          %s495 = scalar_select %p494, %s28, 2
          %p496 = scmp.lt.s32.totalorder %s493, 31
          %s497 = scalar_select %p496, %s493, 31
          %s498 = smul.addr %s495, 32
          %s499 = sadd.s32 %s497, %s498
          %s500 = smul.addr %s499, 4
          %s501 = scalar_lea.vmem %s7, %s500
          %s502 = smul.u32 32, %s29
        $region48: #{tpu_custom_call.1} parent=19 // pred_fallthru
          _
        // Predicated region
        $region49: #{tpu_custom_call.1} parent=19 // pred_check
          %p503 = pneg %p273
        $region50: #{tpu_custom_call.1} parent=19 // pred_check_branch
          %505 = sbr.rel (%p503) target = $region52
        $region51: #{tpu_custom_call.1} parent=19 // pred_region
          %p506 = scmp.lt.s32.totalorder %s28, 2
          %s507 = scalar_select %p506, %s28, 2
          %s508 = scalar_lea.vmem %s8, %s507
        $region52: #{tpu_custom_call.1} parent=19 // pred_fallthru
          _
        // Predicated region
        $region53: #{tpu_custom_call.1} parent=19 // pred_check
          %p509 = pneg %p299
        $region54: #{tpu_custom_call.1} parent=19 // pred_check_branch
          %511 = sbr.rel (%p509) target = $region56
        $region55: #{tpu_custom_call.1} parent=19 // pred_region
          %p512 = scmp.lt.s32.totalorder %s28, 2
          %s513 = scalar_select %p512, %s28, 2
          %s514 = scalar_lea.vmem %s9, %s513
        $region56: #{tpu_custom_call.1} parent=19 // pred_fallthru
          _
        // Predicated region
        $region57: #{tpu_custom_call.1} parent=19 // pred_check
          %p515 = pneg %p325
        $region58: #{tpu_custom_call.1} parent=19 // pred_check_branch
          %517 = sbr.rel (%p515) target = $region60
        $region59: #{tpu_custom_call.1} parent=19 // pred_region
          %p518 = scmp.lt.s32.totalorder %s28, 2
          %s519 = scalar_select %p518, %s28, 2
          %s520 = scalar_lea.vmem %s10, %s519
        $region60: #{tpu_custom_call.1} parent=19 // pred_fallthru
          _
        // Predicated region
        $region61: #{tpu_custom_call.1} parent=19 // pred_check
          %p521 = pneg %p351
        $region62: #{tpu_custom_call.1} parent=19 // pred_check_branch
          %523 = sbr.rel (%p521) target = $region64
        $region63: #{tpu_custom_call.1} parent=19 // pred_region
          %p524 = scmp.lt.s32.totalorder %s28, 2
          %s525 = scalar_select %p524, %s28, 2
          %s526 = scalar_lea.vmem %s11, %s525
        $region64: #{tpu_custom_call.1} parent=19 // pred_fallthru
          _
        // Predicated region
        $region65: #{tpu_custom_call.1} parent=19 // pred_check
          %p527 = pneg %p377
        $region66: #{tpu_custom_call.1} parent=19 // pred_check_branch
          %529 = sbr.rel (%p527) target = $region68
        $region67: #{tpu_custom_call.1} parent=19 // pred_region
          %p530 = scmp.lt.s32.totalorder %s28, 2
          %s531 = scalar_select %p530, %s28, 2
          %s532 = scalar_lea.vmem %s12, %s531
        $region68: #{tpu_custom_call.1} parent=19 // pred_fallthru
          _
      $region20: #{tpu_custom_call.1} parent=5 // pred_fallthru
        _
      %p533 = scmp.le.s32.totalorder 1, %s20
      %p534 = scmp.lt.s32.totalorder %s20, 4
      %p535 = pnand %p533, %p534
      %p536 = pneg %p535
      // Predicated region
      $region69: #{tpu_custom_call.1} parent=5 // pred_check
        _
      $region70: #{tpu_custom_call.1} parent=5 // pred_check_branch
        %538 = sbr.rel (%p535) target = $region72
      $region71: #{tpu_custom_call.1} parent=5 // pred_region
        %s539 = ssub.s32 %s20, 1
        %s540 = smul.u32 2, %s30
        %p541 = scmp.lt.s32.totalorder %s540, 1
        %s542 = scalar_select %p541, %s540, 1
        %s543 = smul.addr %s542, 8
        %s544 = scalar_lea.vmem %s0, %s543
        %p545 = pneg %p65
        %p546 = pneg %p62
        %p547 = scmp.lt.s32.totalorder %s31, 2
        %s548 = scalar_select %p547, %s31, 2
        %s549 = smul.addr %s548, 4
        %s550 = smul.addr %s549, 4
        %s551 = scalar_lea.vmem %s1, %s550
        %p552 = pneg %p91
        %p553 = pneg %p88
        %p554 = scmp.lt.s32.totalorder %s31, 2
        %s555 = scalar_select %p554, %s31, 2
        %s556 = scalar_lea.vmem %s2, %s555
        %p557 = pneg %p117
        %p558 = pneg %p114
        %p559 = scmp.lt.s32.totalorder %s31, 2
        %s560 = scalar_select %p559, %s31, 2
        %s561 = smul.addr %s560, 4
        %s562 = smul.addr %s561, 4
        %s563 = scalar_lea.vmem %s3, %s562
        %p564 = pneg %p143
        %p565 = pneg %p140
        %p566 = scmp.lt.s32.totalorder %s31, 2
        %s567 = scalar_select %p566, %s31, 2
        %s568 = scalar_lea.vmem %s4, %s567
        %p569 = pneg %p169
        %p570 = pneg %p166
        %s571 = smul.u32 2, %s32
        %p572 = scmp.lt.s32.totalorder %s31, 2
        %s573 = scalar_select %p572, %s31, 2
        %p574 = scmp.lt.s32.totalorder %s571, 1
        %s575 = scalar_select %p574, %s571, 1
        %s576 = smul.addr %s573, 8
        %s577 = sadd.s32 %s575, %s576
        %s578 = smul.addr %s577, 4
        %s579 = scalar_lea.vmem %s5, %s578
        %p580 = pneg %p197
        %p581 = pneg %p194
        %s582 = smul.u32 2, %s32
        %p583 = scmp.lt.s32.totalorder %s31, 2
        %s584 = scalar_select %p583, %s31, 2
        %p585 = scmp.lt.s32.totalorder %s582, 1
        %s586 = scalar_select %p585, %s582, 1
        %s587 = smul.addr %s584, 2
        %s588 = sadd.s32 %s586, %s587
        %s589 = scalar_lea.vmem %s6, %s588
        %p590 = pneg %p225
        %p591 = pneg %p222
        %s592 = smul.u32 32, %s32
        %p593 = scmp.lt.s32.totalorder %s31, 2
        %s594 = scalar_select %p593, %s31, 2
        %p595 = scmp.lt.s32.totalorder %s592, 31
        %s596 = scalar_select %p595, %s592, 31
        %s597 = smul.addr %s594, 32
        %s598 = sadd.s32 %s596, %s597
        %s599 = smul.addr %s598, 4
        %s600 = scalar_lea.vmem %s7, %s599
        %p601 = pneg %p253
        %p602 = pneg %p250
        %p603 = scmp.lt.s32.totalorder %s31, 2
        %s604 = scalar_select %p603, %s31, 2
        %s605 = scalar_lea.vmem %s8, %s604
        %p606 = pneg %p279
        %p607 = pneg %p276
        %p608 = scmp.lt.s32.totalorder %s31, 2
        %s609 = scalar_select %p608, %s31, 2
        %s610 = scalar_lea.vmem %s9, %s609
        %p611 = pneg %p305
        %p612 = pneg %p302
        %p613 = scmp.lt.s32.totalorder %s31, 2
        %s614 = scalar_select %p613, %s31, 2
        %s615 = scalar_lea.vmem %s10, %s614
        %p616 = pneg %p331
        %p617 = pneg %p328
        %p618 = scmp.lt.s32.totalorder %s31, 2
        %s619 = scalar_select %p618, %s31, 2
        %s620 = scalar_lea.vmem %s11, %s619
        %p621 = pneg %p357
        %p622 = pneg %p354
        %p623 = scmp.lt.s32.totalorder %s31, 2
        %s624 = scalar_select %p623, %s31, 2
        %s625 = scalar_lea.vmem %s12, %s624
        %p626 = pneg %p383
        %p627 = pneg %p380
        %p628 = pneg %p409
        %p629 = pneg %p406
        %s630 = smul.u32 2, %s30
        %p631 = scmp.lt.s32.totalorder %s630, 1
        %s632 = scalar_select %p631, %s630, 1
        %s633 = smul.addr %s632, 8
        %s634 = scalar_lea.vmem %s0, %s633
        %s635 = smul.u32 2, %s30
        %p636 = scmp.lt.s32.totalorder %s31, 2
        %s637 = scalar_select %p636, %s31, 2
        %s638 = smul.addr %s637, 4
        %s639 = smul.addr %s638, 4
        %s640 = scalar_lea.vmem %s1, %s639
        %p641 = scmp.lt.s32.totalorder %s31, 2
        %s642 = scalar_select %p641, %s31, 2
        %s643 = scalar_lea.vmem %s2, %s642
        %p644 = scmp.lt.s32.totalorder %s31, 2
        %s645 = scalar_select %p644, %s31, 2
        %s646 = smul.addr %s645, 4
        %s647 = smul.addr %s646, 4
        %s648 = scalar_lea.vmem %s3, %s647
        %p649 = scmp.lt.s32.totalorder %s31, 2
        %s650 = scalar_select %p649, %s31, 2
        %s651 = scalar_lea.vmem %s4, %s650
        %s652 = smul.u32 2, %s32
        %p653 = scmp.lt.s32.totalorder %s31, 2
        %s654 = scalar_select %p653, %s31, 2
        %p655 = scmp.lt.s32.totalorder %s652, 1
        %s656 = scalar_select %p655, %s652, 1
        %s657 = smul.addr %s654, 8
        %s658 = sadd.s32 %s656, %s657
        %s659 = smul.addr %s658, 4
        %s660 = scalar_lea.vmem %s5, %s659
        %s661 = smul.u32 2, %s32
        %s662 = smul.u32 2, %s32
        %p663 = scmp.lt.s32.totalorder %s31, 2
        %s664 = scalar_select %p663, %s31, 2
        %p665 = scmp.lt.s32.totalorder %s662, 1
        %s666 = scalar_select %p665, %s662, 1
        %s667 = smul.addr %s664, 2
        %s668 = sadd.s32 %s666, %s667
        %s669 = scalar_lea.vmem %s6, %s668
        %s670 = smul.u32 2, %s32
        %s671 = smul.u32 32, %s32
        %p672 = scmp.lt.s32.totalorder %s31, 2
        %s673 = scalar_select %p672, %s31, 2
        %p674 = scmp.lt.s32.totalorder %s671, 31
        %s675 = scalar_select %p674, %s671, 31
        %s676 = smul.addr %s673, 32
        %s677 = sadd.s32 %s675, %s676
        %s678 = smul.addr %s677, 4
        %s679 = scalar_lea.vmem %s7, %s678
        %s680 = smul.u32 32, %s32
        %p681 = scmp.lt.s32.totalorder %s31, 2
        %s682 = scalar_select %p681, %s31, 2
        %s683 = scalar_lea.vmem %s8, %s682
        %p684 = scmp.lt.s32.totalorder %s31, 2
        %s685 = scalar_select %p684, %s31, 2
        %s686 = scalar_lea.vmem %s9, %s685
        %p687 = scmp.lt.s32.totalorder %s31, 2
        %s688 = scalar_select %p687, %s31, 2
        %s689 = scalar_lea.vmem %s10, %s688
        %p690 = scmp.lt.s32.totalorder %s31, 2
        %s691 = scalar_select %p690, %s31, 2
        %s692 = scalar_lea.vmem %s11, %s691
        %p693 = scmp.lt.s32.totalorder %s31, 2
        %s694 = scalar_select %p693, %s31, 2
        %s695 = scalar_lea.vmem %s12, %s694
        %s696 = smul.u32 2, %s30
        %p698 = scmp.eq.s32.totalorder %s31, 0
        %p699 = scmp.eq.s32.totalorder %s32, 0
        %p700 = pnand %p698, %p699
        %p701 = pneg %p700
        // Predicated region
        $region73: #{tpu_custom_call.1} parent=71 // pred_check
          _
        $region74: #{tpu_custom_call.1} parent=71 // pred_check_branch
          %703 = sbr.rel (%p700) target = $region76
        $region75: #{tpu_custom_call.1} parent=71 // pred_region
          %v704 = vld [vmem:[%s634] sm:$0xff]
          %v705 = vld [vmem:[%s634 + $0x8] sm:$0xff]
          %vm706 = vcmask 261120
          %707 = vst.msk [vmem:[#allocation2] sm:$0xff] %vm706, %v704
          %708 = vst.msk [vmem:[#allocation2 + $0x8] sm:$0xff] %vm706, %v705
        $region76: #{tpu_custom_call.1} parent=71 // pred_fallthru
          _
        // Predicated region
        $region77: #{tpu_custom_call.1} parent=71 // pred_check
          %p709 = pneg %p699
        $region78: #{tpu_custom_call.1} parent=71 // pred_check_branch
          %711 = sbr.rel (%p709) target = $region80
        $region79: #{tpu_custom_call.1} parent=71 // pred_region
          %v712 = vld [vmem:[#allocation2] sm:$0xff]
          %v713 = vld [vmem:[#allocation2 + $0x8] sm:$0xff]
          %v714 = vpack.c.bf16 %v713, %v712
          %v715 = vld [vmem:[%s640] sm:$0xf]
          %v716 = vld [vmem:[%s640 + $0x4] sm:$0xf]
          %v717 = vld [vmem:[%s640 + $0x8] sm:$0xf]
          %v718 = vld [vmem:[%s640 + $0xc] sm:$0xf]
          %v719 = vld [vmem:[%s643] sm:$0x1]
          %v721 = vlaneseq
          %v722 = vshrl.u32 %v721, 7
          %v723 = vsub.s32 0, %v722
          %v724 = vrot.slane %v719, %v723
          %v730 = vunpack.c.l.b16 %v715
          %v731 = vunpack.c.l.b16 %v716
          %v732 = vunpack.c.l.b16 %v717
          %v733 = vunpack.c.l.b16 %v718
          %v734 = vpack.c.b16 %v731, %v730
          %v735 = vpack.c.b16 %v733, %v732
          %vm738 = vcmask 261120
          %v740 = vsel %vm738, %v714, 0
          %742 = vmatprep.subr.bf16.mxu0 0
          %743 = vmatpush1.bf16.msra.mxu0 %v734
          %744 = vmatprep.subr.bf16.mxu0 0
          %745 = vmatpush1.bf16.msra.mxu0 %v735
          %746 = vmatprep.subr.bf16.mxu0 0
          %747 = vmatpush1.bf16.msra.mxu0 0
          %748 = vmatprep.subr.bf16.mxu0 0
          %749 = vmatpush1.bf16.msra.mxu0 0
          %750 = vmatprep.subr.bf16.mxu0 0
          %751 = vmatpush1.bf16.msra.mxu0 0
          %752 = vmatprep.subr.bf16.mxu0 0
          %753 = vmatpush1.bf16.msra.mxu0 0
          %754 = vmatprep.subr.bf16.mxu0 0
          %755 = vmatpush1.bf16.msra.mxu0 0
          %756 = vmatprep.subr.bf16.mxu0 0
          %757 = vmatpush1.bf16.msra.mxu0 0
          %758 = vmatprep.subr.bf16.mxu0 0
          %759 = vmatpush1.bf16.msra.mxu0 0
          %760 = vmatprep.subr.bf16.mxu0 0
          %761 = vmatpush1.bf16.msra.mxu0 0
          %762 = vmatprep.subr.bf16.mxu0 0
          %763 = vmatpush1.bf16.msra.mxu0 0
          %764 = vmatprep.subr.bf16.mxu0 0
          %765 = vmatpush1.bf16.msra.mxu0 0
          %766 = vmatprep.subr.bf16.mxu0 0
          %767 = vmatpush1.bf16.msra.mxu0 0
          %768 = vmatprep.subr.bf16.mxu0 0
          %769 = vmatpush1.bf16.msra.mxu0 0
          %770 = vmatprep.subr.bf16.mxu0 0
          %771 = vmatpush1.bf16.msra.mxu0 0
          %772 = vmatprep.subr.bf16.mxu0 0
          %773 = vmatpush1.bf16.msra.mxu0 0
          %774 = vmatprep.mubr.bf16.mxu0 0
          %775 = vmatmul.mubr.bf16.gmra.mrb[0].mxu0 %v740
          %v776 = vpop.f32.mrb[0].mxu0
          %v777 = vadd.f32 %v724, %v776
          %v778 = vpop.f32.mrb[0].mxu0
          %v779 = vpop.f32.mrb[0].mxu0
          %v780 = vadd.f32 %v724, %v779
          %v781 = vpop.f32.mrb[0].mxu0
          %782 = vdwg.mxu0
          %v783 = vmul.f32 %v777, 0.35355338
          %v784 = vmul.f32 %v780, 0.35355338
          %v785 = vpack.c.bf16 %v784, %v783
          %787 = vrot.lane.b32.xlu0 %v785, 120
          %v788 = vpop.permute.xlu0 %787
          %789 = vrot.lane.b32.xlu0 %v785, 112
          %v790 = vpop.permute.xlu0 %789
          %791 = vrot.lane.b32.xlu0 %v785, 104
          %v792 = vpop.permute.xlu0 %791
          %v795 = vpack.i.b16 %v788, %v785
          %v797 = vshrl.u32 %v785, 16
          %v798 = vshrl.u32 %v788, 16
          %v799 = vpack.i.b16 %v798, %v797
          %v803 = vpack.i.b16 %v792, %v790
          %v805 = vshrl.u32 %v790, 16
          %v806 = vshrl.u32 %v792, 16
          %v807 = vpack.i.b16 %v806, %v805
          %v810 = vpack.i.b16 0, 0
          %v812 = vshrl.u32 0, 16
          %v813 = vpack.i.b16 %v812, %v812
          %v815 = vcombine.high %v795, %v810
          %v817 = vunpack.c.l.s4 1983009808
          %v818 = vunpack.c.0.s8 %v817
          %v819 = vlaneseq
          %v820 = vshrl.u32 %v819, 7
          %v821 = vsub.s32 %v818, %v820
          %v822 = vrot.slane %v795, %v821
          %v824 = vunpack.c.l.s4 1983009808
          %v825 = vunpack.c.0.s8 %v824
          %v826 = vlaneseq
          %v827 = vshrl.u32 %v826, 7
          %v828 = vsub.s32 %v825, %v827
          %v829 = vrot.slane %v815, %v828
          %v830 = vcombine.high %v803, %v810
          %v832 = vunpack.c.l.s4 1983009808
          %v833 = vunpack.c.0.s8 %v832
          %v834 = vlaneseq
          %v835 = vshrl.u32 %v834, 7
          %v836 = vsub.s32 %v833, %v835
          %v837 = vrot.slane %v803, %v836
          %v839 = vunpack.c.l.s4 1983009808
          %v840 = vunpack.c.0.s8 %v839
          %v841 = vlaneseq
          %v842 = vshrl.u32 %v841, 7
          %v843 = vsub.s32 %v840, %v842
          %v844 = vrot.slane %v830, %v843
          %v845 = vcombine.low %v822, %v837
          %v846 = vcombine.high %v822, %v837
          %v848 = vunpack.c.l.s4 1934713408
          %v849 = vunpack.c.0.s8 %v848
          %v850 = vlaneseq
          %v851 = vshrl.u32 %v850, 7
          %v852 = vsub.s32 %v849, %v851
          %v853 = vrot.slane %v845, %v852
          %v855 = vunpack.c.l.s4 1934713408
          %v856 = vunpack.c.0.s8 %v855
          %v857 = vlaneseq
          %v858 = vshrl.u32 %v857, 7
          %v859 = vsub.s32 %v856, %v858
          %v860 = vrot.slane %v846, %v859
          %v861 = vcombine.low %v829, %v844
          %v862 = vcombine.high %v829, %v844
          %v864 = vunpack.c.l.s4 1934713408
          %v865 = vunpack.c.0.s8 %v864
          %v866 = vlaneseq
          %v867 = vshrl.u32 %v866, 7
          %v868 = vsub.s32 %v865, %v867
          %v869 = vrot.slane %v861, %v868
          %v871 = vunpack.c.l.s4 1934713408
          %v872 = vunpack.c.0.s8 %v871
          %v873 = vlaneseq
          %v874 = vshrl.u32 %v873, 7
          %v875 = vsub.s32 %v872, %v874
          %v876 = vrot.slane %v862, %v875
          %v877 = vcombine.high %v853, 0
          %v878 = vcombine.high %v860, 0
          %v879 = vcombine.high %v869, 0
          %v880 = vcombine.high %v876, 0
          %v881 = vcombine.high %v799, %v813
          %v883 = vunpack.c.l.s4 1983009808
          %v884 = vunpack.c.0.s8 %v883
          %v885 = vlaneseq
          %v886 = vshrl.u32 %v885, 7
          %v887 = vsub.s32 %v884, %v886
          %v888 = vrot.slane %v799, %v887
          %v890 = vunpack.c.l.s4 1983009808
          %v891 = vunpack.c.0.s8 %v890
          %v892 = vlaneseq
          %v893 = vshrl.u32 %v892, 7
          %v894 = vsub.s32 %v891, %v893
          %v895 = vrot.slane %v881, %v894
          %v896 = vcombine.high %v807, %v813
          %v898 = vunpack.c.l.s4 1983009808
          %v899 = vunpack.c.0.s8 %v898
          %v900 = vlaneseq
          %v901 = vshrl.u32 %v900, 7
          %v902 = vsub.s32 %v899, %v901
          %v903 = vrot.slane %v807, %v902
          %v905 = vunpack.c.l.s4 1983009808
          %v906 = vunpack.c.0.s8 %v905
          %v907 = vlaneseq
          %v908 = vshrl.u32 %v907, 7
          %v909 = vsub.s32 %v906, %v908
          %v910 = vrot.slane %v896, %v909
          %v911 = vcombine.low %v888, %v903
          %v912 = vcombine.high %v888, %v903
          %v914 = vunpack.c.l.s4 1934713408
          %v915 = vunpack.c.0.s8 %v914
          %v916 = vlaneseq
          %v917 = vshrl.u32 %v916, 7
          %v918 = vsub.s32 %v915, %v917
          %v919 = vrot.slane %v911, %v918
          %v921 = vunpack.c.l.s4 1934713408
          %v922 = vunpack.c.0.s8 %v921
          %v923 = vlaneseq
          %v924 = vshrl.u32 %v923, 7
          %v925 = vsub.s32 %v922, %v924
          %v926 = vrot.slane %v912, %v925
          %v927 = vcombine.low %v895, %v910
          %v928 = vcombine.high %v895, %v910
          %v930 = vunpack.c.l.s4 1934713408
          %v931 = vunpack.c.0.s8 %v930
          %v932 = vlaneseq
          %v933 = vshrl.u32 %v932, 7
          %v934 = vsub.s32 %v931, %v933
          %v935 = vrot.slane %v927, %v934
          %v937 = vunpack.c.l.s4 1934713408
          %v938 = vunpack.c.0.s8 %v937
          %v939 = vlaneseq
          %v940 = vshrl.u32 %v939, 7
          %v941 = vsub.s32 %v938, %v940
          %v942 = vrot.slane %v928, %v941
          %v943 = vcombine.high %v919, 0
          %v944 = vcombine.high %v926, 0
          %v945 = vcombine.high %v935, 0
          %v946 = vcombine.high %v942, 0
          %v947 = vcombine.low %v853, %v860
          %v949 = vunpack.c.l.s4 1983009808
          %v950 = vunpack.c.0.s8 %v949
          %v951 = vlaneseq
          %v952 = vshrl.u32 %v951, 7
          %v953 = vsub.s32 %v950, %v952
          %v954 = vrot.slane %v947, %v953
          %v955 = vcombine.low %v877, %v878
          %v957 = vunpack.c.l.s4 1983009808
          %v958 = vunpack.c.0.s8 %v957
          %v959 = vlaneseq
          %v960 = vshrl.u32 %v959, 7
          %v961 = vsub.s32 %v958, %v960
          %v962 = vrot.slane %v955, %v961
          %v963 = vcombine.low %v954, %v962
          %v965 = vunpack.c.l.s4 1934713408
          %v966 = vunpack.c.0.s8 %v965
          %v967 = vlaneseq
          %v968 = vshrl.u32 %v967, 7
          %v969 = vsub.s32 %v966, %v968
          %v970 = vrot.slane %v963, %v969
          %v971 = vcombine.high %v970, 0
          %v972 = vcombine.low %v919, %v926
          %v974 = vunpack.c.l.s4 1983009808
          %v975 = vunpack.c.0.s8 %v974
          %v976 = vlaneseq
          %v977 = vshrl.u32 %v976, 7
          %v978 = vsub.s32 %v975, %v977
          %v979 = vrot.slane %v972, %v978
          %v980 = vcombine.low %v943, %v944
          %v982 = vunpack.c.l.s4 1983009808
          %v983 = vunpack.c.0.s8 %v982
          %v984 = vlaneseq
          %v985 = vshrl.u32 %v984, 7
          %v986 = vsub.s32 %v983, %v985
          %v987 = vrot.slane %v980, %v986
          %v988 = vcombine.low %v979, %v987
          %v990 = vunpack.c.l.s4 1934713408
          %v991 = vunpack.c.0.s8 %v990
          %v992 = vlaneseq
          %v993 = vshrl.u32 %v992, 7
          %v994 = vsub.s32 %v991, %v993
          %v995 = vrot.slane %v988, %v994
          %v996 = vcombine.high %v995, 0
          %v997 = vcombine.low %v869, %v876
          %v999 = vunpack.c.l.s4 1983009808
          %v1000 = vunpack.c.0.s8 %v999
          %v1001 = vlaneseq
          %v1002 = vshrl.u32 %v1001, 7
          %v1003 = vsub.s32 %v1000, %v1002
          %v1004 = vrot.slane %v997, %v1003
          %v1005 = vcombine.low %v879, %v880
          %v1007 = vunpack.c.l.s4 1983009808
          %v1008 = vunpack.c.0.s8 %v1007
          %v1009 = vlaneseq
          %v1010 = vshrl.u32 %v1009, 7
          %v1011 = vsub.s32 %v1008, %v1010
          %v1012 = vrot.slane %v1005, %v1011
          %v1013 = vcombine.low %v1004, %v1012
          %v1015 = vunpack.c.l.s4 1934713408
          %v1016 = vunpack.c.0.s8 %v1015
          %v1017 = vlaneseq
          %v1018 = vshrl.u32 %v1017, 7
          %v1019 = vsub.s32 %v1016, %v1018
          %v1020 = vrot.slane %v1013, %v1019
          %v1021 = vcombine.high %v1020, 0
          %v1022 = vcombine.low %v935, %v942
          %v1024 = vunpack.c.l.s4 1983009808
          %v1025 = vunpack.c.0.s8 %v1024
          %v1026 = vlaneseq
          %v1027 = vshrl.u32 %v1026, 7
          %v1028 = vsub.s32 %v1025, %v1027
          %v1029 = vrot.slane %v1022, %v1028
          %v1030 = vcombine.low %v945, %v946
          %v1032 = vunpack.c.l.s4 1983009808
          %v1033 = vunpack.c.0.s8 %v1032
          %v1034 = vlaneseq
          %v1035 = vshrl.u32 %v1034, 7
          %v1036 = vsub.s32 %v1033, %v1035
          %v1037 = vrot.slane %v1030, %v1036
          %v1038 = vcombine.low %v1029, %v1037
          %v1040 = vunpack.c.l.s4 1934713408
          %v1041 = vunpack.c.0.s8 %v1040
          %v1042 = vlaneseq
          %v1043 = vshrl.u32 %v1042, 7
          %v1044 = vsub.s32 %v1041, %v1043
          %v1045 = vrot.slane %v1038, %v1044
          %v1046 = vcombine.high %v1045, 0
          %v1049 = vpack.i.b16 %v995, %v970
          %v1050 = vshrl.u32 %v970, 16
          %v1051 = vshrl.u32 %v995, 16
          %v1052 = vpack.i.b16 %v1051, %v1050
          %v1055 = vpack.i.b16 %v996, %v971
          %v1056 = vshrl.u32 %v971, 16
          %v1057 = vshrl.u32 %v996, 16
          %v1058 = vpack.i.b16 %v1057, %v1056
          %v1061 = vpack.i.b16 %v1045, %v1020
          %v1062 = vshrl.u32 %v1020, 16
          %v1063 = vshrl.u32 %v1045, 16
          %v1064 = vpack.i.b16 %v1063, %v1062
          %v1067 = vpack.i.b16 %v1046, %v1021
          %v1068 = vshrl.u32 %v1021, 16
          %v1069 = vshrl.u32 %v1046, 16
          %v1070 = vpack.i.b16 %v1069, %v1068
          %v1071 = vpack.c.bf16 %v780, %v777
          %1073 = vrot.lane.b32.xlu0 %v1071, 120
          %v1074 = vpop.permute.xlu0 %1073
          %1075 = vrot.lane.b32.xlu0 %v1071, 112
          %v1076 = vpop.permute.xlu0 %1075
          %1077 = vrot.lane.b32.xlu0 %v1071, 104
          %v1078 = vpop.permute.xlu0 %1077
          %1079 = vrot.lane.b32.xlu0 %v1071, 96
          %v1080 = vpop.permute.xlu0 %1079
          %1081 = vrot.lane.b32.xlu0 %v1074, 96
          %v1082 = vpop.permute.xlu0 %1081
          %1083 = vrot.lane.b32.xlu0 %v1076, 96
          %v1084 = vpop.permute.xlu0 %1083
          %1085 = vrot.lane.b32.xlu0 %v1078, 96
          %v1086 = vpop.permute.xlu0 %1085
          %v1089 = vpack.i.b16 %v1082, %v1080
          %v1091 = vshrl.u32 %v1080, 16
          %v1092 = vshrl.u32 %v1082, 16
          %v1093 = vpack.i.b16 %v1092, %v1091
          %v1097 = vpack.i.b16 %v1086, %v1084
          %v1099 = vshrl.u32 %v1084, 16
          %v1100 = vshrl.u32 %v1086, 16
          %v1101 = vpack.i.b16 %v1100, %v1099
          %v1103 = vcombine.high %v1089, %v810
          %v1105 = vunpack.c.l.s4 1983009808
          %v1106 = vunpack.c.0.s8 %v1105
          %v1107 = vlaneseq
          %v1108 = vshrl.u32 %v1107, 7
          %v1109 = vsub.s32 %v1106, %v1108
          %v1110 = vrot.slane %v1089, %v1109
          %v1112 = vunpack.c.l.s4 1983009808
          %v1113 = vunpack.c.0.s8 %v1112
          %v1114 = vlaneseq
          %v1115 = vshrl.u32 %v1114, 7
          %v1116 = vsub.s32 %v1113, %v1115
          %v1117 = vrot.slane %v1103, %v1116
          %v1118 = vcombine.high %v1097, %v810
          %v1120 = vunpack.c.l.s4 1983009808
          %v1121 = vunpack.c.0.s8 %v1120
          %v1122 = vlaneseq
          %v1123 = vshrl.u32 %v1122, 7
          %v1124 = vsub.s32 %v1121, %v1123
          %v1125 = vrot.slane %v1097, %v1124
          %v1127 = vunpack.c.l.s4 1983009808
          %v1128 = vunpack.c.0.s8 %v1127
          %v1129 = vlaneseq
          %v1130 = vshrl.u32 %v1129, 7
          %v1131 = vsub.s32 %v1128, %v1130
          %v1132 = vrot.slane %v1118, %v1131
          %v1133 = vcombine.low %v1110, %v1125
          %v1134 = vcombine.high %v1110, %v1125
          %v1136 = vunpack.c.l.s4 1934713408
          %v1137 = vunpack.c.0.s8 %v1136
          %v1138 = vlaneseq
          %v1139 = vshrl.u32 %v1138, 7
          %v1140 = vsub.s32 %v1137, %v1139
          %v1141 = vrot.slane %v1133, %v1140
          %v1143 = vunpack.c.l.s4 1934713408
          %v1144 = vunpack.c.0.s8 %v1143
          %v1145 = vlaneseq
          %v1146 = vshrl.u32 %v1145, 7
          %v1147 = vsub.s32 %v1144, %v1146
          %v1148 = vrot.slane %v1134, %v1147
          %v1149 = vcombine.low %v1117, %v1132
          %v1150 = vcombine.high %v1117, %v1132
          %v1152 = vunpack.c.l.s4 1934713408
          %v1153 = vunpack.c.0.s8 %v1152
          %v1154 = vlaneseq
          %v1155 = vshrl.u32 %v1154, 7
          %v1156 = vsub.s32 %v1153, %v1155
          %v1157 = vrot.slane %v1149, %v1156
          %v1159 = vunpack.c.l.s4 1934713408
          %v1160 = vunpack.c.0.s8 %v1159
          %v1161 = vlaneseq
          %v1162 = vshrl.u32 %v1161, 7
          %v1163 = vsub.s32 %v1160, %v1162
          %v1164 = vrot.slane %v1150, %v1163
          %v1165 = vcombine.high %v1141, 0
          %v1166 = vcombine.high %v1148, 0
          %v1167 = vcombine.high %v1157, 0
          %v1168 = vcombine.high %v1164, 0
          %v1169 = vcombine.high %v1093, %v813
          %v1171 = vunpack.c.l.s4 1983009808
          %v1172 = vunpack.c.0.s8 %v1171
          %v1173 = vlaneseq
          %v1174 = vshrl.u32 %v1173, 7
          %v1175 = vsub.s32 %v1172, %v1174
          %v1176 = vrot.slane %v1093, %v1175
          %v1178 = vunpack.c.l.s4 1983009808
          %v1179 = vunpack.c.0.s8 %v1178
          %v1180 = vlaneseq
          %v1181 = vshrl.u32 %v1180, 7
          %v1182 = vsub.s32 %v1179, %v1181
          %v1183 = vrot.slane %v1169, %v1182
          %v1184 = vcombine.high %v1101, %v813
          %v1186 = vunpack.c.l.s4 1983009808
          %v1187 = vunpack.c.0.s8 %v1186
          %v1188 = vlaneseq
          %v1189 = vshrl.u32 %v1188, 7
          %v1190 = vsub.s32 %v1187, %v1189
          %v1191 = vrot.slane %v1101, %v1190
          %v1193 = vunpack.c.l.s4 1983009808
          %v1194 = vunpack.c.0.s8 %v1193
          %v1195 = vlaneseq
          %v1196 = vshrl.u32 %v1195, 7
          %v1197 = vsub.s32 %v1194, %v1196
          %v1198 = vrot.slane %v1184, %v1197
          %v1199 = vcombine.low %v1176, %v1191
          %v1200 = vcombine.high %v1176, %v1191
          %v1202 = vunpack.c.l.s4 1934713408
          %v1203 = vunpack.c.0.s8 %v1202
          %v1204 = vlaneseq
          %v1205 = vshrl.u32 %v1204, 7
          %v1206 = vsub.s32 %v1203, %v1205
          %v1207 = vrot.slane %v1199, %v1206
          %v1209 = vunpack.c.l.s4 1934713408
          %v1210 = vunpack.c.0.s8 %v1209
          %v1211 = vlaneseq
          %v1212 = vshrl.u32 %v1211, 7
          %v1213 = vsub.s32 %v1210, %v1212
          %v1214 = vrot.slane %v1200, %v1213
          %v1215 = vcombine.low %v1183, %v1198
          %v1216 = vcombine.high %v1183, %v1198
          %v1218 = vunpack.c.l.s4 1934713408
          %v1219 = vunpack.c.0.s8 %v1218
          %v1220 = vlaneseq
          %v1221 = vshrl.u32 %v1220, 7
          %v1222 = vsub.s32 %v1219, %v1221
          %v1223 = vrot.slane %v1215, %v1222
          %v1225 = vunpack.c.l.s4 1934713408
          %v1226 = vunpack.c.0.s8 %v1225
          %v1227 = vlaneseq
          %v1228 = vshrl.u32 %v1227, 7
          %v1229 = vsub.s32 %v1226, %v1228
          %v1230 = vrot.slane %v1216, %v1229
          %v1231 = vcombine.high %v1207, 0
          %v1232 = vcombine.high %v1214, 0
          %v1233 = vcombine.high %v1223, 0
          %v1234 = vcombine.high %v1230, 0
          %v1235 = vcombine.low %v1141, %v1148
          %v1237 = vunpack.c.l.s4 1983009808
          %v1238 = vunpack.c.0.s8 %v1237
          %v1239 = vlaneseq
          %v1240 = vshrl.u32 %v1239, 7
          %v1241 = vsub.s32 %v1238, %v1240
          %v1242 = vrot.slane %v1235, %v1241
          %v1243 = vcombine.low %v1165, %v1166
          %v1245 = vunpack.c.l.s4 1983009808
          %v1246 = vunpack.c.0.s8 %v1245
          %v1247 = vlaneseq
          %v1248 = vshrl.u32 %v1247, 7
          %v1249 = vsub.s32 %v1246, %v1248
          %v1250 = vrot.slane %v1243, %v1249
          %v1251 = vcombine.low %v1242, %v1250
          %v1253 = vunpack.c.l.s4 1934713408
          %v1254 = vunpack.c.0.s8 %v1253
          %v1255 = vlaneseq
          %v1256 = vshrl.u32 %v1255, 7
          %v1257 = vsub.s32 %v1254, %v1256
          %v1258 = vrot.slane %v1251, %v1257
          %v1259 = vcombine.high %v1258, 0
          %v1260 = vcombine.low %v1207, %v1214
          %v1262 = vunpack.c.l.s4 1983009808
          %v1263 = vunpack.c.0.s8 %v1262
          %v1264 = vlaneseq
          %v1265 = vshrl.u32 %v1264, 7
          %v1266 = vsub.s32 %v1263, %v1265
          %v1267 = vrot.slane %v1260, %v1266
          %v1268 = vcombine.low %v1231, %v1232
          %v1270 = vunpack.c.l.s4 1983009808
          %v1271 = vunpack.c.0.s8 %v1270
          %v1272 = vlaneseq
          %v1273 = vshrl.u32 %v1272, 7
          %v1274 = vsub.s32 %v1271, %v1273
          %v1275 = vrot.slane %v1268, %v1274
          %v1276 = vcombine.low %v1267, %v1275
          %v1278 = vunpack.c.l.s4 1934713408
          %v1279 = vunpack.c.0.s8 %v1278
          %v1280 = vlaneseq
          %v1281 = vshrl.u32 %v1280, 7
          %v1282 = vsub.s32 %v1279, %v1281
          %v1283 = vrot.slane %v1276, %v1282
          %v1284 = vcombine.high %v1283, 0
          %v1285 = vcombine.low %v1157, %v1164
          %v1287 = vunpack.c.l.s4 1983009808
          %v1288 = vunpack.c.0.s8 %v1287
          %v1289 = vlaneseq
          %v1290 = vshrl.u32 %v1289, 7
          %v1291 = vsub.s32 %v1288, %v1290
          %v1292 = vrot.slane %v1285, %v1291
          %v1293 = vcombine.low %v1167, %v1168
          %v1295 = vunpack.c.l.s4 1983009808
          %v1296 = vunpack.c.0.s8 %v1295
          %v1297 = vlaneseq
          %v1298 = vshrl.u32 %v1297, 7
          %v1299 = vsub.s32 %v1296, %v1298
          %v1300 = vrot.slane %v1293, %v1299
          %v1301 = vcombine.low %v1292, %v1300
          %v1303 = vunpack.c.l.s4 1934713408
          %v1304 = vunpack.c.0.s8 %v1303
          %v1305 = vlaneseq
          %v1306 = vshrl.u32 %v1305, 7
          %v1307 = vsub.s32 %v1304, %v1306
          %v1308 = vrot.slane %v1301, %v1307
          %v1309 = vcombine.high %v1308, 0
          %v1310 = vcombine.low %v1223, %v1230
          %v1312 = vunpack.c.l.s4 1983009808
          %v1313 = vunpack.c.0.s8 %v1312
          %v1314 = vlaneseq
          %v1315 = vshrl.u32 %v1314, 7
          %v1316 = vsub.s32 %v1313, %v1315
          %v1317 = vrot.slane %v1310, %v1316
          %v1318 = vcombine.low %v1233, %v1234
          %v1320 = vunpack.c.l.s4 1983009808
          %v1321 = vunpack.c.0.s8 %v1320
          %v1322 = vlaneseq
          %v1323 = vshrl.u32 %v1322, 7
          %v1324 = vsub.s32 %v1321, %v1323
          %v1325 = vrot.slane %v1318, %v1324
          %v1326 = vcombine.low %v1317, %v1325
          %v1328 = vunpack.c.l.s4 1934713408
          %v1329 = vunpack.c.0.s8 %v1328
          %v1330 = vlaneseq
          %v1331 = vshrl.u32 %v1330, 7
          %v1332 = vsub.s32 %v1329, %v1331
          %v1333 = vrot.slane %v1326, %v1332
          %v1334 = vcombine.high %v1333, 0
          %v1337 = vpack.i.b16 %v1283, %v1258
          %v1338 = vshrl.u32 %v1258, 16
          %v1339 = vshrl.u32 %v1283, 16
          %v1340 = vpack.i.b16 %v1339, %v1338
          %v1343 = vpack.i.b16 %v1284, %v1259
          %v1344 = vshrl.u32 %v1259, 16
          %v1345 = vshrl.u32 %v1284, 16
          %v1346 = vpack.i.b16 %v1345, %v1344
          %v1349 = vpack.i.b16 %v1333, %v1308
          %v1350 = vshrl.u32 %v1308, 16
          %v1351 = vshrl.u32 %v1333, 16
          %v1352 = vpack.i.b16 %v1351, %v1350
          %v1355 = vpack.i.b16 %v1334, %v1309
          %v1356 = vshrl.u32 %v1309, 16
          %v1357 = vshrl.u32 %v1334, 16
          %v1358 = vpack.i.b16 %v1357, %v1356
          %1359 = vrot.lane.b32.xlu0 %v1071, 64
          %v1360 = vpop.permute.xlu0 %1359
          %1361 = vrot.lane.b32.xlu0 %v1074, 64
          %v1362 = vpop.permute.xlu0 %1361
          %1363 = vrot.lane.b32.xlu0 %v1076, 64
          %v1364 = vpop.permute.xlu0 %1363
          %1365 = vrot.lane.b32.xlu0 %v1078, 64
          %v1366 = vpop.permute.xlu0 %1365
          %v1369 = vpack.i.b16 %v1362, %v1360
          %v1371 = vshrl.u32 %v1360, 16
          %v1372 = vshrl.u32 %v1362, 16
          %v1373 = vpack.i.b16 %v1372, %v1371
          %v1377 = vpack.i.b16 %v1366, %v1364
          %v1379 = vshrl.u32 %v1364, 16
          %v1380 = vshrl.u32 %v1366, 16
          %v1381 = vpack.i.b16 %v1380, %v1379
          %v1383 = vcombine.high %v1369, %v810
          %v1385 = vunpack.c.l.s4 1983009808
          %v1386 = vunpack.c.0.s8 %v1385
          %v1387 = vlaneseq
          %v1388 = vshrl.u32 %v1387, 7
          %v1389 = vsub.s32 %v1386, %v1388
          %v1390 = vrot.slane %v1369, %v1389
          %v1392 = vunpack.c.l.s4 1983009808
          %v1393 = vunpack.c.0.s8 %v1392
          %v1394 = vlaneseq
          %v1395 = vshrl.u32 %v1394, 7
          %v1396 = vsub.s32 %v1393, %v1395
          %v1397 = vrot.slane %v1383, %v1396
          %v1398 = vcombine.high %v1377, %v810
          %v1400 = vunpack.c.l.s4 1983009808
          %v1401 = vunpack.c.0.s8 %v1400
          %v1402 = vlaneseq
          %v1403 = vshrl.u32 %v1402, 7
          %v1404 = vsub.s32 %v1401, %v1403
          %v1405 = vrot.slane %v1377, %v1404
          %v1407 = vunpack.c.l.s4 1983009808
          %v1408 = vunpack.c.0.s8 %v1407
          %v1409 = vlaneseq
          %v1410 = vshrl.u32 %v1409, 7
          %v1411 = vsub.s32 %v1408, %v1410
          %v1412 = vrot.slane %v1398, %v1411
          %v1413 = vcombine.low %v1390, %v1405
          %v1414 = vcombine.high %v1390, %v1405
          %v1416 = vunpack.c.l.s4 1934713408
          %v1417 = vunpack.c.0.s8 %v1416
          %v1418 = vlaneseq
          %v1419 = vshrl.u32 %v1418, 7
          %v1420 = vsub.s32 %v1417, %v1419
          %v1421 = vrot.slane %v1413, %v1420
          %v1423 = vunpack.c.l.s4 1934713408
          %v1424 = vunpack.c.0.s8 %v1423
          %v1425 = vlaneseq
          %v1426 = vshrl.u32 %v1425, 7
          %v1427 = vsub.s32 %v1424, %v1426
          %v1428 = vrot.slane %v1414, %v1427
          %v1429 = vcombine.low %v1397, %v1412
          %v1430 = vcombine.high %v1397, %v1412
          %v1432 = vunpack.c.l.s4 1934713408
          %v1433 = vunpack.c.0.s8 %v1432
          %v1434 = vlaneseq
          %v1435 = vshrl.u32 %v1434, 7
          %v1436 = vsub.s32 %v1433, %v1435
          %v1437 = vrot.slane %v1429, %v1436
          %v1439 = vunpack.c.l.s4 1934713408
          %v1440 = vunpack.c.0.s8 %v1439
          %v1441 = vlaneseq
          %v1442 = vshrl.u32 %v1441, 7
          %v1443 = vsub.s32 %v1440, %v1442
          %v1444 = vrot.slane %v1430, %v1443
          %v1445 = vcombine.high %v1421, 0
          %v1446 = vcombine.high %v1428, 0
          %v1447 = vcombine.high %v1437, 0
          %v1448 = vcombine.high %v1444, 0
          %v1449 = vcombine.high %v1373, %v813
          %v1451 = vunpack.c.l.s4 1983009808
          %v1452 = vunpack.c.0.s8 %v1451
          %v1453 = vlaneseq
          %v1454 = vshrl.u32 %v1453, 7
          %v1455 = vsub.s32 %v1452, %v1454
          %v1456 = vrot.slane %v1373, %v1455
          %v1458 = vunpack.c.l.s4 1983009808
          %v1459 = vunpack.c.0.s8 %v1458
          %v1460 = vlaneseq
          %v1461 = vshrl.u32 %v1460, 7
          %v1462 = vsub.s32 %v1459, %v1461
          %v1463 = vrot.slane %v1449, %v1462
          %v1464 = vcombine.high %v1381, %v813
          %v1466 = vunpack.c.l.s4 1983009808
          %v1467 = vunpack.c.0.s8 %v1466
          %v1468 = vlaneseq
          %v1469 = vshrl.u32 %v1468, 7
          %v1470 = vsub.s32 %v1467, %v1469
          %v1471 = vrot.slane %v1381, %v1470
          %v1473 = vunpack.c.l.s4 1983009808
          %v1474 = vunpack.c.0.s8 %v1473
          %v1475 = vlaneseq
          %v1476 = vshrl.u32 %v1475, 7
          %v1477 = vsub.s32 %v1474, %v1476
          %v1478 = vrot.slane %v1464, %v1477
          %v1479 = vcombine.low %v1456, %v1471
          %v1480 = vcombine.high %v1456, %v1471
          %v1482 = vunpack.c.l.s4 1934713408
          %v1483 = vunpack.c.0.s8 %v1482
          %v1484 = vlaneseq
          %v1485 = vshrl.u32 %v1484, 7
          %v1486 = vsub.s32 %v1483, %v1485
          %v1487 = vrot.slane %v1479, %v1486
          %v1489 = vunpack.c.l.s4 1934713408
          %v1490 = vunpack.c.0.s8 %v1489
          %v1491 = vlaneseq
          %v1492 = vshrl.u32 %v1491, 7
          %v1493 = vsub.s32 %v1490, %v1492
          %v1494 = vrot.slane %v1480, %v1493
          %v1495 = vcombine.low %v1463, %v1478
          %v1496 = vcombine.high %v1463, %v1478
          %v1498 = vunpack.c.l.s4 1934713408
          %v1499 = vunpack.c.0.s8 %v1498
          %v1500 = vlaneseq
          %v1501 = vshrl.u32 %v1500, 7
          %v1502 = vsub.s32 %v1499, %v1501
          %v1503 = vrot.slane %v1495, %v1502
          %v1505 = vunpack.c.l.s4 1934713408
          %v1506 = vunpack.c.0.s8 %v1505
          %v1507 = vlaneseq
          %v1508 = vshrl.u32 %v1507, 7
          %v1509 = vsub.s32 %v1506, %v1508
          %v1510 = vrot.slane %v1496, %v1509
          %v1511 = vcombine.high %v1487, 0
          %v1512 = vcombine.high %v1494, 0
          %v1513 = vcombine.high %v1503, 0
          %v1514 = vcombine.high %v1510, 0
          %v1515 = vcombine.low %v1421, %v1428
          %v1517 = vunpack.c.l.s4 1983009808
          %v1518 = vunpack.c.0.s8 %v1517
          %v1519 = vlaneseq
          %v1520 = vshrl.u32 %v1519, 7
          %v1521 = vsub.s32 %v1518, %v1520
          %v1522 = vrot.slane %v1515, %v1521
          %v1523 = vcombine.low %v1445, %v1446
          %v1525 = vunpack.c.l.s4 1983009808
          %v1526 = vunpack.c.0.s8 %v1525
          %v1527 = vlaneseq
          %v1528 = vshrl.u32 %v1527, 7
          %v1529 = vsub.s32 %v1526, %v1528
          %v1530 = vrot.slane %v1523, %v1529
          %v1531 = vcombine.low %v1522, %v1530
          %v1533 = vunpack.c.l.s4 1934713408
          %v1534 = vunpack.c.0.s8 %v1533
          %v1535 = vlaneseq
          %v1536 = vshrl.u32 %v1535, 7
          %v1537 = vsub.s32 %v1534, %v1536
          %v1538 = vrot.slane %v1531, %v1537
          %v1539 = vcombine.high %v1538, 0
          %v1540 = vcombine.low %v1487, %v1494
          %v1542 = vunpack.c.l.s4 1983009808
          %v1543 = vunpack.c.0.s8 %v1542
          %v1544 = vlaneseq
          %v1545 = vshrl.u32 %v1544, 7
          %v1546 = vsub.s32 %v1543, %v1545
          %v1547 = vrot.slane %v1540, %v1546
          %v1548 = vcombine.low %v1511, %v1512
          %v1550 = vunpack.c.l.s4 1983009808
          %v1551 = vunpack.c.0.s8 %v1550
          %v1552 = vlaneseq
          %v1553 = vshrl.u32 %v1552, 7
          %v1554 = vsub.s32 %v1551, %v1553
          %v1555 = vrot.slane %v1548, %v1554
          %v1556 = vcombine.low %v1547, %v1555
          %v1558 = vunpack.c.l.s4 1934713408
          %v1559 = vunpack.c.0.s8 %v1558
          %v1560 = vlaneseq
          %v1561 = vshrl.u32 %v1560, 7
          %v1562 = vsub.s32 %v1559, %v1561
          %v1563 = vrot.slane %v1556, %v1562
          %v1564 = vcombine.high %v1563, 0
          %v1565 = vcombine.low %v1437, %v1444
          %v1567 = vunpack.c.l.s4 1983009808
          %v1568 = vunpack.c.0.s8 %v1567
          %v1569 = vlaneseq
          %v1570 = vshrl.u32 %v1569, 7
          %v1571 = vsub.s32 %v1568, %v1570
          %v1572 = vrot.slane %v1565, %v1571
          %v1573 = vcombine.low %v1447, %v1448
          %v1575 = vunpack.c.l.s4 1983009808
          %v1576 = vunpack.c.0.s8 %v1575
          %v1577 = vlaneseq
          %v1578 = vshrl.u32 %v1577, 7
          %v1579 = vsub.s32 %v1576, %v1578
          %v1580 = vrot.slane %v1573, %v1579
          %v1581 = vcombine.low %v1572, %v1580
          %v1583 = vunpack.c.l.s4 1934713408
          %v1584 = vunpack.c.0.s8 %v1583
          %v1585 = vlaneseq
          %v1586 = vshrl.u32 %v1585, 7
          %v1587 = vsub.s32 %v1584, %v1586
          %v1588 = vrot.slane %v1581, %v1587
          %v1589 = vcombine.high %v1588, 0
          %v1590 = vcombine.low %v1503, %v1510
          %v1592 = vunpack.c.l.s4 1983009808
          %v1593 = vunpack.c.0.s8 %v1592
          %v1594 = vlaneseq
          %v1595 = vshrl.u32 %v1594, 7
          %v1596 = vsub.s32 %v1593, %v1595
          %v1597 = vrot.slane %v1590, %v1596
          %v1598 = vcombine.low %v1513, %v1514
          %v1600 = vunpack.c.l.s4 1983009808
          %v1601 = vunpack.c.0.s8 %v1600
          %v1602 = vlaneseq
          %v1603 = vshrl.u32 %v1602, 7
          %v1604 = vsub.s32 %v1601, %v1603
          %v1605 = vrot.slane %v1598, %v1604
          %v1606 = vcombine.low %v1597, %v1605
          %v1608 = vunpack.c.l.s4 1934713408
          %v1609 = vunpack.c.0.s8 %v1608
          %v1610 = vlaneseq
          %v1611 = vshrl.u32 %v1610, 7
          %v1612 = vsub.s32 %v1609, %v1611
          %v1613 = vrot.slane %v1606, %v1612
          %v1614 = vcombine.high %v1613, 0
          %v1617 = vpack.i.b16 %v1563, %v1538
          %v1618 = vshrl.u32 %v1538, 16
          %v1619 = vshrl.u32 %v1563, 16
          %v1620 = vpack.i.b16 %v1619, %v1618
          %v1623 = vpack.i.b16 %v1564, %v1539
          %v1624 = vshrl.u32 %v1539, 16
          %v1625 = vshrl.u32 %v1564, 16
          %v1626 = vpack.i.b16 %v1625, %v1624
          %v1629 = vpack.i.b16 %v1613, %v1588
          %v1630 = vshrl.u32 %v1588, 16
          %v1631 = vshrl.u32 %v1613, 16
          %v1632 = vpack.i.b16 %v1631, %v1630
          %v1635 = vpack.i.b16 %v1614, %v1589
          %v1636 = vshrl.u32 %v1589, 16
          %v1637 = vshrl.u32 %v1614, 16
          %v1638 = vpack.i.b16 %v1637, %v1636
          %vm1639 = vcmask 64512
          %v1641 = vsel %vm1639, %v1049, 0
          %v1644 = vsel %vm1639, %v1337, 0
          %1646 = vmatprep.subr.bf16.mxu0 0
          %1647 = vmatpush1.bf16.xpose.msra.mxu0 %v1644
          %1648 = vmatprep.subr.bf16.mxu0 0
          %1649 = vmatpush1.bf16.xpose.msra.mxu0 0
          %1650 = vmatprep.subr.bf16.mxu0 0
          %1651 = vmatpush1.bf16.xpose.msra.mxu0 0
          %1652 = vmatprep.subr.bf16.mxu0 0
          %1653 = vmatpush1.bf16.xpose.msra.mxu0 0
          %1654 = vmatprep.subr.bf16.mxu0 0
          %1655 = vmatpush1.bf16.xpose.msra.mxu0 0
          %1656 = vmatprep.subr.bf16.mxu0 0
          %1657 = vmatpush1.bf16.xpose.msra.mxu0 0
          %1658 = vmatprep.subr.bf16.mxu0 0
          %1659 = vmatpush1.bf16.xpose.msra.mxu0 0
          %1660 = vmatprep.subr.bf16.mxu0 0
          %1661 = vmatpush1.bf16.xpose.msra.mxu0 0
          %1662 = vmatprep.subr.bf16.mxu0 0
          %1663 = vmatpush1.bf16.xpose.msra.mxu0 0
          %1664 = vmatprep.subr.bf16.mxu0 0
          %1665 = vmatpush1.bf16.xpose.msra.mxu0 0
          %1666 = vmatprep.subr.bf16.mxu0 0
          %1667 = vmatpush1.bf16.xpose.msra.mxu0 0
          %1668 = vmatprep.subr.bf16.mxu0 0
          %1669 = vmatpush1.bf16.xpose.msra.mxu0 0
          %1670 = vmatprep.subr.bf16.mxu0 0
          %1671 = vmatpush1.bf16.xpose.msra.mxu0 0
          %1672 = vmatprep.subr.bf16.mxu0 0
          %1673 = vmatpush1.bf16.xpose.msra.mxu0 0
          %1674 = vmatprep.subr.bf16.mxu0 0
          %1675 = vmatpush1.bf16.xpose.msra.mxu0 0
          %1676 = vmatprep.subr.bf16.mxu0 0
          %1677 = vmatpush1.bf16.xpose.msra.mxu0 0
          %1678 = vmatprep.mubr.bf16.mxu0 0
          %1679 = vmatmul.mubr.bf16.gmra.mrb[0].mxu0 %v1641
          %v1680 = vpop.f32.mrb[0].mxu0
          %v1681 = vadd.f32 0.0, %v1680
          %v1682 = vpop.f32.mrb[0].mxu0
          %v1683 = vpop.f32.mrb[0].mxu0
          %v1684 = vpop.f32.mrb[0].mxu0
          %1685 = vdwg.mxu0
          %v1687 = vsel %vm1639, %v1052, 0
          %v1690 = vsel %vm1639, %v1340, 0
          %1692 = vmatprep.subr.bf16.mxu0 0
          %1693 = vmatpush1.bf16.xpose.msra.mxu0 %v1690
          %1694 = vmatprep.subr.bf16.mxu0 0
          %1695 = vmatpush1.bf16.xpose.msra.mxu0 0
          %1696 = vmatprep.subr.bf16.mxu0 0
          %1697 = vmatpush1.bf16.xpose.msra.mxu0 0
          %1698 = vmatprep.subr.bf16.mxu0 0
          %1699 = vmatpush1.bf16.xpose.msra.mxu0 0
          %1700 = vmatprep.subr.bf16.mxu0 0
          %1701 = vmatpush1.bf16.xpose.msra.mxu0 0
          %1702 = vmatprep.subr.bf16.mxu0 0
          %1703 = vmatpush1.bf16.xpose.msra.mxu0 0
          %1704 = vmatprep.subr.bf16.mxu0 0
          %1705 = vmatpush1.bf16.xpose.msra.mxu0 0
          %1706 = vmatprep.subr.bf16.mxu0 0
          %1707 = vmatpush1.bf16.xpose.msra.mxu0 0
          %1708 = vmatprep.subr.bf16.mxu0 0
          %1709 = vmatpush1.bf16.xpose.msra.mxu0 0
          %1710 = vmatprep.subr.bf16.mxu0 0
          %1711 = vmatpush1.bf16.xpose.msra.mxu0 0
          %1712 = vmatprep.subr.bf16.mxu0 0
          %1713 = vmatpush1.bf16.xpose.msra.mxu0 0
          %1714 = vmatprep.subr.bf16.mxu0 0
          %1715 = vmatpush1.bf16.xpose.msra.mxu0 0
          %1716 = vmatprep.subr.bf16.mxu0 0
          %1717 = vmatpush1.bf16.xpose.msra.mxu0 0
          %1718 = vmatprep.subr.bf16.mxu0 0
          %1719 = vmatpush1.bf16.xpose.msra.mxu0 0
          %1720 = vmatprep.subr.bf16.mxu0 0
          %1721 = vmatpush1.bf16.xpose.msra.mxu0 0
          %1722 = vmatprep.subr.bf16.mxu0 0
          %1723 = vmatpush1.bf16.xpose.msra.mxu0 0
          %1724 = vmatprep.mubr.bf16.mxu0 0
          %1725 = vmatmul.mubr.bf16.gmra.mrb[0].mxu0 %v1687
          %v1726 = vpop.f32.mrb[0].mxu0
          %v1727 = vadd.f32 0.0, %v1726
          %v1728 = vpop.f32.mrb[0].mxu0
          %v1729 = vpop.f32.mrb[0].mxu0
          %v1730 = vpop.f32.mrb[0].mxu0
          %1731 = vdwg.mxu0
          %v1733 = vsel %vm1639, %v1055, 0
          %v1736 = vsel %vm1639, %v1343, 0
          %1738 = vmatprep.subr.bf16.mxu0 0
          %1739 = vmatpush1.bf16.xpose.msra.mxu0 %v1736
          %1740 = vmatprep.subr.bf16.mxu0 0
          %1741 = vmatpush1.bf16.xpose.msra.mxu0 0
          %1742 = vmatprep.subr.bf16.mxu0 0
          %1743 = vmatpush1.bf16.xpose.msra.mxu0 0
          %1744 = vmatprep.subr.bf16.mxu0 0
          %1745 = vmatpush1.bf16.xpose.msra.mxu0 0
          %1746 = vmatprep.subr.bf16.mxu0 0
          %1747 = vmatpush1.bf16.xpose.msra.mxu0 0
          %1748 = vmatprep.subr.bf16.mxu0 0
          %1749 = vmatpush1.bf16.xpose.msra.mxu0 0
          %1750 = vmatprep.subr.bf16.mxu0 0
          %1751 = vmatpush1.bf16.xpose.msra.mxu0 0
          %1752 = vmatprep.subr.bf16.mxu0 0
          %1753 = vmatpush1.bf16.xpose.msra.mxu0 0
          %1754 = vmatprep.subr.bf16.mxu0 0
          %1755 = vmatpush1.bf16.xpose.msra.mxu0 0
          %1756 = vmatprep.subr.bf16.mxu0 0
          %1757 = vmatpush1.bf16.xpose.msra.mxu0 0
          %1758 = vmatprep.subr.bf16.mxu0 0
          %1759 = vmatpush1.bf16.xpose.msra.mxu0 0
          %1760 = vmatprep.subr.bf16.mxu0 0
          %1761 = vmatpush1.bf16.xpose.msra.mxu0 0
          %1762 = vmatprep.subr.bf16.mxu0 0
          %1763 = vmatpush1.bf16.xpose.msra.mxu0 0
          %1764 = vmatprep.subr.bf16.mxu0 0
          %1765 = vmatpush1.bf16.xpose.msra.mxu0 0
          %1766 = vmatprep.subr.bf16.mxu0 0
          %1767 = vmatpush1.bf16.xpose.msra.mxu0 0
          %1768 = vmatprep.subr.bf16.mxu0 0
          %1769 = vmatpush1.bf16.xpose.msra.mxu0 0
          %1770 = vmatprep.mubr.bf16.mxu0 0
          %1771 = vmatmul.mubr.bf16.gmra.mrb[0].mxu0 %v1733
          %v1772 = vpop.f32.mrb[0].mxu0
          %v1773 = vadd.f32 0.0, %v1772
          %v1774 = vpop.f32.mrb[0].mxu0
          %v1775 = vpop.f32.mrb[0].mxu0
          %v1776 = vpop.f32.mrb[0].mxu0
          %1777 = vdwg.mxu0
          %v1779 = vsel %vm1639, %v1058, 0
          %v1782 = vsel %vm1639, %v1346, 0
          %1784 = vmatprep.subr.bf16.mxu0 0
          %1785 = vmatpush1.bf16.xpose.msra.mxu0 %v1782
          %1786 = vmatprep.subr.bf16.mxu0 0
          %1787 = vmatpush1.bf16.xpose.msra.mxu0 0
          %1788 = vmatprep.subr.bf16.mxu0 0
          %1789 = vmatpush1.bf16.xpose.msra.mxu0 0
          %1790 = vmatprep.subr.bf16.mxu0 0
          %1791 = vmatpush1.bf16.xpose.msra.mxu0 0
          %1792 = vmatprep.subr.bf16.mxu0 0
          %1793 = vmatpush1.bf16.xpose.msra.mxu0 0
          %1794 = vmatprep.subr.bf16.mxu0 0
          %1795 = vmatpush1.bf16.xpose.msra.mxu0 0
          %1796 = vmatprep.subr.bf16.mxu0 0
          %1797 = vmatpush1.bf16.xpose.msra.mxu0 0
          %1798 = vmatprep.subr.bf16.mxu0 0
          %1799 = vmatpush1.bf16.xpose.msra.mxu0 0
          %1800 = vmatprep.subr.bf16.mxu0 0
          %1801 = vmatpush1.bf16.xpose.msra.mxu0 0
          %1802 = vmatprep.subr.bf16.mxu0 0
          %1803 = vmatpush1.bf16.xpose.msra.mxu0 0
          %1804 = vmatprep.subr.bf16.mxu0 0
          %1805 = vmatpush1.bf16.xpose.msra.mxu0 0
          %1806 = vmatprep.subr.bf16.mxu0 0
          %1807 = vmatpush1.bf16.xpose.msra.mxu0 0
          %1808 = vmatprep.subr.bf16.mxu0 0
          %1809 = vmatpush1.bf16.xpose.msra.mxu0 0
          %1810 = vmatprep.subr.bf16.mxu0 0
          %1811 = vmatpush1.bf16.xpose.msra.mxu0 0
          %1812 = vmatprep.subr.bf16.mxu0 0
          %1813 = vmatpush1.bf16.xpose.msra.mxu0 0
          %1814 = vmatprep.subr.bf16.mxu0 0
          %1815 = vmatpush1.bf16.xpose.msra.mxu0 0
          %1816 = vmatprep.mubr.bf16.mxu0 0
          %1817 = vmatmul.mubr.bf16.gmra.mrb[0].mxu0 %v1779
          %v1818 = vpop.f32.mrb[0].mxu0
          %v1819 = vadd.f32 0.0, %v1818
          %v1820 = vpop.f32.mrb[0].mxu0
          %v1821 = vpop.f32.mrb[0].mxu0
          %v1822 = vpop.f32.mrb[0].mxu0
          %1823 = vdwg.mxu0
          %v1825 = vsel %vm1639, %v1061, 0
          %v1828 = vsel %vm1639, %v1349, 0
          %1830 = vmatprep.subr.bf16.mxu0 0
          %1831 = vmatpush1.bf16.xpose.msra.mxu0 %v1828
          %1832 = vmatprep.subr.bf16.mxu0 0
          %1833 = vmatpush1.bf16.xpose.msra.mxu0 0
          %1834 = vmatprep.subr.bf16.mxu0 0
          %1835 = vmatpush1.bf16.xpose.msra.mxu0 0
          %1836 = vmatprep.subr.bf16.mxu0 0
          %1837 = vmatpush1.bf16.xpose.msra.mxu0 0
          %1838 = vmatprep.subr.bf16.mxu0 0
          %1839 = vmatpush1.bf16.xpose.msra.mxu0 0
          %1840 = vmatprep.subr.bf16.mxu0 0
          %1841 = vmatpush1.bf16.xpose.msra.mxu0 0
          %1842 = vmatprep.subr.bf16.mxu0 0
          %1843 = vmatpush1.bf16.xpose.msra.mxu0 0
          %1844 = vmatprep.subr.bf16.mxu0 0
          %1845 = vmatpush1.bf16.xpose.msra.mxu0 0
          %1846 = vmatprep.subr.bf16.mxu0 0
          %1847 = vmatpush1.bf16.xpose.msra.mxu0 0
          %1848 = vmatprep.subr.bf16.mxu0 0
          %1849 = vmatpush1.bf16.xpose.msra.mxu0 0
          %1850 = vmatprep.subr.bf16.mxu0 0
          %1851 = vmatpush1.bf16.xpose.msra.mxu0 0
          %1852 = vmatprep.subr.bf16.mxu0 0
          %1853 = vmatpush1.bf16.xpose.msra.mxu0 0
          %1854 = vmatprep.subr.bf16.mxu0 0
          %1855 = vmatpush1.bf16.xpose.msra.mxu0 0
          %1856 = vmatprep.subr.bf16.mxu0 0
          %1857 = vmatpush1.bf16.xpose.msra.mxu0 0
          %1858 = vmatprep.subr.bf16.mxu0 0
          %1859 = vmatpush1.bf16.xpose.msra.mxu0 0
          %1860 = vmatprep.subr.bf16.mxu0 0
          %1861 = vmatpush1.bf16.xpose.msra.mxu0 0
          %1862 = vmatprep.mubr.bf16.mxu0 0
          %1863 = vmatmul.mubr.bf16.gmra.mrb[0].mxu0 %v1825
          %v1864 = vpop.f32.mrb[0].mxu0
          %v1865 = vadd.f32 0.0, %v1864
          %v1866 = vpop.f32.mrb[0].mxu0
          %v1867 = vpop.f32.mrb[0].mxu0
          %v1868 = vpop.f32.mrb[0].mxu0
          %1869 = vdwg.mxu0
          %v1871 = vsel %vm1639, %v1064, 0
          %v1874 = vsel %vm1639, %v1352, 0
          %1876 = vmatprep.subr.bf16.mxu0 0
          %1877 = vmatpush1.bf16.xpose.msra.mxu0 %v1874
          %1878 = vmatprep.subr.bf16.mxu0 0
          %1879 = vmatpush1.bf16.xpose.msra.mxu0 0
          %1880 = vmatprep.subr.bf16.mxu0 0
          %1881 = vmatpush1.bf16.xpose.msra.mxu0 0
          %1882 = vmatprep.subr.bf16.mxu0 0
          %1883 = vmatpush1.bf16.xpose.msra.mxu0 0
          %1884 = vmatprep.subr.bf16.mxu0 0
          %1885 = vmatpush1.bf16.xpose.msra.mxu0 0
          %1886 = vmatprep.subr.bf16.mxu0 0
          %1887 = vmatpush1.bf16.xpose.msra.mxu0 0
          %1888 = vmatprep.subr.bf16.mxu0 0
          %1889 = vmatpush1.bf16.xpose.msra.mxu0 0
          %1890 = vmatprep.subr.bf16.mxu0 0
          %1891 = vmatpush1.bf16.xpose.msra.mxu0 0
          %1892 = vmatprep.subr.bf16.mxu0 0
          %1893 = vmatpush1.bf16.xpose.msra.mxu0 0
          %1894 = vmatprep.subr.bf16.mxu0 0
          %1895 = vmatpush1.bf16.xpose.msra.mxu0 0
          %1896 = vmatprep.subr.bf16.mxu0 0
          %1897 = vmatpush1.bf16.xpose.msra.mxu0 0
          %1898 = vmatprep.subr.bf16.mxu0 0
          %1899 = vmatpush1.bf16.xpose.msra.mxu0 0
          %1900 = vmatprep.subr.bf16.mxu0 0
          %1901 = vmatpush1.bf16.xpose.msra.mxu0 0
          %1902 = vmatprep.subr.bf16.mxu0 0
          %1903 = vmatpush1.bf16.xpose.msra.mxu0 0
          %1904 = vmatprep.subr.bf16.mxu0 0
          %1905 = vmatpush1.bf16.xpose.msra.mxu0 0
          %1906 = vmatprep.subr.bf16.mxu0 0
          %1907 = vmatpush1.bf16.xpose.msra.mxu0 0
          %1908 = vmatprep.mubr.bf16.mxu0 0
          %1909 = vmatmul.mubr.bf16.gmra.mrb[0].mxu0 %v1871
          %v1910 = vpop.f32.mrb[0].mxu0
          %v1911 = vadd.f32 0.0, %v1910
          %v1912 = vpop.f32.mrb[0].mxu0
          %v1913 = vpop.f32.mrb[0].mxu0
          %v1914 = vpop.f32.mrb[0].mxu0
          %1915 = vdwg.mxu0
          %v1917 = vsel %vm1639, %v1067, 0
          %v1920 = vsel %vm1639, %v1355, 0
          %1922 = vmatprep.subr.bf16.mxu0 0
          %1923 = vmatpush1.bf16.xpose.msra.mxu0 %v1920
          %1924 = vmatprep.subr.bf16.mxu0 0
          %1925 = vmatpush1.bf16.xpose.msra.mxu0 0
          %1926 = vmatprep.subr.bf16.mxu0 0
          %1927 = vmatpush1.bf16.xpose.msra.mxu0 0
          %1928 = vmatprep.subr.bf16.mxu0 0
          %1929 = vmatpush1.bf16.xpose.msra.mxu0 0
          %1930 = vmatprep.subr.bf16.mxu0 0
          %1931 = vmatpush1.bf16.xpose.msra.mxu0 0
          %1932 = vmatprep.subr.bf16.mxu0 0
          %1933 = vmatpush1.bf16.xpose.msra.mxu0 0
          %1934 = vmatprep.subr.bf16.mxu0 0
          %1935 = vmatpush1.bf16.xpose.msra.mxu0 0
          %1936 = vmatprep.subr.bf16.mxu0 0
          %1937 = vmatpush1.bf16.xpose.msra.mxu0 0
          %1938 = vmatprep.subr.bf16.mxu0 0
          %1939 = vmatpush1.bf16.xpose.msra.mxu0 0
          %1940 = vmatprep.subr.bf16.mxu0 0
          %1941 = vmatpush1.bf16.xpose.msra.mxu0 0
          %1942 = vmatprep.subr.bf16.mxu0 0
          %1943 = vmatpush1.bf16.xpose.msra.mxu0 0
          %1944 = vmatprep.subr.bf16.mxu0 0
          %1945 = vmatpush1.bf16.xpose.msra.mxu0 0
          %1946 = vmatprep.subr.bf16.mxu0 0
          %1947 = vmatpush1.bf16.xpose.msra.mxu0 0
          %1948 = vmatprep.subr.bf16.mxu0 0
          %1949 = vmatpush1.bf16.xpose.msra.mxu0 0
          %1950 = vmatprep.subr.bf16.mxu0 0
          %1951 = vmatpush1.bf16.xpose.msra.mxu0 0
          %1952 = vmatprep.subr.bf16.mxu0 0
          %1953 = vmatpush1.bf16.xpose.msra.mxu0 0
          %1954 = vmatprep.mubr.bf16.mxu0 0
          %1955 = vmatmul.mubr.bf16.gmra.mrb[0].mxu0 %v1917
          %v1956 = vpop.f32.mrb[0].mxu0
          %v1957 = vadd.f32 0.0, %v1956
          %v1958 = vpop.f32.mrb[0].mxu0
          %v1959 = vpop.f32.mrb[0].mxu0
          %v1960 = vpop.f32.mrb[0].mxu0
          %1961 = vdwg.mxu0
          %v1963 = vsel %vm1639, %v1070, 0
          %v1966 = vsel %vm1639, %v1358, 0
          %1968 = vmatprep.subr.bf16.mxu0 0
          %1969 = vmatpush1.bf16.xpose.msra.mxu0 %v1966
          %1970 = vmatprep.subr.bf16.mxu0 0
          %1971 = vmatpush1.bf16.xpose.msra.mxu0 0
          %1972 = vmatprep.subr.bf16.mxu0 0
          %1973 = vmatpush1.bf16.xpose.msra.mxu0 0
          %1974 = vmatprep.subr.bf16.mxu0 0
          %1975 = vmatpush1.bf16.xpose.msra.mxu0 0
          %1976 = vmatprep.subr.bf16.mxu0 0
          %1977 = vmatpush1.bf16.xpose.msra.mxu0 0
          %1978 = vmatprep.subr.bf16.mxu0 0
          %1979 = vmatpush1.bf16.xpose.msra.mxu0 0
          %1980 = vmatprep.subr.bf16.mxu0 0
          %1981 = vmatpush1.bf16.xpose.msra.mxu0 0
          %1982 = vmatprep.subr.bf16.mxu0 0
          %1983 = vmatpush1.bf16.xpose.msra.mxu0 0
          %1984 = vmatprep.subr.bf16.mxu0 0
          %1985 = vmatpush1.bf16.xpose.msra.mxu0 0
          %1986 = vmatprep.subr.bf16.mxu0 0
          %1987 = vmatpush1.bf16.xpose.msra.mxu0 0
          %1988 = vmatprep.subr.bf16.mxu0 0
          %1989 = vmatpush1.bf16.xpose.msra.mxu0 0
          %1990 = vmatprep.subr.bf16.mxu0 0
          %1991 = vmatpush1.bf16.xpose.msra.mxu0 0
          %1992 = vmatprep.subr.bf16.mxu0 0
          %1993 = vmatpush1.bf16.xpose.msra.mxu0 0
          %1994 = vmatprep.subr.bf16.mxu0 0
          %1995 = vmatpush1.bf16.xpose.msra.mxu0 0
          %1996 = vmatprep.subr.bf16.mxu0 0
          %1997 = vmatpush1.bf16.xpose.msra.mxu0 0
          %1998 = vmatprep.subr.bf16.mxu0 0
          %1999 = vmatpush1.bf16.xpose.msra.mxu0 0
          %2000 = vmatprep.mubr.bf16.mxu0 0
          %2001 = vmatmul.mubr.bf16.gmra.mrb[0].mxu0 %v1963
          %v2002 = vpop.f32.mrb[0].mxu0
          %v2003 = vadd.f32 0.0, %v2002
          %v2004 = vpop.f32.mrb[0].mxu0
          %v2005 = vpop.f32.mrb[0].mxu0
          %v2006 = vpop.f32.mrb[0].mxu0
          %2007 = vdwg.mxu0
          %v2008 = vsel %vm1639, %v1681, -inf
          %2009 = vmax.xlane.f32.xlu0 %v2008
          %v2010 = vpop.xlane.xlu0 %2009
          %v2011 = vsel %vm1639, %v1727, -inf
          %2012 = vmax.xlane.f32.xlu0 %v2011
          %v2013 = vpop.xlane.xlu0 %2012
          %v2014 = vsel %vm1639, %v1773, -inf
          %2015 = vmax.xlane.f32.xlu0 %v2014
          %v2016 = vpop.xlane.xlu0 %2015
          %v2017 = vsel %vm1639, %v1819, -inf
          %2018 = vmax.xlane.f32.xlu0 %v2017
          %v2019 = vpop.xlane.xlu0 %2018
          %v2020 = vsel %vm1639, %v1865, -inf
          %2021 = vmax.xlane.f32.xlu0 %v2020
          %v2022 = vpop.xlane.xlu0 %2021
          %v2023 = vsel %vm1639, %v1911, -inf
          %2024 = vmax.xlane.f32.xlu0 %v2023
          %v2025 = vpop.xlane.xlu0 %2024
          %v2026 = vsel %vm1639, %v1957, -inf
          %2027 = vmax.xlane.f32.xlu0 %v2026
          %v2028 = vpop.xlane.xlu0 %2027
          %v2029 = vsel %vm1639, %v2003, -inf
          %2030 = vmax.xlane.f32.xlu0 %v2029
          %v2031 = vpop.xlane.xlu0 %2030
          %v2032 = vsub.f32 %v1681, %v2010
          %v2033 = vsub.f32 %v1727, %v2013
          %v2034 = vsub.f32 %v1773, %v2016
          %v2035 = vsub.f32 %v1819, %v2019
          %v2036 = vsub.f32 %v1865, %v2022
          %v2037 = vsub.f32 %v1911, %v2025
          %v2038 = vsub.f32 %v1957, %v2028
          %v2039 = vsub.f32 %v2003, %v2031
          %v2040 = vmul.f32 %v2032, 1.442695
          %v2041 = vpow.pop %v2040
          %v2042 = vmul.f32 %v2033, 1.442695
          %v2043 = vpow.pop %v2042
          %v2044 = vmul.f32 %v2034, 1.442695
          %v2045 = vpow.pop %v2044
          %v2046 = vmul.f32 %v2035, 1.442695
          %v2047 = vpow.pop %v2046
          %v2048 = vmul.f32 %v2036, 1.442695
          %v2049 = vpow.pop %v2048
          %v2050 = vmul.f32 %v2037, 1.442695
          %v2051 = vpow.pop %v2050
          %v2052 = vmul.f32 %v2038, 1.442695
          %v2053 = vpow.pop %v2052
          %v2054 = vmul.f32 %v2039, 1.442695
          %v2055 = vpow.pop %v2054
          %v2056 = vsel %vm1639, %v2041, 0.0
          %2057 = vadd.xlane.f32.xlu0 %v2056
          %v2058 = vpop.xlane.xlu0 %2057
          %v2059 = vsel %vm1639, %v2043, 0.0
          %2060 = vadd.xlane.f32.xlu0 %v2059
          %v2061 = vpop.xlane.xlu0 %2060
          %v2062 = vsel %vm1639, %v2045, 0.0
          %2063 = vadd.xlane.f32.xlu0 %v2062
          %v2064 = vpop.xlane.xlu0 %2063
          %v2065 = vsel %vm1639, %v2047, 0.0
          %2066 = vadd.xlane.f32.xlu0 %v2065
          %v2067 = vpop.xlane.xlu0 %2066
          %v2068 = vsel %vm1639, %v2049, 0.0
          %2069 = vadd.xlane.f32.xlu0 %v2068
          %v2070 = vpop.xlane.xlu0 %2069
          %v2071 = vsel %vm1639, %v2051, 0.0
          %2072 = vadd.xlane.f32.xlu0 %v2071
          %v2073 = vpop.xlane.xlu0 %2072
          %v2074 = vsel %vm1639, %v2053, 0.0
          %2075 = vadd.xlane.f32.xlu0 %v2074
          %v2076 = vpop.xlane.xlu0 %2075
          %v2077 = vsel %vm1639, %v2055, 0.0
          %2078 = vadd.xlane.f32.xlu0 %v2077
          %v2079 = vpop.xlane.xlu0 %2078
          %v2080 = vrcp.pop %v2058
          %v2081 = vrcp.pop %v2061
          %v2082 = vrcp.pop %v2064
          %v2083 = vrcp.pop %v2067
          %v2084 = vrcp.pop %v2070
          %v2085 = vrcp.pop %v2073
          %v2086 = vrcp.pop %v2076
          %v2087 = vrcp.pop %v2079
          %v2088 = vmul.f32 %v2041, %v2080
          %v2089 = vmul.f32 %v2043, %v2081
          %v2090 = vmul.f32 %v2045, %v2082
          %v2091 = vmul.f32 %v2047, %v2083
          %v2092 = vmul.f32 %v2049, %v2084
          %v2093 = vmul.f32 %v2051, %v2085
          %v2094 = vmul.f32 %v2053, %v2086
          %v2095 = vmul.f32 %v2055, %v2087
          %v2096 = vpack.c.bf16 %v2088, %v2088
          %v2097 = vpack.c.bf16 %v2089, %v2089
          %v2098 = vpack.c.bf16 %v2090, %v2090
          %v2099 = vpack.c.bf16 %v2091, %v2091
          %v2100 = vpack.c.bf16 %v2092, %v2092
          %v2101 = vpack.c.bf16 %v2093, %v2093
          %v2102 = vpack.c.bf16 %v2094, %v2094
          %v2103 = vpack.c.bf16 %v2095, %v2095
          %v2105 = vsel %vm1639, %v2096, 0
          %vm2107 = vcmask 1043456
          %v2109 = vsel %vm2107, %v1617, 0
          %2111 = vmatprep.subr.bf16.mxu0 0
          %2112 = vmatpush1.bf16.msra.mxu0 %v2109
          %2113 = vmatprep.subr.bf16.mxu0 0
          %2114 = vmatpush1.bf16.msra.mxu0 0
          %2115 = vmatprep.subr.bf16.mxu0 0
          %2116 = vmatpush1.bf16.msra.mxu0 0
          %2117 = vmatprep.subr.bf16.mxu0 0
          %2118 = vmatpush1.bf16.msra.mxu0 0
          %2119 = vmatprep.subr.bf16.mxu0 0
          %2120 = vmatpush1.bf16.msra.mxu0 0
          %2121 = vmatprep.subr.bf16.mxu0 0
          %2122 = vmatpush1.bf16.msra.mxu0 0
          %2123 = vmatprep.subr.bf16.mxu0 0
          %2124 = vmatpush1.bf16.msra.mxu0 0
          %2125 = vmatprep.subr.bf16.mxu0 0
          %2126 = vmatpush1.bf16.msra.mxu0 0
          %2127 = vmatprep.subr.bf16.mxu0 0
          %2128 = vmatpush1.bf16.msra.mxu0 0
          %2129 = vmatprep.subr.bf16.mxu0 0
          %2130 = vmatpush1.bf16.msra.mxu0 0
          %2131 = vmatprep.subr.bf16.mxu0 0
          %2132 = vmatpush1.bf16.msra.mxu0 0
          %2133 = vmatprep.subr.bf16.mxu0 0
          %2134 = vmatpush1.bf16.msra.mxu0 0
          %2135 = vmatprep.subr.bf16.mxu0 0
          %2136 = vmatpush1.bf16.msra.mxu0 0
          %2137 = vmatprep.subr.bf16.mxu0 0
          %2138 = vmatpush1.bf16.msra.mxu0 0
          %2139 = vmatprep.subr.bf16.mxu0 0
          %2140 = vmatpush1.bf16.msra.mxu0 0
          %2141 = vmatprep.subr.bf16.mxu0 0
          %2142 = vmatpush1.bf16.msra.mxu0 0
          %2143 = vmatprep.mubr.bf16.mxu0 0
          %2144 = vmatmul.mubr.bf16.gmra.mrb[0].mxu0 %v2105
          %v2145 = vpop.f32.mrb[0].mxu0
          %v2146 = vadd.f32 0.0, %v2145
          %v2147 = vpop.f32.mrb[0].mxu0
          %v2148 = vpop.f32.mrb[0].mxu0
          %v2149 = vpop.f32.mrb[0].mxu0
          %2150 = vdwg.mxu0
          %v2152 = vsel %vm1639, %v2097, 0
          %v2155 = vsel %vm2107, %v1620, 0
          %2157 = vmatprep.subr.bf16.mxu0 0
          %2158 = vmatpush1.bf16.msra.mxu0 %v2155
          %2159 = vmatprep.subr.bf16.mxu0 0
          %2160 = vmatpush1.bf16.msra.mxu0 0
          %2161 = vmatprep.subr.bf16.mxu0 0
          %2162 = vmatpush1.bf16.msra.mxu0 0
          %2163 = vmatprep.subr.bf16.mxu0 0
          %2164 = vmatpush1.bf16.msra.mxu0 0
          %2165 = vmatprep.subr.bf16.mxu0 0
          %2166 = vmatpush1.bf16.msra.mxu0 0
          %2167 = vmatprep.subr.bf16.mxu0 0
          %2168 = vmatpush1.bf16.msra.mxu0 0
          %2169 = vmatprep.subr.bf16.mxu0 0
          %2170 = vmatpush1.bf16.msra.mxu0 0
          %2171 = vmatprep.subr.bf16.mxu0 0
          %2172 = vmatpush1.bf16.msra.mxu0 0
          %2173 = vmatprep.subr.bf16.mxu0 0
          %2174 = vmatpush1.bf16.msra.mxu0 0
          %2175 = vmatprep.subr.bf16.mxu0 0
          %2176 = vmatpush1.bf16.msra.mxu0 0
          %2177 = vmatprep.subr.bf16.mxu0 0
          %2178 = vmatpush1.bf16.msra.mxu0 0
          %2179 = vmatprep.subr.bf16.mxu0 0
          %2180 = vmatpush1.bf16.msra.mxu0 0
          %2181 = vmatprep.subr.bf16.mxu0 0
          %2182 = vmatpush1.bf16.msra.mxu0 0
          %2183 = vmatprep.subr.bf16.mxu0 0
          %2184 = vmatpush1.bf16.msra.mxu0 0
          %2185 = vmatprep.subr.bf16.mxu0 0
          %2186 = vmatpush1.bf16.msra.mxu0 0
          %2187 = vmatprep.subr.bf16.mxu0 0
          %2188 = vmatpush1.bf16.msra.mxu0 0
          %2189 = vmatprep.mubr.bf16.mxu0 0
          %2190 = vmatmul.mubr.bf16.gmra.mrb[0].mxu0 %v2152
          %v2191 = vpop.f32.mrb[0].mxu0
          %v2192 = vadd.f32 0.0, %v2191
          %v2193 = vpop.f32.mrb[0].mxu0
          %v2194 = vpop.f32.mrb[0].mxu0
          %v2195 = vpop.f32.mrb[0].mxu0
          %2196 = vdwg.mxu0
          %v2198 = vsel %vm1639, %v2098, 0
          %v2201 = vsel %vm2107, %v1623, 0
          %2203 = vmatprep.subr.bf16.mxu0 0
          %2204 = vmatpush1.bf16.msra.mxu0 %v2201
          %2205 = vmatprep.subr.bf16.mxu0 0
          %2206 = vmatpush1.bf16.msra.mxu0 0
          %2207 = vmatprep.subr.bf16.mxu0 0
          %2208 = vmatpush1.bf16.msra.mxu0 0
          %2209 = vmatprep.subr.bf16.mxu0 0
          %2210 = vmatpush1.bf16.msra.mxu0 0
          %2211 = vmatprep.subr.bf16.mxu0 0
          %2212 = vmatpush1.bf16.msra.mxu0 0
          %2213 = vmatprep.subr.bf16.mxu0 0
          %2214 = vmatpush1.bf16.msra.mxu0 0
          %2215 = vmatprep.subr.bf16.mxu0 0
          %2216 = vmatpush1.bf16.msra.mxu0 0
          %2217 = vmatprep.subr.bf16.mxu0 0
          %2218 = vmatpush1.bf16.msra.mxu0 0
          %2219 = vmatprep.subr.bf16.mxu0 0
          %2220 = vmatpush1.bf16.msra.mxu0 0
          %2221 = vmatprep.subr.bf16.mxu0 0
          %2222 = vmatpush1.bf16.msra.mxu0 0
          %2223 = vmatprep.subr.bf16.mxu0 0
          %2224 = vmatpush1.bf16.msra.mxu0 0
          %2225 = vmatprep.subr.bf16.mxu0 0
          %2226 = vmatpush1.bf16.msra.mxu0 0
          %2227 = vmatprep.subr.bf16.mxu0 0
          %2228 = vmatpush1.bf16.msra.mxu0 0
          %2229 = vmatprep.subr.bf16.mxu0 0
          %2230 = vmatpush1.bf16.msra.mxu0 0
          %2231 = vmatprep.subr.bf16.mxu0 0
          %2232 = vmatpush1.bf16.msra.mxu0 0
          %2233 = vmatprep.subr.bf16.mxu0 0
          %2234 = vmatpush1.bf16.msra.mxu0 0
          %2235 = vmatprep.mubr.bf16.mxu0 0
          %2236 = vmatmul.mubr.bf16.gmra.mrb[0].mxu0 %v2198
          %v2237 = vpop.f32.mrb[0].mxu0
          %v2238 = vadd.f32 0.0, %v2237
          %v2239 = vpop.f32.mrb[0].mxu0
          %v2240 = vpop.f32.mrb[0].mxu0
          %v2241 = vpop.f32.mrb[0].mxu0
          %2242 = vdwg.mxu0
          %v2244 = vsel %vm1639, %v2099, 0
          %v2247 = vsel %vm2107, %v1626, 0
          %2249 = vmatprep.subr.bf16.mxu0 0
          %2250 = vmatpush1.bf16.msra.mxu0 %v2247
          %2251 = vmatprep.subr.bf16.mxu0 0
          %2252 = vmatpush1.bf16.msra.mxu0 0
          %2253 = vmatprep.subr.bf16.mxu0 0
          %2254 = vmatpush1.bf16.msra.mxu0 0
          %2255 = vmatprep.subr.bf16.mxu0 0
          %2256 = vmatpush1.bf16.msra.mxu0 0
          %2257 = vmatprep.subr.bf16.mxu0 0
          %2258 = vmatpush1.bf16.msra.mxu0 0
          %2259 = vmatprep.subr.bf16.mxu0 0
          %2260 = vmatpush1.bf16.msra.mxu0 0
          %2261 = vmatprep.subr.bf16.mxu0 0
          %2262 = vmatpush1.bf16.msra.mxu0 0
          %2263 = vmatprep.subr.bf16.mxu0 0
          %2264 = vmatpush1.bf16.msra.mxu0 0
          %2265 = vmatprep.subr.bf16.mxu0 0
          %2266 = vmatpush1.bf16.msra.mxu0 0
          %2267 = vmatprep.subr.bf16.mxu0 0
          %2268 = vmatpush1.bf16.msra.mxu0 0
          %2269 = vmatprep.subr.bf16.mxu0 0
          %2270 = vmatpush1.bf16.msra.mxu0 0
          %2271 = vmatprep.subr.bf16.mxu0 0
          %2272 = vmatpush1.bf16.msra.mxu0 0
          %2273 = vmatprep.subr.bf16.mxu0 0
          %2274 = vmatpush1.bf16.msra.mxu0 0
          %2275 = vmatprep.subr.bf16.mxu0 0
          %2276 = vmatpush1.bf16.msra.mxu0 0
          %2277 = vmatprep.subr.bf16.mxu0 0
          %2278 = vmatpush1.bf16.msra.mxu0 0
          %2279 = vmatprep.subr.bf16.mxu0 0
          %2280 = vmatpush1.bf16.msra.mxu0 0
          %2281 = vmatprep.mubr.bf16.mxu0 0
          %2282 = vmatmul.mubr.bf16.gmra.mrb[0].mxu0 %v2244
          %v2283 = vpop.f32.mrb[0].mxu0
          %v2284 = vadd.f32 0.0, %v2283
          %v2285 = vpop.f32.mrb[0].mxu0
          %v2286 = vpop.f32.mrb[0].mxu0
          %v2287 = vpop.f32.mrb[0].mxu0
          %2288 = vdwg.mxu0
          %v2290 = vsel %vm1639, %v2100, 0
          %v2293 = vsel %vm2107, %v1629, 0
          %2295 = vmatprep.subr.bf16.mxu0 0
          %2296 = vmatpush1.bf16.msra.mxu0 %v2293
          %2297 = vmatprep.subr.bf16.mxu0 0
          %2298 = vmatpush1.bf16.msra.mxu0 0
          %2299 = vmatprep.subr.bf16.mxu0 0
          %2300 = vmatpush1.bf16.msra.mxu0 0
          %2301 = vmatprep.subr.bf16.mxu0 0
          %2302 = vmatpush1.bf16.msra.mxu0 0
          %2303 = vmatprep.subr.bf16.mxu0 0
          %2304 = vmatpush1.bf16.msra.mxu0 0
          %2305 = vmatprep.subr.bf16.mxu0 0
          %2306 = vmatpush1.bf16.msra.mxu0 0
          %2307 = vmatprep.subr.bf16.mxu0 0
          %2308 = vmatpush1.bf16.msra.mxu0 0
          %2309 = vmatprep.subr.bf16.mxu0 0
          %2310 = vmatpush1.bf16.msra.mxu0 0
          %2311 = vmatprep.subr.bf16.mxu0 0
          %2312 = vmatpush1.bf16.msra.mxu0 0
          %2313 = vmatprep.subr.bf16.mxu0 0
          %2314 = vmatpush1.bf16.msra.mxu0 0
          %2315 = vmatprep.subr.bf16.mxu0 0
          %2316 = vmatpush1.bf16.msra.mxu0 0
          %2317 = vmatprep.subr.bf16.mxu0 0
          %2318 = vmatpush1.bf16.msra.mxu0 0
          %2319 = vmatprep.subr.bf16.mxu0 0
          %2320 = vmatpush1.bf16.msra.mxu0 0
          %2321 = vmatprep.subr.bf16.mxu0 0
          %2322 = vmatpush1.bf16.msra.mxu0 0
          %2323 = vmatprep.subr.bf16.mxu0 0
          %2324 = vmatpush1.bf16.msra.mxu0 0
          %2325 = vmatprep.subr.bf16.mxu0 0
          %2326 = vmatpush1.bf16.msra.mxu0 0
          %2327 = vmatprep.mubr.bf16.mxu0 0
          %2328 = vmatmul.mubr.bf16.gmra.mrb[0].mxu0 %v2290
          %v2329 = vpop.f32.mrb[0].mxu0
          %v2330 = vadd.f32 0.0, %v2329
          %v2331 = vpop.f32.mrb[0].mxu0
          %v2332 = vpop.f32.mrb[0].mxu0
          %v2333 = vpop.f32.mrb[0].mxu0
          %2334 = vdwg.mxu0
          %v2336 = vsel %vm1639, %v2101, 0
          %v2339 = vsel %vm2107, %v1632, 0
          %2341 = vmatprep.subr.bf16.mxu0 0
          %2342 = vmatpush1.bf16.msra.mxu0 %v2339
          %2343 = vmatprep.subr.bf16.mxu0 0
          %2344 = vmatpush1.bf16.msra.mxu0 0
          %2345 = vmatprep.subr.bf16.mxu0 0
          %2346 = vmatpush1.bf16.msra.mxu0 0
          %2347 = vmatprep.subr.bf16.mxu0 0
          %2348 = vmatpush1.bf16.msra.mxu0 0
          %2349 = vmatprep.subr.bf16.mxu0 0
          %2350 = vmatpush1.bf16.msra.mxu0 0
          %2351 = vmatprep.subr.bf16.mxu0 0
          %2352 = vmatpush1.bf16.msra.mxu0 0
          %2353 = vmatprep.subr.bf16.mxu0 0
          %2354 = vmatpush1.bf16.msra.mxu0 0
          %2355 = vmatprep.subr.bf16.mxu0 0
          %2356 = vmatpush1.bf16.msra.mxu0 0
          %2357 = vmatprep.subr.bf16.mxu0 0
          %2358 = vmatpush1.bf16.msra.mxu0 0
          %2359 = vmatprep.subr.bf16.mxu0 0
          %2360 = vmatpush1.bf16.msra.mxu0 0
          %2361 = vmatprep.subr.bf16.mxu0 0
          %2362 = vmatpush1.bf16.msra.mxu0 0
          %2363 = vmatprep.subr.bf16.mxu0 0
          %2364 = vmatpush1.bf16.msra.mxu0 0
          %2365 = vmatprep.subr.bf16.mxu0 0
          %2366 = vmatpush1.bf16.msra.mxu0 0
          %2367 = vmatprep.subr.bf16.mxu0 0
          %2368 = vmatpush1.bf16.msra.mxu0 0
          %2369 = vmatprep.subr.bf16.mxu0 0
          %2370 = vmatpush1.bf16.msra.mxu0 0
          %2371 = vmatprep.subr.bf16.mxu0 0
          %2372 = vmatpush1.bf16.msra.mxu0 0
          %2373 = vmatprep.mubr.bf16.mxu0 0
          %2374 = vmatmul.mubr.bf16.gmra.mrb[0].mxu0 %v2336
          %v2375 = vpop.f32.mrb[0].mxu0
          %v2376 = vadd.f32 0.0, %v2375
          %v2377 = vpop.f32.mrb[0].mxu0
          %v2378 = vpop.f32.mrb[0].mxu0
          %v2379 = vpop.f32.mrb[0].mxu0
          %2380 = vdwg.mxu0
          %v2382 = vsel %vm1639, %v2102, 0
          %v2385 = vsel %vm2107, %v1635, 0
          %2387 = vmatprep.subr.bf16.mxu0 0
          %2388 = vmatpush1.bf16.msra.mxu0 %v2385
          %2389 = vmatprep.subr.bf16.mxu0 0
          %2390 = vmatpush1.bf16.msra.mxu0 0
          %2391 = vmatprep.subr.bf16.mxu0 0
          %2392 = vmatpush1.bf16.msra.mxu0 0
          %2393 = vmatprep.subr.bf16.mxu0 0
          %2394 = vmatpush1.bf16.msra.mxu0 0
          %2395 = vmatprep.subr.bf16.mxu0 0
          %2396 = vmatpush1.bf16.msra.mxu0 0
          %2397 = vmatprep.subr.bf16.mxu0 0
          %2398 = vmatpush1.bf16.msra.mxu0 0
          %2399 = vmatprep.subr.bf16.mxu0 0
          %2400 = vmatpush1.bf16.msra.mxu0 0
          %2401 = vmatprep.subr.bf16.mxu0 0
          %2402 = vmatpush1.bf16.msra.mxu0 0
          %2403 = vmatprep.subr.bf16.mxu0 0
          %2404 = vmatpush1.bf16.msra.mxu0 0
          %2405 = vmatprep.subr.bf16.mxu0 0
          %2406 = vmatpush1.bf16.msra.mxu0 0
          %2407 = vmatprep.subr.bf16.mxu0 0
          %2408 = vmatpush1.bf16.msra.mxu0 0
          %2409 = vmatprep.subr.bf16.mxu0 0
          %2410 = vmatpush1.bf16.msra.mxu0 0
          %2411 = vmatprep.subr.bf16.mxu0 0
          %2412 = vmatpush1.bf16.msra.mxu0 0
          %2413 = vmatprep.subr.bf16.mxu0 0
          %2414 = vmatpush1.bf16.msra.mxu0 0
          %2415 = vmatprep.subr.bf16.mxu0 0
          %2416 = vmatpush1.bf16.msra.mxu0 0
          %2417 = vmatprep.subr.bf16.mxu0 0
          %2418 = vmatpush1.bf16.msra.mxu0 0
          %2419 = vmatprep.mubr.bf16.mxu0 0
          %2420 = vmatmul.mubr.bf16.gmra.mrb[0].mxu0 %v2382
          %v2421 = vpop.f32.mrb[0].mxu0
          %v2422 = vadd.f32 0.0, %v2421
          %v2423 = vpop.f32.mrb[0].mxu0
          %v2424 = vpop.f32.mrb[0].mxu0
          %v2425 = vpop.f32.mrb[0].mxu0
          %2426 = vdwg.mxu0
          %v2428 = vsel %vm1639, %v2103, 0
          %v2431 = vsel %vm2107, %v1638, 0
          %2433 = vmatprep.subr.bf16.mxu0 0
          %2434 = vmatpush1.bf16.msra.mxu0 %v2431
          %2435 = vmatprep.subr.bf16.mxu0 0
          %2436 = vmatpush1.bf16.msra.mxu0 0
          %2437 = vmatprep.subr.bf16.mxu0 0
          %2438 = vmatpush1.bf16.msra.mxu0 0
          %2439 = vmatprep.subr.bf16.mxu0 0
          %2440 = vmatpush1.bf16.msra.mxu0 0
          %2441 = vmatprep.subr.bf16.mxu0 0
          %2442 = vmatpush1.bf16.msra.mxu0 0
          %2443 = vmatprep.subr.bf16.mxu0 0
          %2444 = vmatpush1.bf16.msra.mxu0 0
          %2445 = vmatprep.subr.bf16.mxu0 0
          %2446 = vmatpush1.bf16.msra.mxu0 0
          %2447 = vmatprep.subr.bf16.mxu0 0
          %2448 = vmatpush1.bf16.msra.mxu0 0
          %2449 = vmatprep.subr.bf16.mxu0 0
          %2450 = vmatpush1.bf16.msra.mxu0 0
          %2451 = vmatprep.subr.bf16.mxu0 0
          %2452 = vmatpush1.bf16.msra.mxu0 0
          %2453 = vmatprep.subr.bf16.mxu0 0
          %2454 = vmatpush1.bf16.msra.mxu0 0
          %2455 = vmatprep.subr.bf16.mxu0 0
          %2456 = vmatpush1.bf16.msra.mxu0 0
          %2457 = vmatprep.subr.bf16.mxu0 0
          %2458 = vmatpush1.bf16.msra.mxu0 0
          %2459 = vmatprep.subr.bf16.mxu0 0
          %2460 = vmatpush1.bf16.msra.mxu0 0
          %2461 = vmatprep.subr.bf16.mxu0 0
          %2462 = vmatpush1.bf16.msra.mxu0 0
          %2463 = vmatprep.subr.bf16.mxu0 0
          %2464 = vmatpush1.bf16.msra.mxu0 0
          %2465 = vmatprep.mubr.bf16.mxu0 0
          %2466 = vmatmul.mubr.bf16.gmra.mrb[0].mxu0 %v2428
          %v2467 = vpop.f32.mrb[0].mxu0
          %v2468 = vadd.f32 0.0, %v2467
          %v2469 = vpop.f32.mrb[0].mxu0
          %v2470 = vpop.f32.mrb[0].mxu0
          %v2471 = vpop.f32.mrb[0].mxu0
          %2472 = vdwg.mxu0
          %v2473 = vpack.c.bf16 %v2146, %v2146
          %v2475 = vunpack.c.l.s4 1983009808
          %v2476 = vunpack.c.0.s8 %v2475
          %v2477 = vlaneseq
          %v2478 = vshrl.u32 %v2477, 7
          %v2479 = vsub.s32 %v2476, %v2478
          %v2480 = vrot.slane %v2473, %v2479
          %v2481 = vpack.c.bf16 %v2238, %v2238
          %v2483 = vunpack.c.l.s4 1983009808
          %v2484 = vunpack.c.0.s8 %v2483
          %v2485 = vlaneseq
          %v2486 = vshrl.u32 %v2485, 7
          %v2487 = vsub.s32 %v2484, %v2486
          %v2488 = vrot.slane %v2481, %v2487
          %v2489 = vcombine.low %v2480, %v2488
          %v2490 = vcombine.high %v2480, %v2488
          %v2492 = vunpack.c.l.s4 1934713408
          %v2493 = vunpack.c.0.s8 %v2492
          %v2494 = vlaneseq
          %v2495 = vshrl.u32 %v2494, 7
          %v2496 = vsub.s32 %v2493, %v2495
          %v2497 = vrot.slane %v2489, %v2496
          %v2499 = vunpack.c.l.s4 1934713408
          %v2500 = vunpack.c.0.s8 %v2499
          %v2501 = vlaneseq
          %v2502 = vshrl.u32 %v2501, 7
          %v2503 = vsub.s32 %v2500, %v2502
          %v2504 = vrot.slane %v2490, %v2503
          %v2505 = vcombine.high %v2497, 0
          %v2506 = vcombine.high %v2504, 0
          %v2507 = vpack.c.bf16 %v2192, %v2192
          %v2509 = vunpack.c.l.s4 1983009808
          %v2510 = vunpack.c.0.s8 %v2509
          %v2511 = vlaneseq
          %v2512 = vshrl.u32 %v2511, 7
          %v2513 = vsub.s32 %v2510, %v2512
          %v2514 = vrot.slane %v2507, %v2513
          %v2515 = vpack.c.bf16 %v2284, %v2284
          %v2517 = vunpack.c.l.s4 1983009808
          %v2518 = vunpack.c.0.s8 %v2517
          %v2519 = vlaneseq
          %v2520 = vshrl.u32 %v2519, 7
          %v2521 = vsub.s32 %v2518, %v2520
          %v2522 = vrot.slane %v2515, %v2521
          %v2523 = vcombine.low %v2514, %v2522
          %v2524 = vcombine.high %v2514, %v2522
          %v2526 = vunpack.c.l.s4 1934713408
          %v2527 = vunpack.c.0.s8 %v2526
          %v2528 = vlaneseq
          %v2529 = vshrl.u32 %v2528, 7
          %v2530 = vsub.s32 %v2527, %v2529
          %v2531 = vrot.slane %v2523, %v2530
          %v2533 = vunpack.c.l.s4 1934713408
          %v2534 = vunpack.c.0.s8 %v2533
          %v2535 = vlaneseq
          %v2536 = vshrl.u32 %v2535, 7
          %v2537 = vsub.s32 %v2534, %v2536
          %v2538 = vrot.slane %v2524, %v2537
          %v2539 = vcombine.high %v2531, 0
          %v2540 = vcombine.high %v2538, 0
          %v2541 = vpack.c.bf16 %v2330, %v2330
          %v2543 = vunpack.c.l.s4 1983009808
          %v2544 = vunpack.c.0.s8 %v2543
          %v2545 = vlaneseq
          %v2546 = vshrl.u32 %v2545, 7
          %v2547 = vsub.s32 %v2544, %v2546
          %v2548 = vrot.slane %v2541, %v2547
          %v2549 = vpack.c.bf16 %v2422, %v2422
          %v2551 = vunpack.c.l.s4 1983009808
          %v2552 = vunpack.c.0.s8 %v2551
          %v2553 = vlaneseq
          %v2554 = vshrl.u32 %v2553, 7
          %v2555 = vsub.s32 %v2552, %v2554
          %v2556 = vrot.slane %v2549, %v2555
          %v2557 = vcombine.low %v2548, %v2556
          %v2558 = vcombine.high %v2548, %v2556
          %v2560 = vunpack.c.l.s4 1934713408
          %v2561 = vunpack.c.0.s8 %v2560
          %v2562 = vlaneseq
          %v2563 = vshrl.u32 %v2562, 7
          %v2564 = vsub.s32 %v2561, %v2563
          %v2565 = vrot.slane %v2557, %v2564
          %v2567 = vunpack.c.l.s4 1934713408
          %v2568 = vunpack.c.0.s8 %v2567
          %v2569 = vlaneseq
          %v2570 = vshrl.u32 %v2569, 7
          %v2571 = vsub.s32 %v2568, %v2570
          %v2572 = vrot.slane %v2558, %v2571
          %v2573 = vcombine.high %v2565, 0
          %v2574 = vcombine.high %v2572, 0
          %v2575 = vpack.c.bf16 %v2376, %v2376
          %v2577 = vunpack.c.l.s4 1983009808
          %v2578 = vunpack.c.0.s8 %v2577
          %v2579 = vlaneseq
          %v2580 = vshrl.u32 %v2579, 7
          %v2581 = vsub.s32 %v2578, %v2580
          %v2582 = vrot.slane %v2575, %v2581
          %v2583 = vpack.c.bf16 %v2468, %v2468
          %v2585 = vunpack.c.l.s4 1983009808
          %v2586 = vunpack.c.0.s8 %v2585
          %v2587 = vlaneseq
          %v2588 = vshrl.u32 %v2587, 7
          %v2589 = vsub.s32 %v2586, %v2588
          %v2590 = vrot.slane %v2583, %v2589
          %v2591 = vcombine.low %v2582, %v2590
          %v2592 = vcombine.high %v2582, %v2590
          %v2594 = vunpack.c.l.s4 1934713408
          %v2595 = vunpack.c.0.s8 %v2594
          %v2596 = vlaneseq
          %v2597 = vshrl.u32 %v2596, 7
          %v2598 = vsub.s32 %v2595, %v2597
          %v2599 = vrot.slane %v2591, %v2598
          %v2601 = vunpack.c.l.s4 1934713408
          %v2602 = vunpack.c.0.s8 %v2601
          %v2603 = vlaneseq
          %v2604 = vshrl.u32 %v2603, 7
          %v2605 = vsub.s32 %v2602, %v2604
          %v2606 = vrot.slane %v2592, %v2605
          %v2607 = vcombine.high %v2599, 0
          %v2608 = vcombine.high %v2606, 0
          %v2611 = vpack.i.b16 %v2531, %v2497
          %v2613 = vshrl.u32 %v2497, 16
          %v2614 = vshrl.u32 %v2531, 16
          %v2615 = vpack.i.b16 %v2614, %v2613
          %v2619 = vpack.i.b16 %v2539, %v2505
          %v2621 = vshrl.u32 %v2505, 16
          %v2622 = vshrl.u32 %v2539, 16
          %v2623 = vpack.i.b16 %v2622, %v2621
          %v2627 = vpack.i.b16 %v2538, %v2504
          %v2629 = vshrl.u32 %v2504, 16
          %v2630 = vshrl.u32 %v2538, 16
          %v2631 = vpack.i.b16 %v2630, %v2629
          %v2635 = vpack.i.b16 %v2540, %v2506
          %v2637 = vshrl.u32 %v2506, 16
          %v2638 = vshrl.u32 %v2540, 16
          %v2639 = vpack.i.b16 %v2638, %v2637
          %v2643 = vpack.i.b16 %v2599, %v2565
          %v2645 = vshrl.u32 %v2565, 16
          %v2646 = vshrl.u32 %v2599, 16
          %v2647 = vpack.i.b16 %v2646, %v2645
          %v2651 = vpack.i.b16 %v2607, %v2573
          %v2653 = vshrl.u32 %v2573, 16
          %v2654 = vshrl.u32 %v2607, 16
          %v2655 = vpack.i.b16 %v2654, %v2653
          %v2659 = vpack.i.b16 %v2606, %v2572
          %v2661 = vshrl.u32 %v2572, 16
          %v2662 = vshrl.u32 %v2606, 16
          %v2663 = vpack.i.b16 %v2662, %v2661
          %v2667 = vpack.i.b16 %v2608, %v2574
          %v2669 = vshrl.u32 %v2574, 16
          %v2670 = vshrl.u32 %v2608, 16
          %v2671 = vpack.i.b16 %v2670, %v2669
          %v2673 = vcombine.low %v2611, %v2627
          %v2675 = vunpack.c.l.s4 1983009808
          %v2676 = vunpack.c.0.s8 %v2675
          %v2677 = vlaneseq
          %v2678 = vshrl.u32 %v2677, 7
          %v2679 = vsub.s32 %v2676, %v2678
          %v2680 = vrot.slane %v2673, %v2679
          %v2681 = vcombine.low %v2619, %v2635
          %v2683 = vunpack.c.l.s4 1983009808
          %v2684 = vunpack.c.0.s8 %v2683
          %v2685 = vlaneseq
          %v2686 = vshrl.u32 %v2685, 7
          %v2687 = vsub.s32 %v2684, %v2686
          %v2688 = vrot.slane %v2681, %v2687
          %v2689 = vcombine.low %v2643, %v2659
          %v2691 = vunpack.c.l.s4 1983009808
          %v2692 = vunpack.c.0.s8 %v2691
          %v2693 = vlaneseq
          %v2694 = vshrl.u32 %v2693, 7
          %v2695 = vsub.s32 %v2692, %v2694
          %v2696 = vrot.slane %v2689, %v2695
          %v2697 = vcombine.low %v2651, %v2667
          %v2699 = vunpack.c.l.s4 1983009808
          %v2700 = vunpack.c.0.s8 %v2699
          %v2701 = vlaneseq
          %v2702 = vshrl.u32 %v2701, 7
          %v2703 = vsub.s32 %v2700, %v2702
          %v2704 = vrot.slane %v2697, %v2703
          %v2705 = vcombine.low %v2680, %v2688
          %v2707 = vunpack.c.l.s4 1934713408
          %v2708 = vunpack.c.0.s8 %v2707
          %v2709 = vlaneseq
          %v2710 = vshrl.u32 %v2709, 7
          %v2711 = vsub.s32 %v2708, %v2710
          %v2712 = vrot.slane %v2705, %v2711
          %v2713 = vcombine.low %v2696, %v2704
          %v2715 = vunpack.c.l.s4 1934713408
          %v2716 = vunpack.c.0.s8 %v2715
          %v2717 = vlaneseq
          %v2718 = vshrl.u32 %v2717, 7
          %v2719 = vsub.s32 %v2716, %v2718
          %v2720 = vrot.slane %v2713, %v2719
          %v2721 = vcombine.low %v2712, %v2720
          %v2722 = vcombine.high %v2712, %v2720
          %v2723 = vcombine.low %v2615, %v2631
          %v2725 = vunpack.c.l.s4 1983009808
          %v2726 = vunpack.c.0.s8 %v2725
          %v2727 = vlaneseq
          %v2728 = vshrl.u32 %v2727, 7
          %v2729 = vsub.s32 %v2726, %v2728
          %v2730 = vrot.slane %v2723, %v2729
          %v2731 = vcombine.low %v2623, %v2639
          %v2733 = vunpack.c.l.s4 1983009808
          %v2734 = vunpack.c.0.s8 %v2733
          %v2735 = vlaneseq
          %v2736 = vshrl.u32 %v2735, 7
          %v2737 = vsub.s32 %v2734, %v2736
          %v2738 = vrot.slane %v2731, %v2737
          %v2739 = vcombine.low %v2647, %v2663
          %v2741 = vunpack.c.l.s4 1983009808
          %v2742 = vunpack.c.0.s8 %v2741
          %v2743 = vlaneseq
          %v2744 = vshrl.u32 %v2743, 7
          %v2745 = vsub.s32 %v2742, %v2744
          %v2746 = vrot.slane %v2739, %v2745
          %v2747 = vcombine.low %v2655, %v2671
          %v2749 = vunpack.c.l.s4 1983009808
          %v2750 = vunpack.c.0.s8 %v2749
          %v2751 = vlaneseq
          %v2752 = vshrl.u32 %v2751, 7
          %v2753 = vsub.s32 %v2750, %v2752
          %v2754 = vrot.slane %v2747, %v2753
          %v2755 = vcombine.low %v2730, %v2738
          %v2757 = vunpack.c.l.s4 1934713408
          %v2758 = vunpack.c.0.s8 %v2757
          %v2759 = vlaneseq
          %v2760 = vshrl.u32 %v2759, 7
          %v2761 = vsub.s32 %v2758, %v2760
          %v2762 = vrot.slane %v2755, %v2761
          %v2763 = vcombine.low %v2746, %v2754
          %v2765 = vunpack.c.l.s4 1934713408
          %v2766 = vunpack.c.0.s8 %v2765
          %v2767 = vlaneseq
          %v2768 = vshrl.u32 %v2767, 7
          %v2769 = vsub.s32 %v2766, %v2768
          %v2770 = vrot.slane %v2763, %v2769
          %v2771 = vcombine.low %v2762, %v2770
          %v2772 = vcombine.high %v2762, %v2770
          %v2775 = vpack.i.b16 %v2771, %v2721
          %v2776 = vshrl.u32 %v2721, 16
          %v2777 = vshrl.u32 %v2771, 16
          %v2778 = vpack.i.b16 %v2777, %v2776
          %v2781 = vpack.i.b16 %v2772, %v2722
          %v2782 = vshrl.u32 %v2722, 16
          %v2783 = vshrl.u32 %v2772, 16
          %v2784 = vpack.i.b16 %v2783, %v2782
          %2785 = vrot.lane.b32.xlu0 %v2778, 8
          %v2786 = vpop.permute.xlu0 %2785
          %2787 = vrot.lane.b32.xlu0 %v2781, 16
          %v2788 = vpop.permute.xlu0 %2787
          %2789 = vrot.lane.b32.xlu0 %v2784, 24
          %v2790 = vpop.permute.xlu0 %2789
          %v2793 = vsel %vm1639, %v2775, %v2786
          %vm2794 = vcmask 130048
          %v2796 = vsel %vm2794, %v2793, %v2788
          %vm2797 = vcmask 195584
          %v2799 = vsel %vm2797, %v2796, %v2790
          %v2800 = vld [vmem:[%s648] sm:$0xf]
          %v2801 = vld [vmem:[%s648 + $0x4] sm:$0xf]
          %v2802 = vld [vmem:[%s648 + $0x8] sm:$0xf]
          %v2803 = vld [vmem:[%s648 + $0xc] sm:$0xf]
          %v2804 = vld [vmem:[%s651] sm:$0x1]
          %v2806 = vlaneseq
          %v2807 = vshrl.u32 %v2806, 7
          %v2808 = vsub.s32 0, %v2807
          %v2809 = vrot.slane %v2804, %v2808
          %v2815 = vunpack.c.l.b16 %v2800
          %v2816 = vunpack.c.l.b16 %v2801
          %v2817 = vunpack.c.l.b16 %v2802
          %v2818 = vunpack.c.l.b16 %v2803
          %v2819 = vpack.c.b16 %v2816, %v2815
          %v2820 = vpack.c.b16 %v2818, %v2817
          %v2823 = vsel %vm738, %v2799, 0
          %2825 = vmatprep.subr.bf16.mxu0 0
          %2826 = vmatpush1.bf16.msra.mxu0 %v2819
          %2827 = vmatprep.subr.bf16.mxu0 0
          %2828 = vmatpush1.bf16.msra.mxu0 %v2820
          %2829 = vmatprep.subr.bf16.mxu0 0
          %2830 = vmatpush1.bf16.msra.mxu0 0
          %2831 = vmatprep.subr.bf16.mxu0 0
          %2832 = vmatpush1.bf16.msra.mxu0 0
          %2833 = vmatprep.subr.bf16.mxu0 0
          %2834 = vmatpush1.bf16.msra.mxu0 0
          %2835 = vmatprep.subr.bf16.mxu0 0
          %2836 = vmatpush1.bf16.msra.mxu0 0
          %2837 = vmatprep.subr.bf16.mxu0 0
          %2838 = vmatpush1.bf16.msra.mxu0 0
          %2839 = vmatprep.subr.bf16.mxu0 0
          %2840 = vmatpush1.bf16.msra.mxu0 0
          %2841 = vmatprep.subr.bf16.mxu0 0
          %2842 = vmatpush1.bf16.msra.mxu0 0
          %2843 = vmatprep.subr.bf16.mxu0 0
          %2844 = vmatpush1.bf16.msra.mxu0 0
          %2845 = vmatprep.subr.bf16.mxu0 0
          %2846 = vmatpush1.bf16.msra.mxu0 0
          %2847 = vmatprep.subr.bf16.mxu0 0
          %2848 = vmatpush1.bf16.msra.mxu0 0
          %2849 = vmatprep.subr.bf16.mxu0 0
          %2850 = vmatpush1.bf16.msra.mxu0 0
          %2851 = vmatprep.subr.bf16.mxu0 0
          %2852 = vmatpush1.bf16.msra.mxu0 0
          %2853 = vmatprep.subr.bf16.mxu0 0
          %2854 = vmatpush1.bf16.msra.mxu0 0
          %2855 = vmatprep.subr.bf16.mxu0 0
          %2856 = vmatpush1.bf16.msra.mxu0 0
          %2857 = vmatprep.mubr.bf16.mxu0 0
          %2858 = vmatmul.mubr.bf16.gmra.mrb[0].mxu0 %v2823
          %v2859 = vpop.f32.mrb[0].mxu0
          %v2860 = vadd.f32 %v2809, %v2859
          %v2861 = vpop.f32.mrb[0].mxu0
          %v2862 = vpop.f32.mrb[0].mxu0
          %v2863 = vadd.f32 %v2809, %v2862
          %v2864 = vpop.f32.mrb[0].mxu0
          %2865 = vdwg.mxu0
          %v2866 = vadd.f32 %v712, %v2860
          %v2867 = vadd.f32 %v713, %v2863
          %v2868 = vld [vmem:[%s686] sm:$0x1]
          %v2869 = vld [vmem:[%s689] sm:$0x1]
          %v2870 = vsel %vm738, %v2866, 0.0
          %2871 = vadd.xlane.f32.xlu0 %v2870
          %v2872 = vpop.xlane.xlu0 %2871
          %v2873 = vsel %vm738, %v2867, 0.0
          %2874 = vadd.xlane.f32.xlu0 %v2873
          %v2875 = vpop.xlane.xlu0 %2874
          %v2876 = vrcp.pop 32.0
          %v2877 = vmul.f32 %v2872, %v2876
          %v2878 = vmul.f32 %v2875, %v2876
          %v2879 = vsub.f32 %v2866, %v2877
          %v2880 = vsub.f32 %v2867, %v2878
          %v2881 = vmul.f32 %v2879, %v2879
          %v2882 = vmul.f32 %v2880, %v2880
          %v2883 = vsel %vm738, %v2881, 0.0
          %2884 = vadd.xlane.f32.xlu0 %v2883
          %v2885 = vpop.xlane.xlu0 %2884
          %v2886 = vsel %vm738, %v2882, 0.0
          %2887 = vadd.xlane.f32.xlu0 %v2886
          %v2888 = vpop.xlane.xlu0 %2887
          %v2889 = vmul.f32 %v2885, %v2876
          %v2890 = vmul.f32 %v2888, %v2876
          %v2891 = vadd.f32 %v2889, 1e-05
          %v2892 = vadd.f32 %v2890, 1e-05
          %v2893 = vrsqrt.pop %v2891
          %v2894 = vrsqrt.pop %v2892
          %v2895 = vmul.f32 %v2879, %v2893
          %v2896 = vmul.f32 %v2880, %v2894
          %v2898 = vlaneseq
          %v2899 = vshrl.u32 %v2898, 7
          %v2900 = vsub.s32 0, %v2899
          %v2901 = vrot.slane %v2868, %v2900
          %v2903 = vmul.f32 %v2895, %v2901
          %v2904 = vmul.f32 %v2896, %v2901
          %v2906 = vlaneseq
          %v2907 = vshrl.u32 %v2906, 7
          %v2908 = vsub.s32 0, %v2907
          %v2909 = vrot.slane %v2869, %v2908
          %v2911 = vadd.f32 %v2903, %v2909
          %v2912 = vadd.f32 %v2904, %v2909
          %2913 = vst.msk [vmem:[#allocation3] sm:$0xff] %vm738, %v2911
          %2914 = vst.msk [vmem:[#allocation3 + $0x8] sm:$0xff] %vm738, %v2912
          %2915 = vst.msk [vmem:[#allocation4] sm:$0xff] %vm738, 0.0
          %2916 = vst.msk [vmem:[#allocation4 + $0x8] sm:$0xff] %vm738, 0.0
        $region80: #{tpu_custom_call.1} parent=71 // pred_fallthru
          _
        %v2917 = vld [vmem:[#allocation3] sm:$0xff]
        %v2918 = vld [vmem:[#allocation3 + $0x8] sm:$0xff]
        %v2919 = vpack.c.bf16 %v2918, %v2917
        %v2920 = vld [vmem:[%s660] sm:$0xff]
        %v2921 = vld [vmem:[%s660 + $0x8] sm:$0xff]
        %v2922 = vld [vmem:[%s660 + $0x10] sm:$0xff]
        %v2923 = vld [vmem:[%s660 + $0x18] sm:$0xff]
        %v2924 = vld [vmem:[%s669] sm:$0x3]
        %v2926 = vlaneseq
        %v2927 = vshrl.u32 %v2926, 7
        %v2928 = vsub.s32 0, %v2927
        %v2929 = vrot.slane %v2924, %v2928
        %v2930 = vlaneseq
        %v2931 = vshrl.u32 %v2930, 7
        %v2932 = vsub.s32 1, %v2931
        %v2933 = vrot.slane %v2924, %v2932
        %v2940 = vunpack.c.l.b16 %v2920
        %v2941 = vunpack.c.h.b16 %v2920
        %v2942 = vunpack.c.l.b16 %v2921
        %v2943 = vunpack.c.h.b16 %v2921
        %v2944 = vunpack.c.l.b16 %v2922
        %v2945 = vunpack.c.h.b16 %v2922
        %v2946 = vunpack.c.l.b16 %v2923
        %v2947 = vunpack.c.h.b16 %v2923
        %v2948 = vpack.c.b16 %v2942, %v2940
        %v2949 = vpack.c.b16 %v2943, %v2941
        %v2950 = vpack.c.b16 %v2946, %v2944
        %v2951 = vpack.c.b16 %v2947, %v2945
        %vm2956 = vcmask 261120
        %v2958 = vsel %vm2956, %v2919, 0
        %2960 = vmatprep.subr.bf16.mxu0 %v2949
        %2961 = vmatpush1.bf16.msra.mxu0 %v2948
        %2962 = vmatprep.subr.bf16.mxu0 %v2951
        %2963 = vmatpush1.bf16.msra.mxu0 %v2950
        %2964 = vmatprep.subr.bf16.mxu0 0
        %2965 = vmatpush1.bf16.msra.mxu0 0
        %2966 = vmatprep.subr.bf16.mxu0 0
        %2967 = vmatpush1.bf16.msra.mxu0 0
        %2968 = vmatprep.subr.bf16.mxu0 0
        %2969 = vmatpush1.bf16.msra.mxu0 0
        %2970 = vmatprep.subr.bf16.mxu0 0
        %2971 = vmatpush1.bf16.msra.mxu0 0
        %2972 = vmatprep.subr.bf16.mxu0 0
        %2973 = vmatpush1.bf16.msra.mxu0 0
        %2974 = vmatprep.subr.bf16.mxu0 0
        %2975 = vmatpush1.bf16.msra.mxu0 0
        %2976 = vmatprep.subr.bf16.mxu0 0
        %2977 = vmatpush1.bf16.msra.mxu0 0
        %2978 = vmatprep.subr.bf16.mxu0 0
        %2979 = vmatpush1.bf16.msra.mxu0 0
        %2980 = vmatprep.subr.bf16.mxu0 0
        %2981 = vmatpush1.bf16.msra.mxu0 0
        %2982 = vmatprep.subr.bf16.mxu0 0
        %2983 = vmatpush1.bf16.msra.mxu0 0
        %2984 = vmatprep.subr.bf16.mxu0 0
        %2985 = vmatpush1.bf16.msra.mxu0 0
        %2986 = vmatprep.subr.bf16.mxu0 0
        %2987 = vmatpush1.bf16.msra.mxu0 0
        %2988 = vmatprep.subr.bf16.mxu0 0
        %2989 = vmatpush1.bf16.msra.mxu0 0
        %2990 = vmatprep.subr.bf16.mxu0 0
        %2991 = vmatpush1.bf16.msra.mxu0 0
        %2992 = vmatprep.mubr.bf16.mxu0 0
        %2993 = vmatmul.mubr.bf16.gmra.mrb[0].mxu0 %v2958
        %v2994 = vpop.f32.mrb[0].mxu0
        %v2995 = vadd.f32 %v2929, %v2994
        %v2996 = vpop.f32.mrb[0].mxu0
        %v2997 = vadd.f32 %v2933, %v2996
        %v2998 = vpop.f32.mrb[0].mxu0
        %v2999 = vadd.f32 %v2929, %v2998
        %v3000 = vpop.f32.mrb[0].mxu0
        %v3001 = vadd.f32 %v2933, %v3000
        %3002 = vdwg.mxu0
        %v3003 = vmax.f32 %v2995, 0.0
        %v3004 = vmax.f32 %v2997, 0.0
        %v3005 = vmax.f32 %v2999, 0.0
        %v3006 = vmax.f32 %v3001, 0.0
        %v3007 = vpack.c.bf16 %v3005, %v3003
        %v3008 = vpack.c.bf16 %v3006, %v3004
        %v3009 = vld [vmem:[#allocation4] sm:$0xff]
        %v3010 = vld [vmem:[#allocation4 + $0x8] sm:$0xff]
        %v3011 = vld [vmem:[%s679] sm:$0xf]
        %v3012 = vld [vmem:[%s679 + $0x4] sm:$0xf]
        %v3013 = vld [vmem:[%s679 + $0x8] sm:$0xf]
        %v3014 = vld [vmem:[%s679 + $0xc] sm:$0xf]
        %v3015 = vld [vmem:[%s679 + $0x10] sm:$0xf]
        %v3016 = vld [vmem:[%s679 + $0x14] sm:$0xf]
        %v3017 = vld [vmem:[%s679 + $0x18] sm:$0xf]
        %v3018 = vld [vmem:[%s679 + $0x1c] sm:$0xf]
        %v3019 = vld [vmem:[%s679 + $0x20] sm:$0xf]
        %v3020 = vld [vmem:[%s679 + $0x24] sm:$0xf]
        %v3021 = vld [vmem:[%s679 + $0x28] sm:$0xf]
        %v3022 = vld [vmem:[%s679 + $0x2c] sm:$0xf]
        %v3023 = vld [vmem:[%s679 + $0x30] sm:$0xf]
        %v3024 = vld [vmem:[%s679 + $0x34] sm:$0xf]
        %v3025 = vld [vmem:[%s679 + $0x38] sm:$0xf]
        %v3026 = vld [vmem:[%s679 + $0x3c] sm:$0xf]
        %v3027 = vld [vmem:[%s679 + $0x40] sm:$0xf]
        %v3028 = vld [vmem:[%s679 + $0x44] sm:$0xf]
        %v3029 = vld [vmem:[%s679 + $0x48] sm:$0xf]
        %v3030 = vld [vmem:[%s679 + $0x4c] sm:$0xf]
        %v3031 = vld [vmem:[%s679 + $0x50] sm:$0xf]
        %v3032 = vld [vmem:[%s679 + $0x54] sm:$0xf]
        %v3033 = vld [vmem:[%s679 + $0x58] sm:$0xf]
        %v3034 = vld [vmem:[%s679 + $0x5c] sm:$0xf]
        %v3035 = vld [vmem:[%s679 + $0x60] sm:$0xf]
        %v3036 = vld [vmem:[%s679 + $0x64] sm:$0xf]
        %v3037 = vld [vmem:[%s679 + $0x68] sm:$0xf]
        %v3038 = vld [vmem:[%s679 + $0x6c] sm:$0xf]
        %v3039 = vld [vmem:[%s679 + $0x70] sm:$0xf]
        %v3040 = vld [vmem:[%s679 + $0x74] sm:$0xf]
        %v3041 = vld [vmem:[%s679 + $0x78] sm:$0xf]
        %v3042 = vld [vmem:[%s679 + $0x7c] sm:$0xf]
        %v3075 = vunpack.c.l.b16 %v3011
        %v3076 = vunpack.c.l.b16 %v3012
        %v3077 = vunpack.c.l.b16 %v3013
        %v3078 = vunpack.c.l.b16 %v3014
        %v3079 = vunpack.c.l.b16 %v3015
        %v3080 = vunpack.c.l.b16 %v3016
        %v3081 = vunpack.c.l.b16 %v3017
        %v3082 = vunpack.c.l.b16 %v3018
        %v3083 = vunpack.c.l.b16 %v3019
        %v3084 = vunpack.c.l.b16 %v3020
        %v3085 = vunpack.c.l.b16 %v3021
        %v3086 = vunpack.c.l.b16 %v3022
        %v3087 = vunpack.c.l.b16 %v3023
        %v3088 = vunpack.c.l.b16 %v3024
        %v3089 = vunpack.c.l.b16 %v3025
        %v3090 = vunpack.c.l.b16 %v3026
        %v3091 = vunpack.c.l.b16 %v3027
        %v3092 = vunpack.c.l.b16 %v3028
        %v3093 = vunpack.c.l.b16 %v3029
        %v3094 = vunpack.c.l.b16 %v3030
        %v3095 = vunpack.c.l.b16 %v3031
        %v3096 = vunpack.c.l.b16 %v3032
        %v3097 = vunpack.c.l.b16 %v3033
        %v3098 = vunpack.c.l.b16 %v3034
        %v3099 = vunpack.c.l.b16 %v3035
        %v3100 = vunpack.c.l.b16 %v3036
        %v3101 = vunpack.c.l.b16 %v3037
        %v3102 = vunpack.c.l.b16 %v3038
        %v3103 = vunpack.c.l.b16 %v3039
        %v3104 = vunpack.c.l.b16 %v3040
        %v3105 = vunpack.c.l.b16 %v3041
        %v3106 = vunpack.c.l.b16 %v3042
        %v3107 = vpack.c.b16 %v3076, %v3075
        %v3108 = vpack.c.b16 %v3078, %v3077
        %v3109 = vpack.c.b16 %v3080, %v3079
        %v3110 = vpack.c.b16 %v3082, %v3081
        %v3111 = vpack.c.b16 %v3084, %v3083
        %v3112 = vpack.c.b16 %v3086, %v3085
        %v3113 = vpack.c.b16 %v3088, %v3087
        %v3114 = vpack.c.b16 %v3090, %v3089
        %v3115 = vpack.c.b16 %v3092, %v3091
        %v3116 = vpack.c.b16 %v3094, %v3093
        %v3117 = vpack.c.b16 %v3096, %v3095
        %v3118 = vpack.c.b16 %v3098, %v3097
        %v3119 = vpack.c.b16 %v3100, %v3099
        %v3120 = vpack.c.b16 %v3102, %v3101
        %v3121 = vpack.c.b16 %v3104, %v3103
        %v3122 = vpack.c.b16 %v3106, %v3105
        %3139 = vmatprep.subr.bf16.mxu0 0
        %3140 = vmatpush1.bf16.msra.mxu0 %v3107
        %3141 = vmatprep.subr.bf16.mxu0 0
        %3142 = vmatpush1.bf16.msra.mxu0 %v3108
        %3143 = vmatprep.subr.bf16.mxu0 0
        %3144 = vmatpush1.bf16.msra.mxu0 %v3109
        %3145 = vmatprep.subr.bf16.mxu0 0
        %3146 = vmatpush1.bf16.msra.mxu0 %v3110
        %3147 = vmatprep.subr.bf16.mxu0 0
        %3148 = vmatpush1.bf16.msra.mxu0 %v3111
        %3149 = vmatprep.subr.bf16.mxu0 0
        %3150 = vmatpush1.bf16.msra.mxu0 %v3112
        %3151 = vmatprep.subr.bf16.mxu0 0
        %3152 = vmatpush1.bf16.msra.mxu0 %v3113
        %3153 = vmatprep.subr.bf16.mxu0 0
        %3154 = vmatpush1.bf16.msra.mxu0 %v3114
        %3155 = vmatprep.subr.bf16.mxu0 0
        %3156 = vmatpush1.bf16.msra.mxu0 %v3115
        %3157 = vmatprep.subr.bf16.mxu0 0
        %3158 = vmatpush1.bf16.msra.mxu0 %v3116
        %3159 = vmatprep.subr.bf16.mxu0 0
        %3160 = vmatpush1.bf16.msra.mxu0 %v3117
        %3161 = vmatprep.subr.bf16.mxu0 0
        %3162 = vmatpush1.bf16.msra.mxu0 %v3118
        %3163 = vmatprep.subr.bf16.mxu0 0
        %3164 = vmatpush1.bf16.msra.mxu0 %v3119
        %3165 = vmatprep.subr.bf16.mxu0 0
        %3166 = vmatpush1.bf16.msra.mxu0 %v3120
        %3167 = vmatprep.subr.bf16.mxu0 0
        %3168 = vmatpush1.bf16.msra.mxu0 %v3121
        %3169 = vmatprep.subr.bf16.mxu0 0
        %3170 = vmatpush1.bf16.msra.mxu0 %v3122
        %3171 = vmatprep.mubr.bf16.mxu0 %v3008
        %3172 = vmatmul.mubr.bf16.gmra.mrb[0].mxu0 %v3007
        %v3173 = vpop.f32.mrb[0].mxu0
        %v3174 = vadd.f32 0.0, %v3173
        %v3175 = vpop.f32.mrb[0].mxu0
        %v3176 = vpop.f32.mrb[0].mxu0
        %v3177 = vadd.f32 0.0, %v3176
        %v3178 = vpop.f32.mrb[0].mxu0
        %3179 = vdwg.mxu0
        %v3180 = vadd.f32 %v3009, %v3174
        %v3181 = vadd.f32 %v3010, %v3177
        %3182 = vst.msk [vmem:[#allocation4] sm:$0xff] %vm2956, %v3180
        %3183 = vst.msk [vmem:[#allocation4 + $0x8] sm:$0xff] %vm2956, %v3181
        // Predicated region
        $region81: #{tpu_custom_call.1} parent=71 // pred_check
          %p3184 = pneg %p699
        $region82: #{tpu_custom_call.1} parent=71 // pred_check_branch
          %3186 = sbr.rel (%p3184) target = $region84
        $region83: #{tpu_custom_call.1} parent=71 // pred_region
          %v3187 = vld [vmem:[#allocation3] sm:$0xff]
          %v3188 = vld [vmem:[#allocation3 + $0x8] sm:$0xff]
          %v3189 = vld [vmem:[#allocation4] sm:$0xff]
          %v3190 = vld [vmem:[#allocation4 + $0x8] sm:$0xff]
          %v3191 = vadd.f32 %v3187, %v3189
          %v3192 = vadd.f32 %v3188, %v3190
          %v3193 = vld [vmem:[%s683] sm:$0x1]
          %v3195 = vlaneseq
          %v3196 = vshrl.u32 %v3195, 7
          %v3197 = vsub.s32 0, %v3196
          %v3198 = vrot.slane %v3193, %v3197
          %v3200 = vadd.f32 %v3191, %v3198
          %v3201 = vadd.f32 %v3192, %v3198
          %v3202 = vld [vmem:[%s692] sm:$0x1]
          %v3203 = vld [vmem:[%s695] sm:$0x1]
          %v3204 = vsel %vm2956, %v3200, 0.0
          %3205 = vadd.xlane.f32.xlu0 %v3204
          %v3206 = vpop.xlane.xlu0 %3205
          %v3207 = vsel %vm2956, %v3201, 0.0
          %3208 = vadd.xlane.f32.xlu0 %v3207
          %v3209 = vpop.xlane.xlu0 %3208
          %v3210 = vrcp.pop 32.0
          %v3211 = vmul.f32 %v3206, %v3210
          %v3212 = vmul.f32 %v3209, %v3210
          %v3213 = vsub.f32 %v3200, %v3211
          %v3214 = vsub.f32 %v3201, %v3212
          %v3215 = vmul.f32 %v3213, %v3213
          %v3216 = vmul.f32 %v3214, %v3214
          %v3217 = vsel %vm2956, %v3215, 0.0
          %3218 = vadd.xlane.f32.xlu0 %v3217
          %v3219 = vpop.xlane.xlu0 %3218
          %v3220 = vsel %vm2956, %v3216, 0.0
          %3221 = vadd.xlane.f32.xlu0 %v3220
          %v3222 = vpop.xlane.xlu0 %3221
          %v3223 = vmul.f32 %v3219, %v3210
          %v3224 = vmul.f32 %v3222, %v3210
          %v3225 = vadd.f32 %v3223, 1e-05
          %v3226 = vadd.f32 %v3224, 1e-05
          %v3227 = vrsqrt.pop %v3225
          %v3228 = vrsqrt.pop %v3226
          %v3229 = vmul.f32 %v3213, %v3227
          %v3230 = vmul.f32 %v3214, %v3228
          %v3232 = vlaneseq
          %v3233 = vshrl.u32 %v3232, 7
          %v3234 = vsub.s32 0, %v3233
          %v3235 = vrot.slane %v3202, %v3234
          %v3237 = vmul.f32 %v3229, %v3235
          %v3238 = vmul.f32 %v3230, %v3235
          %v3240 = vlaneseq
          %v3241 = vshrl.u32 %v3240, 7
          %v3242 = vsub.s32 0, %v3241
          %v3243 = vrot.slane %v3203, %v3242
          %v3245 = vadd.f32 %v3237, %v3243
          %v3246 = vadd.f32 %v3238, %v3243
          %3247 = vst.msk [vmem:[#allocation2] sm:$0xff] %vm2956, %v3245
          %3248 = vst.msk [vmem:[#allocation2 + $0x8] sm:$0xff] %vm2956, %v3246
        $region84: #{tpu_custom_call.1} parent=71 // pred_fallthru
          _
        %p3249 = scmp.eq.s32.totalorder %s31, 2
        %p3250 = pnand %p699, %p3249
        %p3251 = pneg %p3250
        // Predicated region
        $region85: #{tpu_custom_call.1} parent=71 // pred_check
          _
        $region86: #{tpu_custom_call.1} parent=71 // pred_check_branch
          %3253 = sbr.rel (%p3250) target = $region88
        $region87: #{tpu_custom_call.1} parent=71 // pred_region
          %v3254 = vld [vmem:[#allocation2] sm:$0xff]
          %v3255 = vld [vmem:[#allocation2 + $0x8] sm:$0xff]
          %3256 = vst.msk [vmem:[#allocation5] sm:$0xff] %vm2956, %v3254
          %3257 = vst.msk [vmem:[#allocation5 + $0x8] sm:$0xff] %vm2956, %v3255
        $region88: #{tpu_custom_call.1} parent=71 // pred_fallthru
          _
        // Predicated region
        $region89: #{tpu_custom_call.1} parent=71 // pred_check
          %p3258 = pneg %p406
        $region90: #{tpu_custom_call.1} parent=71 // pred_check_branch
          %3260 = sbr.rel (%p3258) target = $region92
        $region91: #{tpu_custom_call.1} parent=71 // pred_region
          %s3261 = smul.u32 2, %s30
          %s3263 = ssub.s32 256, 256
          %3264 = vsyncadd [#allocation6], %s3263
          %s3265 = smul.addr %s3261, 128
          %s3266 = scalar_lea.hbm %s13, %s3265
          %s3267 = sshll.u32 [#allocation5], 4
          %s3268 = int_to_ptr.vmem [resolvable:$true] %s3267
          %3273 = dma.vmem_to_hbm [thread:$0]  %s3268, 256, %s3266, [#allocation6], 128, 128, 8
        $region92: #{tpu_custom_call.1} parent=71 // pred_fallthru
          _
        // Predicated region
        $region93: #{tpu_custom_call.1} parent=71 // pred_check
          %p3274 = pneg %p406
        $region94: #{tpu_custom_call.1} parent=71 // pred_check_branch
          %3276 = sbr.rel (%p3274) target = $region96
        $region95: #{tpu_custom_call.1} parent=71 // pred_region
          %3277 = dma.done [#allocation6], 256
        $region96: #{tpu_custom_call.1} parent=71 // pred_fallthru
          _
      $region72: #{tpu_custom_call.1} parent=5 // pred_fallthru
        _
      %p3278 = scmp.le.s32.totalorder 2, %s20
      // Predicated region
      $region97: #{tpu_custom_call.1} parent=5 // pred_check
        %p3279 = pneg %p3278
      $region98: #{tpu_custom_call.1} parent=5 // pred_check_branch
        %3281 = sbr.rel (%p3279) target = $region100
      $region99: #{tpu_custom_call.1} parent=5 // pred_region
        %s3282 = ssub.s32 %s20, 2
      $region100: #{tpu_custom_call.1} parent=5 // pred_fallthru
        _
    $region6: #{tpu_custom_call.1} parent=1 // loop_footer
      %s24 = sadd.s32 1, %s20
    $region7: #{tpu_custom_call.1} parent=1 // loop_footer_branch
      %19 = sbr.rel target = $region3
    $region8: #{tpu_custom_call.1} parent=1 // loop_exit
      _
    %3283 = vsyncpa [#allocation6], 1
    %s3284 = scalar_lea.sflag [#allocation6], 1
    %3285 = vsyncpa %s3284, 1

</llo_original>
